<compile_context>
chip_gen: v6e
topology: v6e:2x2x1
jax: 0.10.0
libtpu: 0.0.40
codegen_flags: <defaults>
</compile_context>

<pallas_src>
import numpy as np
import jax
import jax.numpy as jnp
from jax import lax
from jax.experimental import pallas as pl
from jax.experimental.pallas import tpu as pltpu

N_OBJ = 37   # number of object classes
S_REL = 6    # spatial relation classes
C_REL = 17   # contact relation classes
A_REL = 3    # "attention" relations (parameter exists but unused in forward)

_S2 = S_REL * S_REL    # 36
_C2 = C_REL * C_REL    # 289

_HIGHEST = jax.lax.Precision.HIGHEST


def _round_up(x, m):
    return ((x + m - 1) // m) * m


def _make_expand_reduce(r):
    """E[ri, ri*r+si] = 1   (expand labels over the flattened (rel_in, rel_out) axis)
       R[ri*r+si, si] = 1   (reduce over rel_in)."""
    e = np.zeros((r, r * r), np.float32)
    red = np.zeros((r * r, r), np.float32)
    for ri in range(r):
        for si in range(r):
            e[ri, ri * r + si] = 1.0
            red[ri * r + si, si] = 1.0
    return e, red


_ES_NP, _RS_NP = _make_expand_reduce(S_REL)
_EC_NP, _RC_NP = _make_expand_reduce(C_REL)


def _dot(a, b):
    # full-f32 MXU matmul (no bf16 truncation of the softmax weights / labels)
    return jnp.dot(a, b, precision=_HIGHEST, preferred_element_type=jnp.float32)


def transition_kernel(obj_ref,   # (T, 1)    object class per row
                      sl_ref,    # (T, 6)    spatial labels (row block)
                      cl_ref,    # (T, 17)   contact labels (row block)
                      ws_ref,    # (37, 36)  softmax(s_trans)[o, r, s] flat over (r, s)
                      wc_ref,    # (37, 289) softmax(c_trans) flat
                      es_ref,    # (6, 36)   label-expansion 0/1 matrix
                      ec_ref,    # (17, 289)
                      rs_ref,    # (36, 6)   rel_in-reduction 0/1 matrix
                      rc_ref,    # (289, 17)
                      ps_ref,    # (T, 6)    output block
                      pc_ref):   # (T, 17)   output block
    t = sl_ref.shape[0]

    # One-hot "gather" matrix: row n selects transition matrix obj[n] (MXU).
    obj = obj_ref[...].astype(jnp.int32)                          # (T, 1)
    classes = lax.broadcasted_iota(jnp.int32, (t, N_OBJ), 1)      # (T, 37)
    onehot = (obj == classes).astype(jnp.float32)                 # (T, 37)

    sl = sl_ref[...].astype(jnp.float32)                          # (T, 6)
    cl = cl_ref[...].astype(jnp.float32)                          # (T, 17)

    # pred[n, s] = sum_r label[n, r] * W[obj[n], r, s]
    #   G[n, r*R+s] = W[obj[n], r, s]        (one wide gather matmul)
    #   P[n, r*R+s] = label[n, r] * G[...]   (expansion matmul + VPU multiply)
    #   pred        = P @ Rmat               (reduction matmul over rel_in)
    gs = _dot(onehot, ws_ref[...])                                # (T, 36)
    gc = _dot(onehot, wc_ref[...])                                # (T, 289)

    ps = _dot(_dot(sl, es_ref[...]) * gs, rs_ref[...])            # (T, 6)
    pc = _dot(_dot(cl, ec_ref[...]) * gc, rc_ref[...])            # (T, 17)

    ps_ref[...] = ps.astype(ps_ref.dtype)                          # whole-slab store
    pc_ref[...] = pc.astype(pc_ref.dtype)


def transition_forward(spatial_label, contact_label, obj_label,
                       s_trans, c_trans, *, tile_rows=2048):
    n = spatial_label.shape[0]

    # Forward-time softmax (== softmax(self.*_trans_matrix, dim=2) in torch
    # forward).  Sample independent and tiny (37*325 elems): once per call,
    # not once per grid step.  Flatten to [obj, rel_in*rel_out] for the kernel.
    ws = jax.nn.softmax(s_trans.astype(jnp.float32), axis=-1).reshape(N_OBJ, _S2)
    wc = jax.nn.softmax(c_trans.astype(jnp.float32), axis=-1).reshape(N_OBJ, _C2)

    es = jnp.asarray(_ES_NP)
    ec = jnp.asarray(_EC_NP)
    rs = jnp.asarray(_RS_NP)
    rc = jnp.asarray(_RC_NP)

    obj2 = obj_label.reshape(n, 1)   # free layout change, no extra HBM pass

    # Row-block size: as large as possible (mem-bound amortization), always a
    # multiple of 8 (sublane constraint).  Ragged last block handled by grid.
    tile = min(tile_rows, _round_up(max(n, 1), 8))
    # Keep >= 2 grid steps when there is enough work so the "parallel" axis
    # can shard across both TensorCores on v7x.
    if n >= 1024 and pl.cdiv(n, tile) < 2:
        tile = _round_up(pl.cdiv(n, 2), 8)
    grid = (pl.cdiv(n, tile),)

    grid_spec = pltpu.PrefetchScalarGridSpec(
        num_scalar_prefetch=0,
        grid=grid,
        in_specs=[
            pl.BlockSpec((tile, 1), lambda i: (i, 0)),        # obj ids
            pl.BlockSpec((tile, S_REL), lambda i: (i, 0)),    # spatial labels
            pl.BlockSpec((tile, C_REL), lambda i: (i, 0)),    # contact labels
            pl.BlockSpec((N_OBJ, _S2), lambda i: (0, 0)),     # resident weights
            pl.BlockSpec((N_OBJ, _C2), lambda i: (0, 0)),
            pl.BlockSpec((S_REL, _S2), lambda i: (0, 0)),     # resident constants
            pl.BlockSpec((C_REL, _C2), lambda i: (0, 0)),
            pl.BlockSpec((_S2, S_REL), lambda i: (0, 0)),
            pl.BlockSpec((_C2, C_REL), lambda i: (0, 0)),
        ],
        out_specs=[
            pl.BlockSpec((tile, S_REL), lambda i: (i, 0)),
            pl.BlockSpec((tile, C_REL), lambda i: (i, 0)),
        ],
    )

    ps, pc = pl.pallas_call(
        transition_kernel,
        grid_spec=grid_spec,
        out_shape=(
            jax.ShapeDtypeStruct((n, S_REL), jnp.float32),
            jax.ShapeDtypeStruct((n, C_REL), jnp.float32),
        ),
        compiler_params=pltpu.CompilerParams(
            # per-block independent outputs -> sample axis can shard across
            # TensorCores on v7x; no downside on v5e/v6e.
            dimension_semantics=("parallel",),
            # ~11 MiB of double-buffered blocks at tile=2048 plus ~0.7 MiB of
            # resident weights; 32 MiB is safe on all generations.
            vmem_limit_bytes=32 * 1024 * 1024,
        ),
    )(obj2, spatial_label, contact_label, ws, wc, es, ec, rs, rc)

    return ps, pc


def init_params(key):
    """Deterministic stand-in for the module __init__: rand -> softmax(dim=2)."""
    ka, ks, kc = jax.random.split(key, 3)
    a = jax.nn.softmax(jax.random.uniform(ka, (N_OBJ, A_REL, A_REL), jnp.float32), axis=2)
    s = jax.nn.softmax(jax.random.uniform(ks, (N_OBJ, S_REL, S_REL), jnp.float32), axis=2)
    c = jax.nn.softmax(jax.random.uniform(kc, (N_OBJ, C_REL, C_REL), jnp.float32), axis=2)
    # a_trans_matrix is a parameter of the module but unused in forward.
    return a, s, c


def reference_forward(spatial_label, contact_label, obj_label, s_trans, c_trans):
    st = jax.nn.softmax(s_trans, axis=2)
    ct = jax.nn.softmax(c_trans, axis=2)
    ps = jnp.einsum("nr,nrs->ns", spatial_label, st[obj_label], precision=_HIGHEST)
    pc = jnp.einsum("nr,nrs->ns", contact_label, ct[obj_label], precision=_HIGHEST)
    return ps, pc


if __name__ == "__main__":
    key = jax.random.PRNGKey(0)
    k_params, k_data = jax.random.split(key)
    _, s_trans, c_trans = init_params(k_params)

    def run_case(n, tile_rows):
        ks, kc, ko = jax.random.split(jax.random.fold_in(k_data, n), 3)
        sl = jax.random.uniform(ks, (n, S_REL), jnp.float32)
        cl = jax.random.uniform(kc, (n, C_REL), jnp.float32)
        obj = jax.random.randint(ko, (n,), 0, N_OBJ, dtype=jnp.int32)

        ps, pc = transition_forward(sl, cl, obj, s_trans, c_trans,
                                    tile_rows=tile_rows)
        jax.block_until_ready((ps, pc))

        ps_ref, pc_ref = reference_forward(sl, cl, obj, s_trans, c_trans)
        assert ps.shape == (n, S_REL) and pc.shape == (n, C_REL)
        assert jnp.allclose(ps, ps_ref, atol=1e-5, rtol=1e-5), f"spatial mismatch (n={n})"
        assert jnp.allclose(pc, pc_ref, atol=1e-5, rtol=1e-5), f"contact mismatch (n={n})"

    run_case(8, 2048)       # tiny: single small block
    run_case(1000, 128)     # multi-step grid with ragged last block
    print("KERNEL_OK")
</pallas_src>

<mosaic_0001>
module attributes {stable_mosaic.version = 11 : i64} {
  func.func @transition_kernel(%arg0: i32, %arg1: memref<8x1xi32, #tpu.memory_space<vmem>>, %arg2: memref<8x6xf32, #tpu.memory_space<vmem>>, %arg3: memref<8x17xf32, #tpu.memory_space<vmem>>, %arg4: memref<37x36xf32, #tpu.memory_space<vmem>>, %arg5: memref<37x289xf32, #tpu.memory_space<vmem>>, %arg6: memref<6x36xf32, #tpu.memory_space<vmem>>, %arg7: memref<17x289xf32, #tpu.memory_space<vmem>>, %arg8: memref<36x6xf32, #tpu.memory_space<vmem>>, %arg9: memref<289x17xf32, #tpu.memory_space<vmem>>, %arg10: memref<8x6xf32, #tpu.memory_space<vmem>>, %arg11: memref<8x17xf32, #tpu.memory_space<vmem>>) attributes {dimension_semantics = [#tpu.dimension_semantics<parallel>], iteration_bounds = array<i64: 1>, scalar_prefetch = 0 : i64, scratch_operands = 0 : i64, tpu.core_type = #tpu.core_type<tc>, window_params = [{transform_indices = @transform_0, window_bounds = array<i64: 8, 1>}, {transform_indices = @transform_1, window_bounds = array<i64: 8, 6>}, {transform_indices = @transform_2, window_bounds = array<i64: 8, 17>}, {pipeline_mode = #tpu.pipeline_mode<synchronous>, transform_indices = @transform_3, window_bounds = array<i64: 37, 36>}, {pipeline_mode = #tpu.pipeline_mode<synchronous>, transform_indices = @transform_4, window_bounds = array<i64: 37, 289>}, {pipeline_mode = #tpu.pipeline_mode<synchronous>, transform_indices = @transform_5, window_bounds = array<i64: 6, 36>}, {pipeline_mode = #tpu.pipeline_mode<synchronous>, transform_indices = @transform_6, window_bounds = array<i64: 17, 289>}, {pipeline_mode = #tpu.pipeline_mode<synchronous>, transform_indices = @transform_7, window_bounds = array<i64: 36, 6>}, {pipeline_mode = #tpu.pipeline_mode<synchronous>, transform_indices = @transform_8, window_bounds = array<i64: 289, 17>}, {transform_indices = @transform_9, window_bounds = array<i64: 8, 6>}, {transform_indices = @transform_10, window_bounds = array<i64: 8, 17>}]} {
    %c0 = arith.constant 0 : index
    %c0_0 = arith.constant 0 : index
    %0 = vector.load %arg1[%c0, %c0_0] : memref<8x1xi32, #tpu.memory_space<vmem>>, vector<8x1xi32>
    %1 = tpu.iota {dimensions = array<i32: 1>} : vector<8x37xi32>
    %2 = vector.broadcast %0 : vector<8x1xi32> to vector<8x37xi32>
    %3 = arith.cmpi eq, %2, %1 : vector<8x37xi32>
    %4 = arith.extui %3 : vector<8x37xi1> to vector<8x37xi32>
    %5 = arith.sitofp %4 : vector<8x37xi32> to vector<8x37xf32>
    %c0_1 = arith.constant 0 : index
    %c0_2 = arith.constant 0 : index
    %6 = vector.load %arg2[%c0_1, %c0_2] : memref<8x6xf32, #tpu.memory_space<vmem>>, vector<8x6xf32>
    %c0_3 = arith.constant 0 : index
    %c0_4 = arith.constant 0 : index
    %7 = vector.load %arg3[%c0_3, %c0_4] : memref<8x17xf32, #tpu.memory_space<vmem>>, vector<8x17xf32>
    %c0_5 = arith.constant 0 : index
    %c0_6 = arith.constant 0 : index
    %8 = vector.load %arg4[%c0_5, %c0_6] : memref<37x36xf32, #tpu.memory_space<vmem>>, vector<37x36xf32>
    %cst = arith.constant dense<0.000000e+00> : vector<8x36xf32>
    %9 = tpu.matmul %5, %8, %cst {dimension_numbers = #tpu.dot_dimension_numbers<[1], [0], [0], [1], [0, 0, 1, 1], [], []>, precision = #tpu.contract_precision<fp32>} : vector<8x37xf32>, vector<37x36xf32>, vector<8x36xf32> -> vector<8x36xf32>
    %c0_7 = arith.constant 0 : index
    %c0_8 = arith.constant 0 : index
    %10 = vector.load %arg5[%c0_7, %c0_8] : memref<37x289xf32, #tpu.memory_space<vmem>>, vector<37x289xf32>
    %cst_9 = arith.constant dense<0.000000e+00> : vector<8x289xf32>
    %11 = tpu.matmul %5, %10, %cst_9 {dimension_numbers = #tpu.dot_dimension_numbers<[1], [0], [0], [1], [0, 0, 1, 1], [], []>, precision = #tpu.contract_precision<fp32>} : vector<8x37xf32>, vector<37x289xf32>, vector<8x289xf32> -> vector<8x289xf32>
    %c0_10 = arith.constant 0 : index
    %c0_11 = arith.constant 0 : index
    %12 = vector.load %arg6[%c0_10, %c0_11] : memref<6x36xf32, #tpu.memory_space<vmem>>, vector<6x36xf32>
    %cst_12 = arith.constant dense<0.000000e+00> : vector<8x36xf32>
    %13 = tpu.matmul %6, %12, %cst_12 {dimension_numbers = #tpu.dot_dimension_numbers<[1], [0], [0], [1], [0, 0, 1, 1], [], []>, precision = #tpu.contract_precision<fp32>} : vector<8x6xf32>, vector<6x36xf32>, vector<8x36xf32> -> vector<8x36xf32>
    %14 = arith.mulf %13, %9 : vector<8x36xf32>
    %c0_13 = arith.constant 0 : index
    %c0_14 = arith.constant 0 : index
    %15 = vector.load %arg8[%c0_13, %c0_14] : memref<36x6xf32, #tpu.memory_space<vmem>>, vector<36x6xf32>
    %cst_15 = arith.constant dense<0.000000e+00> : vector<8x6xf32>
    %16 = tpu.matmul %14, %15, %cst_15 {dimension_numbers = #tpu.dot_dimension_numbers<[1], [0], [0], [1], [0, 0, 1, 1], [], []>, precision = #tpu.contract_precision<fp32>} : vector<8x36xf32>, vector<36x6xf32>, vector<8x6xf32> -> vector<8x6xf32>
    %c0_16 = arith.constant 0 : index
    %c0_17 = arith.constant 0 : index
    %17 = vector.load %arg7[%c0_16, %c0_17] : memref<17x289xf32, #tpu.memory_space<vmem>>, vector<17x289xf32>
    %cst_18 = arith.constant dense<0.000000e+00> : vector<8x289xf32>
    %18 = tpu.matmul %7, %17, %cst_18 {dimension_numbers = #tpu.dot_dimension_numbers<[1], [0], [0], [1], [0, 0, 1, 1], [], []>, precision = #tpu.contract_precision<fp32>} : vector<8x17xf32>, vector<17x289xf32>, vector<8x289xf32> -> vector<8x289xf32>
    %19 = arith.mulf %18, %11 : vector<8x289xf32>
    %c0_19 = arith.constant 0 : index
    %c0_20 = arith.constant 0 : index
    %20 = vector.load %arg9[%c0_19, %c0_20] : memref<289x17xf32, #tpu.memory_space<vmem>>, vector<289x17xf32>
    %cst_21 = arith.constant dense<0.000000e+00> : vector<8x17xf32>
    %21 = tpu.matmul %19, %20, %cst_21 {dimension_numbers = #tpu.dot_dimension_numbers<[1], [0], [0], [1], [0, 0, 1, 1], [], []>, precision = #tpu.contract_precision<fp32>} : vector<8x289xf32>, vector<289x17xf32>, vector<8x17xf32> -> vector<8x17xf32>
    %c0_22 = arith.constant 0 : index
    %c0_23 = arith.constant 0 : index
    %22 = vector.load %arg10[%c0_22, %c0_23] : memref<8x6xf32, #tpu.memory_space<vmem>>, vector<8x6xf32>
    tpu.vector_store %arg10[%c0_22, %c0_23], %16 {strides = array<i32>} : memref<8x6xf32, #tpu.memory_space<vmem>>, vector<8x6xf32>,
    %c0_24 = arith.constant 0 : index
    %c0_25 = arith.constant 0 : index
    %23 = vector.load %arg11[%c0_24, %c0_25] : memref<8x17xf32, #tpu.memory_space<vmem>>, vector<8x17xf32>
    tpu.vector_store %arg11[%c0_24, %c0_25], %21 {strides = array<i32>} : memref<8x17xf32, #tpu.memory_space<vmem>>, vector<8x17xf32>,
    return
  }
  func.func @transform_0(%arg0: i32) -> (i32, i32) {
    %c0_i32 = arith.constant 0 : i32
    %c0_i32_0 = arith.constant 0 : i32
    return %arg0, %c0_i32 : i32, i32
  }
  func.func @transform_1(%arg0: i32) -> (i32, i32) {
    %c0_i32 = arith.constant 0 : i32
    %c0_i32_0 = arith.constant 0 : i32
    return %arg0, %c0_i32 : i32, i32
  }
  func.func @transform_2(%arg0: i32) -> (i32, i32) {
    %c0_i32 = arith.constant 0 : i32
    %c0_i32_0 = arith.constant 0 : i32
    return %arg0, %c0_i32 : i32, i32
  }
  func.func @transform_3(%arg0: i32) -> (i32, i32) {
    %c0_i32 = arith.constant 0 : i32
    %c0_i32_0 = arith.constant 0 : i32
    %c0_i32_1 = arith.constant 0 : i32
    return %c0_i32, %c0_i32_0 : i32, i32
  }
  func.func @transform_4(%arg0: i32) -> (i32, i32) {
    %c0_i32 = arith.constant 0 : i32
    %c0_i32_0 = arith.constant 0 : i32
    %c0_i32_1 = arith.constant 0 : i32
    return %c0_i32, %c0_i32_0 : i32, i32
  }
  func.func @transform_5(%arg0: i32) -> (i32, i32) {
    %c0_i32 = arith.constant 0 : i32
    %c0_i32_0 = arith.constant 0 : i32
    %c0_i32_1 = arith.constant 0 : i32
    return %c0_i32, %c0_i32_0 : i32, i32
  }
  func.func @transform_6(%arg0: i32) -> (i32, i32) {
    %c0_i32 = arith.constant 0 : i32
    %c0_i32_0 = arith.constant 0 : i32
    %c0_i32_1 = arith.constant 0 : i32
    return %c0_i32, %c0_i32_0 : i32, i32
  }
  func.func @transform_7(%arg0: i32) -> (i32, i32) {
    %c0_i32 = arith.constant 0 : i32
    %c0_i32_0 = arith.constant 0 : i32
    %c0_i32_1 = arith.constant 0 : i32
    return %c0_i32, %c0_i32_0 : i32, i32
  }
  func.func @transform_8(%arg0: i32) -> (i32, i32) {
    %c0_i32 = arith.constant 0 : i32
    %c0_i32_0 = arith.constant 0 : i32
    %c0_i32_1 = arith.constant 0 : i32
    return %c0_i32, %c0_i32_0 : i32, i32
  }
  func.func @transform_9(%arg0: i32) -> (i32, i32) {
    %c0_i32 = arith.constant 0 : i32
    %c0_i32_0 = arith.constant 0 : i32
    return %arg0, %c0_i32 : i32, i32
  }
  func.func @transform_10(%arg0: i32) -> (i32, i32) {
    %c0_i32 = arith.constant 0 : i32
    %c0_i32_0 = arith.constant 0 : i32
    return %arg0, %c0_i32 : i32, i32
  }
}

</mosaic_0001>

<llo_original>
// kernel: tpu_custom_call.1
$region0: #{tpu_custom_call.1}
  #allocation0 [shape = 'u32[]', space=smem, size = 0x4, offset = 0x4, fixed_abs, tag = 'smem constant byte address 0x4 - core index']
  #allocation1 [shape = 'u32[144,128]{1,0:T(1,128)}', space=vmem, size = 0x12000, scoped, tag = 'internal scratch']
  %s0 = inlined_call_operand.vmem [shape: s32[8,1], index: 0, kind: input, shape index: {}]
  %s1 = inlined_call_operand.vmem [shape: f32[8,6], index: 1, kind: input, shape index: {}]
  %s2 = inlined_call_operand.vmem [shape: f32[8,17], index: 2, kind: input, shape index: {}]
  %s3 = inlined_call_operand.vmem [shape: f32[37,36], index: 3, kind: input, shape index: {}]
  %s4 = inlined_call_operand.vmem [shape: f32[37,289], index: 4, kind: input, shape index: {}]
  %s5 = inlined_call_operand.vmem [shape: f32[6,36], index: 5, kind: input, shape index: {}]
  %s6 = inlined_call_operand.vmem [shape: f32[17,289], index: 6, kind: input, shape index: {}]
  %s7 = inlined_call_operand.vmem [shape: f32[36,6], index: 7, kind: input, shape index: {}]
  %s8 = inlined_call_operand.vmem [shape: f32[289,17], index: 8, kind: input, shape index: {}]
  %s9 = inlined_call_operand.hbm [shape: f32[8,6], index: 9, kind: output, shape index: {0}]
  %s10 = inlined_call_operand.hbm [shape: f32[8,17], index: 10, kind: output, shape index: {1}]
  %11 = xla_tuple %s9, %s10
  %s12 = sld [smem:[#allocation0]]
  $region54: #{tpu_custom_call.1} parent=0
    _
  %s14 = ssub.s32 1, %s12
  %s15 = scalar_select 0, %s14, %s12
  $region1: #{tpu_custom_call.1} parent=0
    #allocation2 [shape = 'u8[4096]{0}', space=vmem, size = 0x1000, scoped, tag = 'output window, operand 0, single buffered']
    #allocation3 [shape = 's32[1]{0}', space=sflag, size = 0x4, scoped, tag = 'scoped memory for tpu_custom_call.1']
    #allocation4 [shape = 'u8[4096]{0}', space=vmem, size = 0x1000, scoped, tag = 'output window, operand 1, single buffered']
    #allocation5 [shape = 's32[1]{0}', space=sflag, size = 0x4, scoped, tag = 'scoped memory for tpu_custom_call.1']
    %16 = vsyncpa [#allocation3], 0
    %17 = vsyncpa [#allocation5], 0
    // Predicated region
    $region2: #{tpu_custom_call.1} parent=1 // pred_check
      _
    $region3: #{tpu_custom_call.1} parent=1 // pred_check_branch
      %19 = sbr.rel (0) target = $region5
    $region4: #{tpu_custom_call.1} parent=1 // pred_region
      _
    $region5: #{tpu_custom_call.1} parent=1 // pred_fallthru
      _
    // Predicated region
    $region6: #{tpu_custom_call.1} parent=1 // pred_check
      _
    $region7: #{tpu_custom_call.1} parent=1 // pred_check_branch
      %21 = sbr.rel (0) target = $region9
    $region8: #{tpu_custom_call.1} parent=1 // pred_region
      _
    $region9: #{tpu_custom_call.1} parent=1 // pred_fallthru
      _
    // Predicated region
    $region10: #{tpu_custom_call.1} parent=1 // pred_check
      _
    $region11: #{tpu_custom_call.1} parent=1 // pred_check_branch
      %23 = sbr.rel (0) target = $region13
    $region12: #{tpu_custom_call.1} parent=1 // pred_region
      _
    $region13: #{tpu_custom_call.1} parent=1 // pred_fallthru
      _
    // Predicated region
    $region14: #{tpu_custom_call.1} parent=1 // pred_check
      _
    $region15: #{tpu_custom_call.1} parent=1 // pred_check_branch
      %25 = sbr.rel (0) target = $region17
    $region16: #{tpu_custom_call.1} parent=1 // pred_region
      _
    $region17: #{tpu_custom_call.1} parent=1 // pred_fallthru
      _
    // Predicated region
    $region18: #{tpu_custom_call.1} parent=1 // pred_check
      _
    $region19: #{tpu_custom_call.1} parent=1 // pred_check_branch
      %27 = sbr.rel (0) target = $region21
    $region20: #{tpu_custom_call.1} parent=1 // pred_region
      _
    $region21: #{tpu_custom_call.1} parent=1 // pred_fallthru
      _
    // Predicated region
    $region22: #{tpu_custom_call.1} parent=1 // pred_check
      _
    $region23: #{tpu_custom_call.1} parent=1 // pred_check_branch
      %29 = sbr.rel (0) target = $region25
    $region24: #{tpu_custom_call.1} parent=1 // pred_region
      _
    $region25: #{tpu_custom_call.1} parent=1 // pred_fallthru
      _
    // Predicated region
    $region26: #{tpu_custom_call.1} parent=1 // pred_check
      _
    $region27: #{tpu_custom_call.1} parent=1 // pred_check_branch
      %31 = sbr.rel (0) target = $region29
    $region28: #{tpu_custom_call.1} parent=1 // pred_region
      _
    $region29: #{tpu_custom_call.1} parent=1 // pred_fallthru
      _
    // Predicated region
    $region30: #{tpu_custom_call.1} parent=1 // pred_check
      _
    $region31: #{tpu_custom_call.1} parent=1 // pred_check_branch
      %33 = sbr.rel (0) target = $region33
    $region32: #{tpu_custom_call.1} parent=1 // pred_region
      _
    $region33: #{tpu_custom_call.1} parent=1 // pred_fallthru
      _
    // Predicated region
    $region34: #{tpu_custom_call.1} parent=1 // pred_check
      _
    $region35: #{tpu_custom_call.1} parent=1 // pred_check_branch
      %35 = sbr.rel (0) target = $region37
    $region36: #{tpu_custom_call.1} parent=1 // pred_region
      _
    $region37: #{tpu_custom_call.1} parent=1 // pred_fallthru
      _
    %v36 = vld [vmem:[%s0] sm:$0xff]
    %v37 = vlaneseq
    %v38 = vand.u32 %v37, 127
    %39 = vset.pattern.permute.xlu0 0
    %40 = vperm.xlu0 %39, %v36
    %v41 = vpop.permute.xlu0 %40
    %vm42 = vcmp.eq.s32.totalorder %v41, %v38
    %v43 = vsel %vm42, 1, 0
    %v44 = vcvt.s32.f32 %v43
    %v45 = vld [vmem:[%s1] sm:$0xff]
    %v46 = vld [vmem:[%s2] sm:$0xff]
    %v47 = vld [vmem:[%s3] sm:$0xff]
    %v48 = vld [vmem:[%s3 + $0x8] sm:$0xff]
    %v49 = vld [vmem:[%s3 + $0x10] sm:$0xff]
    %v50 = vld [vmem:[%s3 + $0x18] sm:$0xff]
    %v51 = vld [vmem:[%s3 + $0x20] sm:$0x1f]
    %vm52 = vcmask 302080
    %v54 = vsel %vm52, %v44, 0
    %vm56 = vcmask 1044480
    %v58 = vsel %vm56, %v51, 0
    %60 = vmatprep.subr.mxu0 0.0
    %61 = vmatpush1.msra.mxu0 0.0
    %62 = vmatprep.subr.mxu0 0.0
    %63 = vmatpush1.msra.mxu0 0.0
    %64 = vmatprep.subr.mxu0 0.0
    %65 = vmatpush1.msra.mxu0 0.0
    %66 = vmatprep.subr.mxu0 0.0
    %67 = vmatpush1.msra.mxu0 0.0
    %68 = vmatprep.subr.mxu0 0.0
    %69 = vmatpush1.msra.mxu0 0.0
    %70 = vmatprep.subr.mxu0 0.0
    %71 = vmatpush1.msra.mxu0 0.0
    %72 = vmatprep.subr.mxu0 0.0
    %73 = vmatpush1.msra.mxu0 0.0
    %74 = vmatprep.subr.mxu0 0.0
    %75 = vmatpush1.msra.mxu0 0.0
    %76 = vmatprep.subr.mxu0 0.0
    %77 = vmatpush1.msra.mxu0 0.0
    %78 = vmatprep.subr.mxu0 0.0
    %79 = vmatpush1.msra.mxu0 0.0
    %80 = vmatprep.subr.mxu0 0.0
    %81 = vmatpush1.msra.mxu0 0.0
    %82 = vmatprep.subr.mxu0 0.0
    %v83 = vand.u32 %v58, 4294901760
    %84 = vmatpush1.msra.mxu0 %v83
    %85 = vmatprep.subr.mxu0 0.0
    %v86 = vand.u32 %v50, 4294901760
    %87 = vmatpush1.msra.mxu0 %v86
    %88 = vmatprep.subr.mxu0 0.0
    %v89 = vand.u32 %v49, 4294901760
    %90 = vmatpush1.msra.mxu0 %v89
    %91 = vmatprep.subr.mxu0 0.0
    %v92 = vand.u32 %v48, 4294901760
    %93 = vmatpush1.msra.mxu0 %v92
    %94 = vmatprep.subr.mxu0 0.0
    %v95 = vand.u32 %v47, 4294901760
    %96 = vmatpush1.msra.mxu0 %v95
    %97 = vmatprep.subr.mxu0 0.0
    %98 = vmatpush2.msra.mxu0 0.0
    %99 = vmatprep.subr.mxu0 0.0
    %100 = vmatpush2.msra.mxu0 0.0
    %101 = vmatprep.subr.mxu0 0.0
    %102 = vmatpush2.msra.mxu0 0.0
    %103 = vmatprep.subr.mxu0 0.0
    %104 = vmatpush2.msra.mxu0 0.0
    %105 = vmatprep.subr.mxu0 0.0
    %106 = vmatpush2.msra.mxu0 0.0
    %107 = vmatprep.subr.mxu0 0.0
    %108 = vmatpush2.msra.mxu0 0.0
    %109 = vmatprep.subr.mxu0 0.0
    %110 = vmatpush2.msra.mxu0 0.0
    %111 = vmatprep.subr.mxu0 0.0
    %112 = vmatpush2.msra.mxu0 0.0
    %113 = vmatprep.subr.mxu0 0.0
    %114 = vmatpush2.msra.mxu0 0.0
    %115 = vmatprep.subr.mxu0 0.0
    %116 = vmatpush2.msra.mxu0 0.0
    %117 = vmatprep.subr.mxu0 0.0
    %118 = vmatpush2.msra.mxu0 0.0
    %119 = vmatprep.subr.mxu0 0.0
    %120 = vmatpush2.msra.mxu0 0.0
    %121 = vmatprep.subr.mxu0 0.0
    %122 = vmatpush2.msra.mxu0 0.0
    %123 = vmatprep.subr.mxu0 0.0
    %124 = vmatpush2.msra.mxu0 0.0
    %125 = vmatprep.subr.mxu0 0.0
    %126 = vmatpush2.msra.mxu0 0.0
    %127 = vmatprep.subr.mxu0 0.0
    %128 = vmatpush2.msra.mxu0 0.0
    %129 = vmatprep.mubr.f32.mxu0 0.0
    %v130 = vand.u32 %v54, 4294901760
    %v131 = vsub.f32 %v54, %v130
    %v132 = vand.u32 %v131, 4294901760
    %v133 = vsub.f32 %v131, %v132
    %v134 = vand.u32 %v133, 4294901760
    %135 = vmatmul.mubr.f32.gmra.mxu0 %v134
    %v136 = vpop.f32.mrf.mxu0
    %v137 = vadd.f32 0.0, %v136
    %v138 = vpop.f32.mrf.mxu0
    %139 = vdwg.mxu0
    %140 = vmatprep.subr.mxu0 0.0
    %141 = vmatpush1.msra.mxu0 0.0
    %142 = vmatprep.subr.mxu0 0.0
    %143 = vmatpush1.msra.mxu0 0.0
    %144 = vmatprep.subr.mxu0 0.0
    %145 = vmatpush1.msra.mxu0 0.0
    %146 = vmatprep.subr.mxu0 0.0
    %147 = vmatpush1.msra.mxu0 0.0
    %148 = vmatprep.subr.mxu0 0.0
    %149 = vmatpush1.msra.mxu0 0.0
    %150 = vmatprep.subr.mxu0 0.0
    %151 = vmatpush1.msra.mxu0 0.0
    %152 = vmatprep.subr.mxu0 0.0
    %153 = vmatpush1.msra.mxu0 0.0
    %154 = vmatprep.subr.mxu0 0.0
    %155 = vmatpush1.msra.mxu0 0.0
    %156 = vmatprep.subr.mxu0 0.0
    %157 = vmatpush1.msra.mxu0 0.0
    %158 = vmatprep.subr.mxu0 0.0
    %159 = vmatpush1.msra.mxu0 0.0
    %160 = vmatprep.subr.mxu0 0.0
    %161 = vmatpush1.msra.mxu0 0.0
    %162 = vmatprep.subr.mxu0 0.0
    %v163 = vand.u32 %v58, 4294901760
    %v164 = vsub.f32 %v58, %v163
    %v165 = vand.u32 %v164, 4294901760
    %v166 = vsub.f32 %v164, %v165
    %v167 = vand.u32 %v166, 4294901760
    %168 = vmatpush1.msra.mxu0 %v167
    %169 = vmatprep.subr.mxu0 0.0
    %v170 = vand.u32 %v50, 4294901760
    %v171 = vsub.f32 %v50, %v170
    %v172 = vand.u32 %v171, 4294901760
    %v173 = vsub.f32 %v171, %v172
    %v174 = vand.u32 %v173, 4294901760
    %175 = vmatpush1.msra.mxu0 %v174
    %176 = vmatprep.subr.mxu0 0.0
    %v177 = vand.u32 %v49, 4294901760
    %v178 = vsub.f32 %v49, %v177
    %v179 = vand.u32 %v178, 4294901760
    %v180 = vsub.f32 %v178, %v179
    %v181 = vand.u32 %v180, 4294901760
    %182 = vmatpush1.msra.mxu0 %v181
    %183 = vmatprep.subr.mxu0 0.0
    %v184 = vand.u32 %v48, 4294901760
    %v185 = vsub.f32 %v48, %v184
    %v186 = vand.u32 %v185, 4294901760
    %v187 = vsub.f32 %v185, %v186
    %v188 = vand.u32 %v187, 4294901760
    %189 = vmatpush1.msra.mxu0 %v188
    %190 = vmatprep.subr.mxu0 0.0
    %v191 = vand.u32 %v47, 4294901760
    %v192 = vsub.f32 %v47, %v191
    %v193 = vand.u32 %v192, 4294901760
    %v194 = vsub.f32 %v192, %v193
    %v195 = vand.u32 %v194, 4294901760
    %196 = vmatpush1.msra.mxu0 %v195
    %197 = vmatprep.subr.mxu0 0.0
    %198 = vmatpush2.msra.mxu0 0.0
    %199 = vmatprep.subr.mxu0 0.0
    %200 = vmatpush2.msra.mxu0 0.0
    %201 = vmatprep.subr.mxu0 0.0
    %202 = vmatpush2.msra.mxu0 0.0
    %203 = vmatprep.subr.mxu0 0.0
    %204 = vmatpush2.msra.mxu0 0.0
    %205 = vmatprep.subr.mxu0 0.0
    %206 = vmatpush2.msra.mxu0 0.0
    %207 = vmatprep.subr.mxu0 0.0
    %208 = vmatpush2.msra.mxu0 0.0
    %209 = vmatprep.subr.mxu0 0.0
    %210 = vmatpush2.msra.mxu0 0.0
    %211 = vmatprep.subr.mxu0 0.0
    %212 = vmatpush2.msra.mxu0 0.0
    %213 = vmatprep.subr.mxu0 0.0
    %214 = vmatpush2.msra.mxu0 0.0
    %215 = vmatprep.subr.mxu0 0.0
    %216 = vmatpush2.msra.mxu0 0.0
    %217 = vmatprep.subr.mxu0 0.0
    %218 = vmatpush2.msra.mxu0 0.0
    %219 = vmatprep.subr.mxu0 0.0
    %220 = vmatpush2.msra.mxu0 0.0
    %221 = vmatprep.subr.mxu0 0.0
    %222 = vmatpush2.msra.mxu0 0.0
    %223 = vmatprep.subr.mxu0 0.0
    %224 = vmatpush2.msra.mxu0 0.0
    %225 = vmatprep.subr.mxu0 0.0
    %226 = vmatpush2.msra.mxu0 0.0
    %227 = vmatprep.subr.mxu0 0.0
    %228 = vmatpush2.msra.mxu0 0.0
    %229 = vmatprep.mubr.f32.mxu0 0.0
    %v230 = vand.u32 %v54, 4294901760
    %231 = vmatmul.mubr.f32.gmra.mxu0 %v230
    %v232 = vpop.f32.mrf.mxu0
    %v233 = vadd.f32 %v137, %v232
    %v234 = vpop.f32.mrf.mxu0
    %235 = vdwg.mxu0
    %236 = vmatprep.subr.mxu0 0.0
    %237 = vmatpush1.msra.mxu0 0.0
    %238 = vmatprep.subr.mxu0 0.0
    %239 = vmatpush1.msra.mxu0 0.0
    %240 = vmatprep.subr.mxu0 0.0
    %241 = vmatpush1.msra.mxu0 0.0
    %242 = vmatprep.subr.mxu0 0.0
    %243 = vmatpush1.msra.mxu0 0.0
    %244 = vmatprep.subr.mxu0 0.0
    %245 = vmatpush1.msra.mxu0 0.0
    %246 = vmatprep.subr.mxu0 0.0
    %247 = vmatpush1.msra.mxu0 0.0
    %248 = vmatprep.subr.mxu0 0.0
    %249 = vmatpush1.msra.mxu0 0.0
    %250 = vmatprep.subr.mxu0 0.0
    %251 = vmatpush1.msra.mxu0 0.0
    %252 = vmatprep.subr.mxu0 0.0
    %253 = vmatpush1.msra.mxu0 0.0
    %254 = vmatprep.subr.mxu0 0.0
    %255 = vmatpush1.msra.mxu0 0.0
    %256 = vmatprep.subr.mxu0 0.0
    %257 = vmatpush1.msra.mxu0 0.0
    %258 = vmatprep.subr.mxu0 0.0
    %v259 = vand.u32 %v58, 4294901760
    %v260 = vsub.f32 %v58, %v259
    %261 = vmatpush1.msra.mxu0 %v260
    %262 = vmatprep.subr.mxu0 0.0
    %v263 = vand.u32 %v50, 4294901760
    %v264 = vsub.f32 %v50, %v263
    %265 = vmatpush1.msra.mxu0 %v264
    %266 = vmatprep.subr.mxu0 0.0
    %v267 = vand.u32 %v49, 4294901760
    %v268 = vsub.f32 %v49, %v267
    %269 = vmatpush1.msra.mxu0 %v268
    %270 = vmatprep.subr.mxu0 0.0
    %v271 = vand.u32 %v48, 4294901760
    %v272 = vsub.f32 %v48, %v271
    %273 = vmatpush1.msra.mxu0 %v272
    %274 = vmatprep.subr.mxu0 0.0
    %v275 = vand.u32 %v47, 4294901760
    %v276 = vsub.f32 %v47, %v275
    %277 = vmatpush1.msra.mxu0 %v276
    %278 = vmatprep.subr.mxu0 0.0
    %279 = vmatpush2.msra.mxu0 0.0
    %280 = vmatprep.subr.mxu0 0.0
    %281 = vmatpush2.msra.mxu0 0.0
    %282 = vmatprep.subr.mxu0 0.0
    %283 = vmatpush2.msra.mxu0 0.0
    %284 = vmatprep.subr.mxu0 0.0
    %285 = vmatpush2.msra.mxu0 0.0
    %286 = vmatprep.subr.mxu0 0.0
    %287 = vmatpush2.msra.mxu0 0.0
    %288 = vmatprep.subr.mxu0 0.0
    %289 = vmatpush2.msra.mxu0 0.0
    %290 = vmatprep.subr.mxu0 0.0
    %291 = vmatpush2.msra.mxu0 0.0
    %292 = vmatprep.subr.mxu0 0.0
    %293 = vmatpush2.msra.mxu0 0.0
    %294 = vmatprep.subr.mxu0 0.0
    %295 = vmatpush2.msra.mxu0 0.0
    %296 = vmatprep.subr.mxu0 0.0
    %297 = vmatpush2.msra.mxu0 0.0
    %298 = vmatprep.subr.mxu0 0.0
    %299 = vmatpush2.msra.mxu0 0.0
    %300 = vmatprep.subr.mxu0 0.0
    %301 = vmatpush2.msra.mxu0 0.0
    %302 = vmatprep.subr.mxu0 0.0
    %303 = vmatpush2.msra.mxu0 0.0
    %304 = vmatprep.subr.mxu0 0.0
    %305 = vmatpush2.msra.mxu0 0.0
    %306 = vmatprep.subr.mxu0 0.0
    %307 = vmatpush2.msra.mxu0 0.0
    %308 = vmatprep.subr.mxu0 0.0
    %309 = vmatpush2.msra.mxu0 0.0
    %310 = vmatprep.mubr.f32.mxu0 0.0
    %v311 = vand.u32 %v54, 4294901760
    %v312 = vsub.f32 %v54, %v311
    %313 = vmatmul.mubr.f32.gmra.mxu0 %v312
    %v314 = vpop.f32.mrf.mxu0
    %v315 = vadd.f32 %v233, %v314
    %v316 = vpop.f32.mrf.mxu0
    %317 = vdwg.mxu0
    %318 = vmatprep.subr.mxu0 0.0
    %319 = vmatpush1.msra.mxu0 0.0
    %320 = vmatprep.subr.mxu0 0.0
    %321 = vmatpush1.msra.mxu0 0.0
    %322 = vmatprep.subr.mxu0 0.0
    %323 = vmatpush1.msra.mxu0 0.0
    %324 = vmatprep.subr.mxu0 0.0
    %325 = vmatpush1.msra.mxu0 0.0
    %326 = vmatprep.subr.mxu0 0.0
    %327 = vmatpush1.msra.mxu0 0.0
    %328 = vmatprep.subr.mxu0 0.0
    %329 = vmatpush1.msra.mxu0 0.0
    %330 = vmatprep.subr.mxu0 0.0
    %331 = vmatpush1.msra.mxu0 0.0
    %332 = vmatprep.subr.mxu0 0.0
    %333 = vmatpush1.msra.mxu0 0.0
    %334 = vmatprep.subr.mxu0 0.0
    %335 = vmatpush1.msra.mxu0 0.0
    %336 = vmatprep.subr.mxu0 0.0
    %337 = vmatpush1.msra.mxu0 0.0
    %338 = vmatprep.subr.mxu0 0.0
    %339 = vmatpush1.msra.mxu0 0.0
    %340 = vmatprep.subr.mxu0 0.0
    %v341 = vand.u32 %v58, 4294901760
    %342 = vmatpush1.msra.mxu0 %v341
    %343 = vmatprep.subr.mxu0 0.0
    %v344 = vand.u32 %v50, 4294901760
    %345 = vmatpush1.msra.mxu0 %v344
    %346 = vmatprep.subr.mxu0 0.0
    %v347 = vand.u32 %v49, 4294901760
    %348 = vmatpush1.msra.mxu0 %v347
    %349 = vmatprep.subr.mxu0 0.0
    %v350 = vand.u32 %v48, 4294901760
    %351 = vmatpush1.msra.mxu0 %v350
    %352 = vmatprep.subr.mxu0 0.0
    %v353 = vand.u32 %v47, 4294901760
    %354 = vmatpush1.msra.mxu0 %v353
    %355 = vmatprep.subr.mxu0 0.0
    %356 = vmatpush2.msra.mxu0 0.0
    %357 = vmatprep.subr.mxu0 0.0
    %358 = vmatpush2.msra.mxu0 0.0
    %359 = vmatprep.subr.mxu0 0.0
    %360 = vmatpush2.msra.mxu0 0.0
    %361 = vmatprep.subr.mxu0 0.0
    %362 = vmatpush2.msra.mxu0 0.0
    %363 = vmatprep.subr.mxu0 0.0
    %364 = vmatpush2.msra.mxu0 0.0
    %365 = vmatprep.subr.mxu0 0.0
    %366 = vmatpush2.msra.mxu0 0.0
    %367 = vmatprep.subr.mxu0 0.0
    %368 = vmatpush2.msra.mxu0 0.0
    %369 = vmatprep.subr.mxu0 0.0
    %370 = vmatpush2.msra.mxu0 0.0
    %371 = vmatprep.subr.mxu0 0.0
    %372 = vmatpush2.msra.mxu0 0.0
    %373 = vmatprep.subr.mxu0 0.0
    %374 = vmatpush2.msra.mxu0 0.0
    %375 = vmatprep.subr.mxu0 0.0
    %376 = vmatpush2.msra.mxu0 0.0
    %377 = vmatprep.subr.mxu0 0.0
    %378 = vmatpush2.msra.mxu0 0.0
    %379 = vmatprep.subr.mxu0 0.0
    %380 = vmatpush2.msra.mxu0 0.0
    %381 = vmatprep.subr.mxu0 0.0
    %382 = vmatpush2.msra.mxu0 0.0
    %383 = vmatprep.subr.mxu0 0.0
    %384 = vmatpush2.msra.mxu0 0.0
    %385 = vmatprep.subr.mxu0 0.0
    %386 = vmatpush2.msra.mxu0 0.0
    %387 = vmatprep.mubr.f32.mxu0 0.0
    %v388 = vand.u32 %v54, 4294901760
    %v389 = vsub.f32 %v54, %v388
    %v390 = vand.u32 %v389, 4294901760
    %391 = vmatmul.mubr.f32.gmra.mxu0 %v390
    %v392 = vpop.f32.mrf.mxu0
    %v393 = vadd.f32 %v315, %v392
    %v394 = vpop.f32.mrf.mxu0
    %395 = vdwg.mxu0
    %396 = vmatprep.subr.mxu0 0.0
    %397 = vmatpush1.msra.mxu0 0.0
    %398 = vmatprep.subr.mxu0 0.0
    %399 = vmatpush1.msra.mxu0 0.0
    %400 = vmatprep.subr.mxu0 0.0
    %401 = vmatpush1.msra.mxu0 0.0
    %402 = vmatprep.subr.mxu0 0.0
    %403 = vmatpush1.msra.mxu0 0.0
    %404 = vmatprep.subr.mxu0 0.0
    %405 = vmatpush1.msra.mxu0 0.0
    %406 = vmatprep.subr.mxu0 0.0
    %407 = vmatpush1.msra.mxu0 0.0
    %408 = vmatprep.subr.mxu0 0.0
    %409 = vmatpush1.msra.mxu0 0.0
    %410 = vmatprep.subr.mxu0 0.0
    %411 = vmatpush1.msra.mxu0 0.0
    %412 = vmatprep.subr.mxu0 0.0
    %413 = vmatpush1.msra.mxu0 0.0
    %414 = vmatprep.subr.mxu0 0.0
    %415 = vmatpush1.msra.mxu0 0.0
    %416 = vmatprep.subr.mxu0 0.0
    %417 = vmatpush1.msra.mxu0 0.0
    %418 = vmatprep.subr.mxu0 0.0
    %v419 = vand.u32 %v58, 4294901760
    %v420 = vsub.f32 %v58, %v419
    %v421 = vand.u32 %v420, 4294901760
    %422 = vmatpush1.msra.mxu0 %v421
    %423 = vmatprep.subr.mxu0 0.0
    %v424 = vand.u32 %v50, 4294901760
    %v425 = vsub.f32 %v50, %v424
    %v426 = vand.u32 %v425, 4294901760
    %427 = vmatpush1.msra.mxu0 %v426
    %428 = vmatprep.subr.mxu0 0.0
    %v429 = vand.u32 %v49, 4294901760
    %v430 = vsub.f32 %v49, %v429
    %v431 = vand.u32 %v430, 4294901760
    %432 = vmatpush1.msra.mxu0 %v431
    %433 = vmatprep.subr.mxu0 0.0
    %v434 = vand.u32 %v48, 4294901760
    %v435 = vsub.f32 %v48, %v434
    %v436 = vand.u32 %v435, 4294901760
    %437 = vmatpush1.msra.mxu0 %v436
    %438 = vmatprep.subr.mxu0 0.0
    %v439 = vand.u32 %v47, 4294901760
    %v440 = vsub.f32 %v47, %v439
    %v441 = vand.u32 %v440, 4294901760
    %442 = vmatpush1.msra.mxu0 %v441
    %443 = vmatprep.subr.mxu0 0.0
    %444 = vmatpush2.msra.mxu0 0.0
    %445 = vmatprep.subr.mxu0 0.0
    %446 = vmatpush2.msra.mxu0 0.0
    %447 = vmatprep.subr.mxu0 0.0
    %448 = vmatpush2.msra.mxu0 0.0
    %449 = vmatprep.subr.mxu0 0.0
    %450 = vmatpush2.msra.mxu0 0.0
    %451 = vmatprep.subr.mxu0 0.0
    %452 = vmatpush2.msra.mxu0 0.0
    %453 = vmatprep.subr.mxu0 0.0
    %454 = vmatpush2.msra.mxu0 0.0
    %455 = vmatprep.subr.mxu0 0.0
    %456 = vmatpush2.msra.mxu0 0.0
    %457 = vmatprep.subr.mxu0 0.0
    %458 = vmatpush2.msra.mxu0 0.0
    %459 = vmatprep.subr.mxu0 0.0
    %460 = vmatpush2.msra.mxu0 0.0
    %461 = vmatprep.subr.mxu0 0.0
    %462 = vmatpush2.msra.mxu0 0.0
    %463 = vmatprep.subr.mxu0 0.0
    %464 = vmatpush2.msra.mxu0 0.0
    %465 = vmatprep.subr.mxu0 0.0
    %466 = vmatpush2.msra.mxu0 0.0
    %467 = vmatprep.subr.mxu0 0.0
    %468 = vmatpush2.msra.mxu0 0.0
    %469 = vmatprep.subr.mxu0 0.0
    %470 = vmatpush2.msra.mxu0 0.0
    %471 = vmatprep.subr.mxu0 0.0
    %472 = vmatpush2.msra.mxu0 0.0
    %473 = vmatprep.subr.mxu0 0.0
    %474 = vmatpush2.msra.mxu0 0.0
    %475 = vmatprep.mubr.f32.mxu0 0.0
    %v476 = vand.u32 %v54, 4294901760
    %477 = vmatmul.mubr.f32.gmra.mxu0 %v476
    %v478 = vpop.f32.mrf.mxu0
    %v479 = vadd.f32 %v393, %v478
    %v480 = vpop.f32.mrf.mxu0
    %481 = vdwg.mxu0
    %482 = vmatprep.subr.mxu0 0.0
    %483 = vmatpush1.msra.mxu0 0.0
    %484 = vmatprep.subr.mxu0 0.0
    %485 = vmatpush1.msra.mxu0 0.0
    %486 = vmatprep.subr.mxu0 0.0
    %487 = vmatpush1.msra.mxu0 0.0
    %488 = vmatprep.subr.mxu0 0.0
    %489 = vmatpush1.msra.mxu0 0.0
    %490 = vmatprep.subr.mxu0 0.0
    %491 = vmatpush1.msra.mxu0 0.0
    %492 = vmatprep.subr.mxu0 0.0
    %493 = vmatpush1.msra.mxu0 0.0
    %494 = vmatprep.subr.mxu0 0.0
    %495 = vmatpush1.msra.mxu0 0.0
    %496 = vmatprep.subr.mxu0 0.0
    %497 = vmatpush1.msra.mxu0 0.0
    %498 = vmatprep.subr.mxu0 0.0
    %499 = vmatpush1.msra.mxu0 0.0
    %500 = vmatprep.subr.mxu0 0.0
    %501 = vmatpush1.msra.mxu0 0.0
    %502 = vmatprep.subr.mxu0 0.0
    %503 = vmatpush1.msra.mxu0 0.0
    %504 = vmatprep.subr.mxu0 0.0
    %v505 = vand.u32 %v58, 4294901760
    %506 = vmatpush1.msra.mxu0 %v505
    %507 = vmatprep.subr.mxu0 0.0
    %v508 = vand.u32 %v50, 4294901760
    %509 = vmatpush1.msra.mxu0 %v508
    %510 = vmatprep.subr.mxu0 0.0
    %v511 = vand.u32 %v49, 4294901760
    %512 = vmatpush1.msra.mxu0 %v511
    %513 = vmatprep.subr.mxu0 0.0
    %v514 = vand.u32 %v48, 4294901760
    %515 = vmatpush1.msra.mxu0 %v514
    %516 = vmatprep.subr.mxu0 0.0
    %v517 = vand.u32 %v47, 4294901760
    %518 = vmatpush1.msra.mxu0 %v517
    %519 = vmatprep.subr.mxu0 0.0
    %520 = vmatpush2.msra.mxu0 0.0
    %521 = vmatprep.subr.mxu0 0.0
    %522 = vmatpush2.msra.mxu0 0.0
    %523 = vmatprep.subr.mxu0 0.0
    %524 = vmatpush2.msra.mxu0 0.0
    %525 = vmatprep.subr.mxu0 0.0
    %526 = vmatpush2.msra.mxu0 0.0
    %527 = vmatprep.subr.mxu0 0.0
    %528 = vmatpush2.msra.mxu0 0.0
    %529 = vmatprep.subr.mxu0 0.0
    %530 = vmatpush2.msra.mxu0 0.0
    %531 = vmatprep.subr.mxu0 0.0
    %532 = vmatpush2.msra.mxu0 0.0
    %533 = vmatprep.subr.mxu0 0.0
    %534 = vmatpush2.msra.mxu0 0.0
    %535 = vmatprep.subr.mxu0 0.0
    %536 = vmatpush2.msra.mxu0 0.0
    %537 = vmatprep.subr.mxu0 0.0
    %538 = vmatpush2.msra.mxu0 0.0
    %539 = vmatprep.subr.mxu0 0.0
    %540 = vmatpush2.msra.mxu0 0.0
    %541 = vmatprep.subr.mxu0 0.0
    %542 = vmatpush2.msra.mxu0 0.0
    %543 = vmatprep.subr.mxu0 0.0
    %544 = vmatpush2.msra.mxu0 0.0
    %545 = vmatprep.subr.mxu0 0.0
    %546 = vmatpush2.msra.mxu0 0.0
    %547 = vmatprep.subr.mxu0 0.0
    %548 = vmatpush2.msra.mxu0 0.0
    %549 = vmatprep.subr.mxu0 0.0
    %550 = vmatpush2.msra.mxu0 0.0
    %551 = vmatprep.mubr.f32.mxu0 0.0
    %v552 = vand.u32 %v54, 4294901760
    %553 = vmatmul.mubr.f32.gmra.mxu0 %v552
    %v554 = vpop.f32.mrf.mxu0
    %v555 = vadd.f32 %v479, %v554
    %v556 = vpop.f32.mrf.mxu0
    %557 = vdwg.mxu0
    %v558 = vld [vmem:[%s4] sm:$0xff]
    %v559 = vld [vmem:[%s4 + $0x8] sm:$0xff]
    %v560 = vld [vmem:[%s4 + $0x10] sm:$0xff]
    %v561 = vld [vmem:[%s4 + $0x18] sm:$0xff]
    %v562 = vld [vmem:[%s4 + $0x20] sm:$0xff]
    %v563 = vld [vmem:[%s4 + $0x28] sm:$0xff]
    %v564 = vld [vmem:[%s4 + $0x30] sm:$0xff]
    %v565 = vld [vmem:[%s4 + $0x38] sm:$0xff]
    %v566 = vld [vmem:[%s4 + $0x40] sm:$0xff]
    %v567 = vld [vmem:[%s4 + $0x48] sm:$0xff]
    %v568 = vld [vmem:[%s4 + $0x50] sm:$0xff]
    %v569 = vld [vmem:[%s4 + $0x58] sm:$0xff]
    %v570 = vld [vmem:[%s4 + $0x60] sm:$0x1f]
    %v571 = vld [vmem:[%s4 + $0x68] sm:$0x1f]
    %v572 = vld [vmem:[%s4 + $0x70] sm:$0x1f]
    %v574 = vsel %vm56, %v570, 0
    %v577 = vsel %vm56, %v571, 0
    %v580 = vsel %vm56, %v572, 0
    %582 = vmatprep.subr.mxu0 0.0
    %583 = vmatpush1.msra.mxu0 0.0
    %584 = vmatprep.subr.mxu0 0.0
    %585 = vmatpush1.msra.mxu0 0.0
    %586 = vmatprep.subr.mxu0 0.0
    %587 = vmatpush1.msra.mxu0 0.0
    %588 = vmatprep.subr.mxu0 0.0
    %589 = vmatpush1.msra.mxu0 0.0
    %590 = vmatprep.subr.mxu0 0.0
    %591 = vmatpush1.msra.mxu0 0.0
    %592 = vmatprep.subr.mxu0 0.0
    %593 = vmatpush1.msra.mxu0 0.0
    %594 = vmatprep.subr.mxu0 0.0
    %595 = vmatpush1.msra.mxu0 0.0
    %596 = vmatprep.subr.mxu0 0.0
    %597 = vmatpush1.msra.mxu0 0.0
    %598 = vmatprep.subr.mxu0 0.0
    %599 = vmatpush1.msra.mxu0 0.0
    %600 = vmatprep.subr.mxu0 0.0
    %601 = vmatpush1.msra.mxu0 0.0
    %602 = vmatprep.subr.mxu0 0.0
    %603 = vmatpush1.msra.mxu0 0.0
    %v604 = vand.u32 %v577, 4294901760
    %605 = vmatprep.subr.mxu0 %v604
    %v606 = vand.u32 %v574, 4294901760
    %607 = vmatpush1.msra.mxu0 %v606
    %v608 = vand.u32 %v568, 4294901760
    %609 = vmatprep.subr.mxu0 %v608
    %v610 = vand.u32 %v567, 4294901760
    %611 = vmatpush1.msra.mxu0 %v610
    %v612 = vand.u32 %v565, 4294901760
    %613 = vmatprep.subr.mxu0 %v612
    %v614 = vand.u32 %v564, 4294901760
    %615 = vmatpush1.msra.mxu0 %v614
    %v616 = vand.u32 %v562, 4294901760
    %617 = vmatprep.subr.mxu0 %v616
    %v618 = vand.u32 %v561, 4294901760
    %619 = vmatpush1.msra.mxu0 %v618
    %v620 = vand.u32 %v559, 4294901760
    %621 = vmatprep.subr.mxu0 %v620
    %v622 = vand.u32 %v558, 4294901760
    %623 = vmatpush1.msra.mxu0 %v622
    %624 = vmatprep.subr.mxu0 0.0
    %625 = vmatpush2.msra.mxu0 0.0
    %626 = vmatprep.subr.mxu0 0.0
    %627 = vmatpush2.msra.mxu0 0.0
    %628 = vmatprep.subr.mxu0 0.0
    %629 = vmatpush2.msra.mxu0 0.0
    %630 = vmatprep.subr.mxu0 0.0
    %631 = vmatpush2.msra.mxu0 0.0
    %632 = vmatprep.subr.mxu0 0.0
    %633 = vmatpush2.msra.mxu0 0.0
    %634 = vmatprep.subr.mxu0 0.0
    %635 = vmatpush2.msra.mxu0 0.0
    %636 = vmatprep.subr.mxu0 0.0
    %637 = vmatpush2.msra.mxu0 0.0
    %638 = vmatprep.subr.mxu0 0.0
    %639 = vmatpush2.msra.mxu0 0.0
    %640 = vmatprep.subr.mxu0 0.0
    %641 = vmatpush2.msra.mxu0 0.0
    %642 = vmatprep.subr.mxu0 0.0
    %643 = vmatpush2.msra.mxu0 0.0
    %644 = vmatprep.subr.mxu0 0.0
    %645 = vmatpush2.msra.mxu0 0.0
    %646 = vmatprep.subr.mxu0 0.0
    %647 = vmatpush2.msra.mxu0 0.0
    %648 = vmatprep.subr.mxu0 0.0
    %649 = vmatpush2.msra.mxu0 0.0
    %650 = vmatprep.subr.mxu0 0.0
    %651 = vmatpush2.msra.mxu0 0.0
    %652 = vmatprep.subr.mxu0 0.0
    %653 = vmatpush2.msra.mxu0 0.0
    %654 = vmatprep.subr.mxu0 0.0
    %655 = vmatpush2.msra.mxu0 0.0
    %656 = vmatprep.mubr.f32.mxu0 0.0
    %v657 = vand.u32 %v54, 4294901760
    %v658 = vsub.f32 %v54, %v657
    %v659 = vand.u32 %v658, 4294901760
    %v660 = vsub.f32 %v658, %v659
    %v661 = vand.u32 %v660, 4294901760
    %662 = vmatmul.mubr.f32.gmra.mxu0 %v661
    %v663 = vpop.f32.mrf.mxu0
    %v664 = vadd.f32 0.0, %v663
    %v665 = vpop.f32.mrf.mxu0
    %v666 = vadd.f32 0.0, %v665
    %667 = vdwg.mxu0
    %668 = vmatprep.subr.mxu0 0.0
    %669 = vmatpush1.msra.mxu0 0.0
    %670 = vmatprep.subr.mxu0 0.0
    %671 = vmatpush1.msra.mxu0 0.0
    %672 = vmatprep.subr.mxu0 0.0
    %673 = vmatpush1.msra.mxu0 0.0
    %674 = vmatprep.subr.mxu0 0.0
    %675 = vmatpush1.msra.mxu0 0.0
    %676 = vmatprep.subr.mxu0 0.0
    %677 = vmatpush1.msra.mxu0 0.0
    %678 = vmatprep.subr.mxu0 0.0
    %679 = vmatpush1.msra.mxu0 0.0
    %680 = vmatprep.subr.mxu0 0.0
    %681 = vmatpush1.msra.mxu0 0.0
    %682 = vmatprep.subr.mxu0 0.0
    %683 = vmatpush1.msra.mxu0 0.0
    %684 = vmatprep.subr.mxu0 0.0
    %685 = vmatpush1.msra.mxu0 0.0
    %686 = vmatprep.subr.mxu0 0.0
    %687 = vmatpush1.msra.mxu0 0.0
    %688 = vmatprep.subr.mxu0 0.0
    %689 = vmatpush1.msra.mxu0 0.0
    %v690 = vand.u32 %v577, 4294901760
    %v691 = vsub.f32 %v577, %v690
    %v692 = vand.u32 %v691, 4294901760
    %v693 = vsub.f32 %v691, %v692
    %v694 = vand.u32 %v693, 4294901760
    %695 = vmatprep.subr.mxu0 %v694
    %v696 = vand.u32 %v574, 4294901760
    %v697 = vsub.f32 %v574, %v696
    %v698 = vand.u32 %v697, 4294901760
    %v699 = vsub.f32 %v697, %v698
    %v700 = vand.u32 %v699, 4294901760
    %701 = vmatpush1.msra.mxu0 %v700
    %v702 = vand.u32 %v568, 4294901760
    %v703 = vsub.f32 %v568, %v702
    %v704 = vand.u32 %v703, 4294901760
    %v705 = vsub.f32 %v703, %v704
    %v706 = vand.u32 %v705, 4294901760
    %707 = vmatprep.subr.mxu0 %v706
    %v708 = vand.u32 %v567, 4294901760
    %v709 = vsub.f32 %v567, %v708
    %v710 = vand.u32 %v709, 4294901760
    %v711 = vsub.f32 %v709, %v710
    %v712 = vand.u32 %v711, 4294901760
    %713 = vmatpush1.msra.mxu0 %v712
    %v714 = vand.u32 %v565, 4294901760
    %v715 = vsub.f32 %v565, %v714
    %v716 = vand.u32 %v715, 4294901760
    %v717 = vsub.f32 %v715, %v716
    %v718 = vand.u32 %v717, 4294901760
    %719 = vmatprep.subr.mxu0 %v718
    %v720 = vand.u32 %v564, 4294901760
    %v721 = vsub.f32 %v564, %v720
    %v722 = vand.u32 %v721, 4294901760
    %v723 = vsub.f32 %v721, %v722
    %v724 = vand.u32 %v723, 4294901760
    %725 = vmatpush1.msra.mxu0 %v724
    %v726 = vand.u32 %v562, 4294901760
    %v727 = vsub.f32 %v562, %v726
    %v728 = vand.u32 %v727, 4294901760
    %v729 = vsub.f32 %v727, %v728
    %v730 = vand.u32 %v729, 4294901760
    %731 = vmatprep.subr.mxu0 %v730
    %v732 = vand.u32 %v561, 4294901760
    %v733 = vsub.f32 %v561, %v732
    %v734 = vand.u32 %v733, 4294901760
    %v735 = vsub.f32 %v733, %v734
    %v736 = vand.u32 %v735, 4294901760
    %737 = vmatpush1.msra.mxu0 %v736
    %v738 = vand.u32 %v559, 4294901760
    %v739 = vsub.f32 %v559, %v738
    %v740 = vand.u32 %v739, 4294901760
    %v741 = vsub.f32 %v739, %v740
    %v742 = vand.u32 %v741, 4294901760
    %743 = vmatprep.subr.mxu0 %v742
    %v744 = vand.u32 %v558, 4294901760
    %v745 = vsub.f32 %v558, %v744
    %v746 = vand.u32 %v745, 4294901760
    %v747 = vsub.f32 %v745, %v746
    %v748 = vand.u32 %v747, 4294901760
    %749 = vmatpush1.msra.mxu0 %v748
    %750 = vmatprep.subr.mxu0 0.0
    %751 = vmatpush2.msra.mxu0 0.0
    %752 = vmatprep.subr.mxu0 0.0
    %753 = vmatpush2.msra.mxu0 0.0
    %754 = vmatprep.subr.mxu0 0.0
    %755 = vmatpush2.msra.mxu0 0.0
    %756 = vmatprep.subr.mxu0 0.0
    %757 = vmatpush2.msra.mxu0 0.0
    %758 = vmatprep.subr.mxu0 0.0
    %759 = vmatpush2.msra.mxu0 0.0
    %760 = vmatprep.subr.mxu0 0.0
    %761 = vmatpush2.msra.mxu0 0.0
    %762 = vmatprep.subr.mxu0 0.0
    %763 = vmatpush2.msra.mxu0 0.0
    %764 = vmatprep.subr.mxu0 0.0
    %765 = vmatpush2.msra.mxu0 0.0
    %766 = vmatprep.subr.mxu0 0.0
    %767 = vmatpush2.msra.mxu0 0.0
    %768 = vmatprep.subr.mxu0 0.0
    %769 = vmatpush2.msra.mxu0 0.0
    %770 = vmatprep.subr.mxu0 0.0
    %771 = vmatpush2.msra.mxu0 0.0
    %772 = vmatprep.subr.mxu0 0.0
    %773 = vmatpush2.msra.mxu0 0.0
    %774 = vmatprep.subr.mxu0 0.0
    %775 = vmatpush2.msra.mxu0 0.0
    %776 = vmatprep.subr.mxu0 0.0
    %777 = vmatpush2.msra.mxu0 0.0
    %778 = vmatprep.subr.mxu0 0.0
    %779 = vmatpush2.msra.mxu0 0.0
    %780 = vmatprep.subr.mxu0 0.0
    %781 = vmatpush2.msra.mxu0 0.0
    %782 = vmatprep.mubr.f32.mxu0 0.0
    %v783 = vand.u32 %v54, 4294901760
    %784 = vmatmul.mubr.f32.gmra.mxu0 %v783
    %v785 = vpop.f32.mrf.mxu0
    %v786 = vadd.f32 %v664, %v785
    %v787 = vpop.f32.mrf.mxu0
    %v788 = vadd.f32 %v666, %v787
    %789 = vdwg.mxu0
    %790 = vmatprep.subr.mxu0 0.0
    %791 = vmatpush1.msra.mxu0 0.0
    %792 = vmatprep.subr.mxu0 0.0
    %793 = vmatpush1.msra.mxu0 0.0
    %794 = vmatprep.subr.mxu0 0.0
    %795 = vmatpush1.msra.mxu0 0.0
    %796 = vmatprep.subr.mxu0 0.0
    %797 = vmatpush1.msra.mxu0 0.0
    %798 = vmatprep.subr.mxu0 0.0
    %799 = vmatpush1.msra.mxu0 0.0
    %800 = vmatprep.subr.mxu0 0.0
    %801 = vmatpush1.msra.mxu0 0.0
    %802 = vmatprep.subr.mxu0 0.0
    %803 = vmatpush1.msra.mxu0 0.0
    %804 = vmatprep.subr.mxu0 0.0
    %805 = vmatpush1.msra.mxu0 0.0
    %806 = vmatprep.subr.mxu0 0.0
    %807 = vmatpush1.msra.mxu0 0.0
    %808 = vmatprep.subr.mxu0 0.0
    %809 = vmatpush1.msra.mxu0 0.0
    %810 = vmatprep.subr.mxu0 0.0
    %811 = vmatpush1.msra.mxu0 0.0
    %v812 = vand.u32 %v577, 4294901760
    %v813 = vsub.f32 %v577, %v812
    %814 = vmatprep.subr.mxu0 %v813
    %v815 = vand.u32 %v574, 4294901760
    %v816 = vsub.f32 %v574, %v815
    %817 = vmatpush1.msra.mxu0 %v816
    %v818 = vand.u32 %v568, 4294901760
    %v819 = vsub.f32 %v568, %v818
    %820 = vmatprep.subr.mxu0 %v819
    %v821 = vand.u32 %v567, 4294901760
    %v822 = vsub.f32 %v567, %v821
    %823 = vmatpush1.msra.mxu0 %v822
    %v824 = vand.u32 %v565, 4294901760
    %v825 = vsub.f32 %v565, %v824
    %826 = vmatprep.subr.mxu0 %v825
    %v827 = vand.u32 %v564, 4294901760
    %v828 = vsub.f32 %v564, %v827
    %829 = vmatpush1.msra.mxu0 %v828
    %v830 = vand.u32 %v562, 4294901760
    %v831 = vsub.f32 %v562, %v830
    %832 = vmatprep.subr.mxu0 %v831
    %v833 = vand.u32 %v561, 4294901760
    %v834 = vsub.f32 %v561, %v833
    %835 = vmatpush1.msra.mxu0 %v834
    %v836 = vand.u32 %v559, 4294901760
    %v837 = vsub.f32 %v559, %v836
    %838 = vmatprep.subr.mxu0 %v837
    %v839 = vand.u32 %v558, 4294901760
    %v840 = vsub.f32 %v558, %v839
    %841 = vmatpush1.msra.mxu0 %v840
    %842 = vmatprep.subr.mxu0 0.0
    %843 = vmatpush2.msra.mxu0 0.0
    %844 = vmatprep.subr.mxu0 0.0
    %845 = vmatpush2.msra.mxu0 0.0
    %846 = vmatprep.subr.mxu0 0.0
    %847 = vmatpush2.msra.mxu0 0.0
    %848 = vmatprep.subr.mxu0 0.0
    %849 = vmatpush2.msra.mxu0 0.0
    %850 = vmatprep.subr.mxu0 0.0
    %851 = vmatpush2.msra.mxu0 0.0
    %852 = vmatprep.subr.mxu0 0.0
    %853 = vmatpush2.msra.mxu0 0.0
    %854 = vmatprep.subr.mxu0 0.0
    %855 = vmatpush2.msra.mxu0 0.0
    %856 = vmatprep.subr.mxu0 0.0
    %857 = vmatpush2.msra.mxu0 0.0
    %858 = vmatprep.subr.mxu0 0.0
    %859 = vmatpush2.msra.mxu0 0.0
    %860 = vmatprep.subr.mxu0 0.0
    %861 = vmatpush2.msra.mxu0 0.0
    %862 = vmatprep.subr.mxu0 0.0
    %863 = vmatpush2.msra.mxu0 0.0
    %864 = vmatprep.subr.mxu0 0.0
    %865 = vmatpush2.msra.mxu0 0.0
    %866 = vmatprep.subr.mxu0 0.0
    %867 = vmatpush2.msra.mxu0 0.0
    %868 = vmatprep.subr.mxu0 0.0
    %869 = vmatpush2.msra.mxu0 0.0
    %870 = vmatprep.subr.mxu0 0.0
    %871 = vmatpush2.msra.mxu0 0.0
    %872 = vmatprep.subr.mxu0 0.0
    %873 = vmatpush2.msra.mxu0 0.0
    %874 = vmatprep.mubr.f32.mxu0 0.0
    %v875 = vand.u32 %v54, 4294901760
    %v876 = vsub.f32 %v54, %v875
    %877 = vmatmul.mubr.f32.gmra.mxu0 %v876
    %v878 = vpop.f32.mrf.mxu0
    %v879 = vadd.f32 %v786, %v878
    %v880 = vpop.f32.mrf.mxu0
    %v881 = vadd.f32 %v788, %v880
    %882 = vdwg.mxu0
    %883 = vmatprep.subr.mxu0 0.0
    %884 = vmatpush1.msra.mxu0 0.0
    %885 = vmatprep.subr.mxu0 0.0
    %886 = vmatpush1.msra.mxu0 0.0
    %887 = vmatprep.subr.mxu0 0.0
    %888 = vmatpush1.msra.mxu0 0.0
    %889 = vmatprep.subr.mxu0 0.0
    %890 = vmatpush1.msra.mxu0 0.0
    %891 = vmatprep.subr.mxu0 0.0
    %892 = vmatpush1.msra.mxu0 0.0
    %893 = vmatprep.subr.mxu0 0.0
    %894 = vmatpush1.msra.mxu0 0.0
    %895 = vmatprep.subr.mxu0 0.0
    %896 = vmatpush1.msra.mxu0 0.0
    %897 = vmatprep.subr.mxu0 0.0
    %898 = vmatpush1.msra.mxu0 0.0
    %899 = vmatprep.subr.mxu0 0.0
    %900 = vmatpush1.msra.mxu0 0.0
    %901 = vmatprep.subr.mxu0 0.0
    %902 = vmatpush1.msra.mxu0 0.0
    %903 = vmatprep.subr.mxu0 0.0
    %904 = vmatpush1.msra.mxu0 0.0
    %v905 = vand.u32 %v577, 4294901760
    %906 = vmatprep.subr.mxu0 %v905
    %v907 = vand.u32 %v574, 4294901760
    %908 = vmatpush1.msra.mxu0 %v907
    %v909 = vand.u32 %v568, 4294901760
    %910 = vmatprep.subr.mxu0 %v909
    %v911 = vand.u32 %v567, 4294901760
    %912 = vmatpush1.msra.mxu0 %v911
    %v913 = vand.u32 %v565, 4294901760
    %914 = vmatprep.subr.mxu0 %v913
    %v915 = vand.u32 %v564, 4294901760
    %916 = vmatpush1.msra.mxu0 %v915
    %v917 = vand.u32 %v562, 4294901760
    %918 = vmatprep.subr.mxu0 %v917
    %v919 = vand.u32 %v561, 4294901760
    %920 = vmatpush1.msra.mxu0 %v919
    %v921 = vand.u32 %v559, 4294901760
    %922 = vmatprep.subr.mxu0 %v921
    %v923 = vand.u32 %v558, 4294901760
    %924 = vmatpush1.msra.mxu0 %v923
    %925 = vmatprep.subr.mxu0 0.0
    %926 = vmatpush2.msra.mxu0 0.0
    %927 = vmatprep.subr.mxu0 0.0
    %928 = vmatpush2.msra.mxu0 0.0
    %929 = vmatprep.subr.mxu0 0.0
    %930 = vmatpush2.msra.mxu0 0.0
    %931 = vmatprep.subr.mxu0 0.0
    %932 = vmatpush2.msra.mxu0 0.0
    %933 = vmatprep.subr.mxu0 0.0
    %934 = vmatpush2.msra.mxu0 0.0
    %935 = vmatprep.subr.mxu0 0.0
    %936 = vmatpush2.msra.mxu0 0.0
    %937 = vmatprep.subr.mxu0 0.0
    %938 = vmatpush2.msra.mxu0 0.0
    %939 = vmatprep.subr.mxu0 0.0
    %940 = vmatpush2.msra.mxu0 0.0
    %941 = vmatprep.subr.mxu0 0.0
    %942 = vmatpush2.msra.mxu0 0.0
    %943 = vmatprep.subr.mxu0 0.0
    %944 = vmatpush2.msra.mxu0 0.0
    %945 = vmatprep.subr.mxu0 0.0
    %946 = vmatpush2.msra.mxu0 0.0
    %947 = vmatprep.subr.mxu0 0.0
    %948 = vmatpush2.msra.mxu0 0.0
    %949 = vmatprep.subr.mxu0 0.0
    %950 = vmatpush2.msra.mxu0 0.0
    %951 = vmatprep.subr.mxu0 0.0
    %952 = vmatpush2.msra.mxu0 0.0
    %953 = vmatprep.subr.mxu0 0.0
    %954 = vmatpush2.msra.mxu0 0.0
    %955 = vmatprep.subr.mxu0 0.0
    %956 = vmatpush2.msra.mxu0 0.0
    %957 = vmatprep.mubr.f32.mxu0 0.0
    %v958 = vand.u32 %v54, 4294901760
    %v959 = vsub.f32 %v54, %v958
    %v960 = vand.u32 %v959, 4294901760
    %961 = vmatmul.mubr.f32.gmra.mxu0 %v960
    %v962 = vpop.f32.mrf.mxu0
    %v963 = vadd.f32 %v879, %v962
    %v964 = vpop.f32.mrf.mxu0
    %v965 = vadd.f32 %v881, %v964
    %966 = vdwg.mxu0
    %967 = vmatprep.subr.mxu0 0.0
    %968 = vmatpush1.msra.mxu0 0.0
    %969 = vmatprep.subr.mxu0 0.0
    %970 = vmatpush1.msra.mxu0 0.0
    %971 = vmatprep.subr.mxu0 0.0
    %972 = vmatpush1.msra.mxu0 0.0
    %973 = vmatprep.subr.mxu0 0.0
    %974 = vmatpush1.msra.mxu0 0.0
    %975 = vmatprep.subr.mxu0 0.0
    %976 = vmatpush1.msra.mxu0 0.0
    %977 = vmatprep.subr.mxu0 0.0
    %978 = vmatpush1.msra.mxu0 0.0
    %979 = vmatprep.subr.mxu0 0.0
    %980 = vmatpush1.msra.mxu0 0.0
    %981 = vmatprep.subr.mxu0 0.0
    %982 = vmatpush1.msra.mxu0 0.0
    %983 = vmatprep.subr.mxu0 0.0
    %984 = vmatpush1.msra.mxu0 0.0
    %985 = vmatprep.subr.mxu0 0.0
    %986 = vmatpush1.msra.mxu0 0.0
    %987 = vmatprep.subr.mxu0 0.0
    %988 = vmatpush1.msra.mxu0 0.0
    %v989 = vand.u32 %v577, 4294901760
    %v990 = vsub.f32 %v577, %v989
    %v991 = vand.u32 %v990, 4294901760
    %992 = vmatprep.subr.mxu0 %v991
    %v993 = vand.u32 %v574, 4294901760
    %v994 = vsub.f32 %v574, %v993
    %v995 = vand.u32 %v994, 4294901760
    %996 = vmatpush1.msra.mxu0 %v995
    %v997 = vand.u32 %v568, 4294901760
    %v998 = vsub.f32 %v568, %v997
    %v999 = vand.u32 %v998, 4294901760
    %1000 = vmatprep.subr.mxu0 %v999
    %v1001 = vand.u32 %v567, 4294901760
    %v1002 = vsub.f32 %v567, %v1001
    %v1003 = vand.u32 %v1002, 4294901760
    %1004 = vmatpush1.msra.mxu0 %v1003
    %v1005 = vand.u32 %v565, 4294901760
    %v1006 = vsub.f32 %v565, %v1005
    %v1007 = vand.u32 %v1006, 4294901760
    %1008 = vmatprep.subr.mxu0 %v1007
    %v1009 = vand.u32 %v564, 4294901760
    %v1010 = vsub.f32 %v564, %v1009
    %v1011 = vand.u32 %v1010, 4294901760
    %1012 = vmatpush1.msra.mxu0 %v1011
    %v1013 = vand.u32 %v562, 4294901760
    %v1014 = vsub.f32 %v562, %v1013
    %v1015 = vand.u32 %v1014, 4294901760
    %1016 = vmatprep.subr.mxu0 %v1015
    %v1017 = vand.u32 %v561, 4294901760
    %v1018 = vsub.f32 %v561, %v1017
    %v1019 = vand.u32 %v1018, 4294901760
    %1020 = vmatpush1.msra.mxu0 %v1019
    %v1021 = vand.u32 %v559, 4294901760
    %v1022 = vsub.f32 %v559, %v1021
    %v1023 = vand.u32 %v1022, 4294901760
    %1024 = vmatprep.subr.mxu0 %v1023
    %v1025 = vand.u32 %v558, 4294901760
    %v1026 = vsub.f32 %v558, %v1025
    %v1027 = vand.u32 %v1026, 4294901760
    %1028 = vmatpush1.msra.mxu0 %v1027
    %1029 = vmatprep.subr.mxu0 0.0
    %1030 = vmatpush2.msra.mxu0 0.0
    %1031 = vmatprep.subr.mxu0 0.0
    %1032 = vmatpush2.msra.mxu0 0.0
    %1033 = vmatprep.subr.mxu0 0.0
    %1034 = vmatpush2.msra.mxu0 0.0
    %1035 = vmatprep.subr.mxu0 0.0
    %1036 = vmatpush2.msra.mxu0 0.0
    %1037 = vmatprep.subr.mxu0 0.0
    %1038 = vmatpush2.msra.mxu0 0.0
    %1039 = vmatprep.subr.mxu0 0.0
    %1040 = vmatpush2.msra.mxu0 0.0
    %1041 = vmatprep.subr.mxu0 0.0
    %1042 = vmatpush2.msra.mxu0 0.0
    %1043 = vmatprep.subr.mxu0 0.0
    %1044 = vmatpush2.msra.mxu0 0.0
    %1045 = vmatprep.subr.mxu0 0.0
    %1046 = vmatpush2.msra.mxu0 0.0
    %1047 = vmatprep.subr.mxu0 0.0
    %1048 = vmatpush2.msra.mxu0 0.0
    %1049 = vmatprep.subr.mxu0 0.0
    %1050 = vmatpush2.msra.mxu0 0.0
    %1051 = vmatprep.subr.mxu0 0.0
    %1052 = vmatpush2.msra.mxu0 0.0
    %1053 = vmatprep.subr.mxu0 0.0
    %1054 = vmatpush2.msra.mxu0 0.0
    %1055 = vmatprep.subr.mxu0 0.0
    %1056 = vmatpush2.msra.mxu0 0.0
    %1057 = vmatprep.subr.mxu0 0.0
    %1058 = vmatpush2.msra.mxu0 0.0
    %1059 = vmatprep.subr.mxu0 0.0
    %1060 = vmatpush2.msra.mxu0 0.0
    %1061 = vmatprep.mubr.f32.mxu0 0.0
    %v1062 = vand.u32 %v54, 4294901760
    %1063 = vmatmul.mubr.f32.gmra.mxu0 %v1062
    %v1064 = vpop.f32.mrf.mxu0
    %v1065 = vadd.f32 %v963, %v1064
    %v1066 = vpop.f32.mrf.mxu0
    %v1067 = vadd.f32 %v965, %v1066
    %1068 = vdwg.mxu0
    %1069 = vmatprep.subr.mxu0 0.0
    %1070 = vmatpush1.msra.mxu0 0.0
    %1071 = vmatprep.subr.mxu0 0.0
    %1072 = vmatpush1.msra.mxu0 0.0
    %1073 = vmatprep.subr.mxu0 0.0
    %1074 = vmatpush1.msra.mxu0 0.0
    %1075 = vmatprep.subr.mxu0 0.0
    %1076 = vmatpush1.msra.mxu0 0.0
    %1077 = vmatprep.subr.mxu0 0.0
    %1078 = vmatpush1.msra.mxu0 0.0
    %1079 = vmatprep.subr.mxu0 0.0
    %1080 = vmatpush1.msra.mxu0 0.0
    %1081 = vmatprep.subr.mxu0 0.0
    %1082 = vmatpush1.msra.mxu0 0.0
    %1083 = vmatprep.subr.mxu0 0.0
    %1084 = vmatpush1.msra.mxu0 0.0
    %1085 = vmatprep.subr.mxu0 0.0
    %1086 = vmatpush1.msra.mxu0 0.0
    %1087 = vmatprep.subr.mxu0 0.0
    %1088 = vmatpush1.msra.mxu0 0.0
    %1089 = vmatprep.subr.mxu0 0.0
    %1090 = vmatpush1.msra.mxu0 0.0
    %v1091 = vand.u32 %v577, 4294901760
    %1092 = vmatprep.subr.mxu0 %v1091
    %v1093 = vand.u32 %v574, 4294901760
    %1094 = vmatpush1.msra.mxu0 %v1093
    %v1095 = vand.u32 %v568, 4294901760
    %1096 = vmatprep.subr.mxu0 %v1095
    %v1097 = vand.u32 %v567, 4294901760
    %1098 = vmatpush1.msra.mxu0 %v1097
    %v1099 = vand.u32 %v565, 4294901760
    %1100 = vmatprep.subr.mxu0 %v1099
    %v1101 = vand.u32 %v564, 4294901760
    %1102 = vmatpush1.msra.mxu0 %v1101
    %v1103 = vand.u32 %v562, 4294901760
    %1104 = vmatprep.subr.mxu0 %v1103
    %v1105 = vand.u32 %v561, 4294901760
    %1106 = vmatpush1.msra.mxu0 %v1105
    %v1107 = vand.u32 %v559, 4294901760
    %1108 = vmatprep.subr.mxu0 %v1107
    %v1109 = vand.u32 %v558, 4294901760
    %1110 = vmatpush1.msra.mxu0 %v1109
    %1111 = vmatprep.subr.mxu0 0.0
    %1112 = vmatpush2.msra.mxu0 0.0
    %1113 = vmatprep.subr.mxu0 0.0
    %1114 = vmatpush2.msra.mxu0 0.0
    %1115 = vmatprep.subr.mxu0 0.0
    %1116 = vmatpush2.msra.mxu0 0.0
    %1117 = vmatprep.subr.mxu0 0.0
    %1118 = vmatpush2.msra.mxu0 0.0
    %1119 = vmatprep.subr.mxu0 0.0
    %1120 = vmatpush2.msra.mxu0 0.0
    %1121 = vmatprep.subr.mxu0 0.0
    %1122 = vmatpush2.msra.mxu0 0.0
    %1123 = vmatprep.subr.mxu0 0.0
    %1124 = vmatpush2.msra.mxu0 0.0
    %1125 = vmatprep.subr.mxu0 0.0
    %1126 = vmatpush2.msra.mxu0 0.0
    %1127 = vmatprep.subr.mxu0 0.0
    %1128 = vmatpush2.msra.mxu0 0.0
    %1129 = vmatprep.subr.mxu0 0.0
    %1130 = vmatpush2.msra.mxu0 0.0
    %1131 = vmatprep.subr.mxu0 0.0
    %1132 = vmatpush2.msra.mxu0 0.0
    %1133 = vmatprep.subr.mxu0 0.0
    %1134 = vmatpush2.msra.mxu0 0.0
    %1135 = vmatprep.subr.mxu0 0.0
    %1136 = vmatpush2.msra.mxu0 0.0
    %1137 = vmatprep.subr.mxu0 0.0
    %1138 = vmatpush2.msra.mxu0 0.0
    %1139 = vmatprep.subr.mxu0 0.0
    %1140 = vmatpush2.msra.mxu0 0.0
    %1141 = vmatprep.subr.mxu0 0.0
    %1142 = vmatpush2.msra.mxu0 0.0
    %1143 = vmatprep.mubr.f32.mxu0 0.0
    %v1144 = vand.u32 %v54, 4294901760
    %1145 = vmatmul.mubr.f32.gmra.mxu0 %v1144
    %v1146 = vpop.f32.mrf.mxu0
    %v1147 = vadd.f32 %v1065, %v1146
    %v1148 = vpop.f32.mrf.mxu0
    %v1149 = vadd.f32 %v1067, %v1148
    %1150 = vdwg.mxu0
    %1151 = vmatprep.subr.mxu0 0.0
    %1152 = vmatpush1.msra.mxu0 0.0
    %1153 = vmatprep.subr.mxu0 0.0
    %1154 = vmatpush1.msra.mxu0 0.0
    %1155 = vmatprep.subr.mxu0 0.0
    %1156 = vmatpush1.msra.mxu0 0.0
    %1157 = vmatprep.subr.mxu0 0.0
    %1158 = vmatpush1.msra.mxu0 0.0
    %1159 = vmatprep.subr.mxu0 0.0
    %1160 = vmatpush1.msra.mxu0 0.0
    %1161 = vmatprep.subr.mxu0 0.0
    %1162 = vmatpush1.msra.mxu0 0.0
    %1163 = vmatprep.subr.mxu0 0.0
    %1164 = vmatpush1.msra.mxu0 0.0
    %1165 = vmatprep.subr.mxu0 0.0
    %1166 = vmatpush1.msra.mxu0 0.0
    %1167 = vmatprep.subr.mxu0 0.0
    %1168 = vmatpush1.msra.mxu0 0.0
    %1169 = vmatprep.subr.mxu0 0.0
    %1170 = vmatpush1.msra.mxu0 0.0
    %1171 = vmatprep.subr.mxu0 0.0
    %1172 = vmatpush1.msra.mxu0 0.0
    %1173 = vmatprep.subr.mxu0 0.0
    %v1174 = vand.u32 %v580, 4294901760
    %1175 = vmatpush1.msra.mxu0 %v1174
    %1176 = vmatprep.subr.mxu0 0.0
    %v1177 = vand.u32 %v569, 4294901760
    %1178 = vmatpush1.msra.mxu0 %v1177
    %1179 = vmatprep.subr.mxu0 0.0
    %v1180 = vand.u32 %v566, 4294901760
    %1181 = vmatpush1.msra.mxu0 %v1180
    %1182 = vmatprep.subr.mxu0 0.0
    %v1183 = vand.u32 %v563, 4294901760
    %1184 = vmatpush1.msra.mxu0 %v1183
    %1185 = vmatprep.subr.mxu0 0.0
    %v1186 = vand.u32 %v560, 4294901760
    %1187 = vmatpush1.msra.mxu0 %v1186
    %1188 = vmatprep.subr.mxu0 0.0
    %1189 = vmatpush2.msra.mxu0 0.0
    %1190 = vmatprep.subr.mxu0 0.0
    %1191 = vmatpush2.msra.mxu0 0.0
    %1192 = vmatprep.subr.mxu0 0.0
    %1193 = vmatpush2.msra.mxu0 0.0
    %1194 = vmatprep.subr.mxu0 0.0
    %1195 = vmatpush2.msra.mxu0 0.0
    %1196 = vmatprep.subr.mxu0 0.0
    %1197 = vmatpush2.msra.mxu0 0.0
    %1198 = vmatprep.subr.mxu0 0.0
    %1199 = vmatpush2.msra.mxu0 0.0
    %1200 = vmatprep.subr.mxu0 0.0
    %1201 = vmatpush2.msra.mxu0 0.0
    %1202 = vmatprep.subr.mxu0 0.0
    %1203 = vmatpush2.msra.mxu0 0.0
    %1204 = vmatprep.subr.mxu0 0.0
    %1205 = vmatpush2.msra.mxu0 0.0
    %1206 = vmatprep.subr.mxu0 0.0
    %1207 = vmatpush2.msra.mxu0 0.0
    %1208 = vmatprep.subr.mxu0 0.0
    %1209 = vmatpush2.msra.mxu0 0.0
    %1210 = vmatprep.subr.mxu0 0.0
    %1211 = vmatpush2.msra.mxu0 0.0
    %1212 = vmatprep.subr.mxu0 0.0
    %1213 = vmatpush2.msra.mxu0 0.0
    %1214 = vmatprep.subr.mxu0 0.0
    %1215 = vmatpush2.msra.mxu0 0.0
    %1216 = vmatprep.subr.mxu0 0.0
    %1217 = vmatpush2.msra.mxu0 0.0
    %1218 = vmatprep.subr.mxu0 0.0
    %1219 = vmatpush2.msra.mxu0 0.0
    %1220 = vmatprep.mubr.f32.mxu0 0.0
    %v1221 = vand.u32 %v54, 4294901760
    %v1222 = vsub.f32 %v54, %v1221
    %v1223 = vand.u32 %v1222, 4294901760
    %v1224 = vsub.f32 %v1222, %v1223
    %v1225 = vand.u32 %v1224, 4294901760
    %1226 = vmatmul.mubr.f32.gmra.mxu0 %v1225
    %v1227 = vpop.f32.mrf.mxu0
    %v1228 = vadd.f32 0.0, %v1227
    %v1229 = vpop.f32.mrf.mxu0
    %1230 = vdwg.mxu0
    %1231 = vmatprep.subr.mxu0 0.0
    %1232 = vmatpush1.msra.mxu0 0.0
    %1233 = vmatprep.subr.mxu0 0.0
    %1234 = vmatpush1.msra.mxu0 0.0
    %1235 = vmatprep.subr.mxu0 0.0
    %1236 = vmatpush1.msra.mxu0 0.0
    %1237 = vmatprep.subr.mxu0 0.0
    %1238 = vmatpush1.msra.mxu0 0.0
    %1239 = vmatprep.subr.mxu0 0.0
    %1240 = vmatpush1.msra.mxu0 0.0
    %1241 = vmatprep.subr.mxu0 0.0
    %1242 = vmatpush1.msra.mxu0 0.0
    %1243 = vmatprep.subr.mxu0 0.0
    %1244 = vmatpush1.msra.mxu0 0.0
    %1245 = vmatprep.subr.mxu0 0.0
    %1246 = vmatpush1.msra.mxu0 0.0
    %1247 = vmatprep.subr.mxu0 0.0
    %1248 = vmatpush1.msra.mxu0 0.0
    %1249 = vmatprep.subr.mxu0 0.0
    %1250 = vmatpush1.msra.mxu0 0.0
    %1251 = vmatprep.subr.mxu0 0.0
    %1252 = vmatpush1.msra.mxu0 0.0
    %1253 = vmatprep.subr.mxu0 0.0
    %v1254 = vand.u32 %v580, 4294901760
    %v1255 = vsub.f32 %v580, %v1254
    %v1256 = vand.u32 %v1255, 4294901760
    %v1257 = vsub.f32 %v1255, %v1256
    %v1258 = vand.u32 %v1257, 4294901760
    %1259 = vmatpush1.msra.mxu0 %v1258
    %1260 = vmatprep.subr.mxu0 0.0
    %v1261 = vand.u32 %v569, 4294901760
    %v1262 = vsub.f32 %v569, %v1261
    %v1263 = vand.u32 %v1262, 4294901760
    %v1264 = vsub.f32 %v1262, %v1263
    %v1265 = vand.u32 %v1264, 4294901760
    %1266 = vmatpush1.msra.mxu0 %v1265
    %1267 = vmatprep.subr.mxu0 0.0
    %v1268 = vand.u32 %v566, 4294901760
    %v1269 = vsub.f32 %v566, %v1268
    %v1270 = vand.u32 %v1269, 4294901760
    %v1271 = vsub.f32 %v1269, %v1270
    %v1272 = vand.u32 %v1271, 4294901760
    %1273 = vmatpush1.msra.mxu0 %v1272
    %1274 = vmatprep.subr.mxu0 0.0
    %v1275 = vand.u32 %v563, 4294901760
    %v1276 = vsub.f32 %v563, %v1275
    %v1277 = vand.u32 %v1276, 4294901760
    %v1278 = vsub.f32 %v1276, %v1277
    %v1279 = vand.u32 %v1278, 4294901760
    %1280 = vmatpush1.msra.mxu0 %v1279
    %1281 = vmatprep.subr.mxu0 0.0
    %v1282 = vand.u32 %v560, 4294901760
    %v1283 = vsub.f32 %v560, %v1282
    %v1284 = vand.u32 %v1283, 4294901760
    %v1285 = vsub.f32 %v1283, %v1284
    %v1286 = vand.u32 %v1285, 4294901760
    %1287 = vmatpush1.msra.mxu0 %v1286
    %1288 = vmatprep.subr.mxu0 0.0
    %1289 = vmatpush2.msra.mxu0 0.0
    %1290 = vmatprep.subr.mxu0 0.0
    %1291 = vmatpush2.msra.mxu0 0.0
    %1292 = vmatprep.subr.mxu0 0.0
    %1293 = vmatpush2.msra.mxu0 0.0
    %1294 = vmatprep.subr.mxu0 0.0
    %1295 = vmatpush2.msra.mxu0 0.0
    %1296 = vmatprep.subr.mxu0 0.0
    %1297 = vmatpush2.msra.mxu0 0.0
    %1298 = vmatprep.subr.mxu0 0.0
    %1299 = vmatpush2.msra.mxu0 0.0
    %1300 = vmatprep.subr.mxu0 0.0
    %1301 = vmatpush2.msra.mxu0 0.0
    %1302 = vmatprep.subr.mxu0 0.0
    %1303 = vmatpush2.msra.mxu0 0.0
    %1304 = vmatprep.subr.mxu0 0.0
    %1305 = vmatpush2.msra.mxu0 0.0
    %1306 = vmatprep.subr.mxu0 0.0
    %1307 = vmatpush2.msra.mxu0 0.0
    %1308 = vmatprep.subr.mxu0 0.0
    %1309 = vmatpush2.msra.mxu0 0.0
    %1310 = vmatprep.subr.mxu0 0.0
    %1311 = vmatpush2.msra.mxu0 0.0
    %1312 = vmatprep.subr.mxu0 0.0
    %1313 = vmatpush2.msra.mxu0 0.0
    %1314 = vmatprep.subr.mxu0 0.0
    %1315 = vmatpush2.msra.mxu0 0.0
    %1316 = vmatprep.subr.mxu0 0.0
    %1317 = vmatpush2.msra.mxu0 0.0
    %1318 = vmatprep.subr.mxu0 0.0
    %1319 = vmatpush2.msra.mxu0 0.0
    %1320 = vmatprep.mubr.f32.mxu0 0.0
    %v1321 = vand.u32 %v54, 4294901760
    %1322 = vmatmul.mubr.f32.gmra.mxu0 %v1321
    %v1323 = vpop.f32.mrf.mxu0
    %v1324 = vadd.f32 %v1228, %v1323
    %v1325 = vpop.f32.mrf.mxu0
    %1326 = vdwg.mxu0
    %1327 = vmatprep.subr.mxu0 0.0
    %1328 = vmatpush1.msra.mxu0 0.0
    %1329 = vmatprep.subr.mxu0 0.0
    %1330 = vmatpush1.msra.mxu0 0.0
    %1331 = vmatprep.subr.mxu0 0.0
    %1332 = vmatpush1.msra.mxu0 0.0
    %1333 = vmatprep.subr.mxu0 0.0
    %1334 = vmatpush1.msra.mxu0 0.0
    %1335 = vmatprep.subr.mxu0 0.0
    %1336 = vmatpush1.msra.mxu0 0.0
    %1337 = vmatprep.subr.mxu0 0.0
    %1338 = vmatpush1.msra.mxu0 0.0
    %1339 = vmatprep.subr.mxu0 0.0
    %1340 = vmatpush1.msra.mxu0 0.0
    %1341 = vmatprep.subr.mxu0 0.0
    %1342 = vmatpush1.msra.mxu0 0.0
    %1343 = vmatprep.subr.mxu0 0.0
    %1344 = vmatpush1.msra.mxu0 0.0
    %1345 = vmatprep.subr.mxu0 0.0
    %1346 = vmatpush1.msra.mxu0 0.0
    %1347 = vmatprep.subr.mxu0 0.0
    %1348 = vmatpush1.msra.mxu0 0.0
    %1349 = vmatprep.subr.mxu0 0.0
    %v1350 = vand.u32 %v580, 4294901760
    %v1351 = vsub.f32 %v580, %v1350
    %1352 = vmatpush1.msra.mxu0 %v1351
    %1353 = vmatprep.subr.mxu0 0.0
    %v1354 = vand.u32 %v569, 4294901760
    %v1355 = vsub.f32 %v569, %v1354
    %1356 = vmatpush1.msra.mxu0 %v1355
    %1357 = vmatprep.subr.mxu0 0.0
    %v1358 = vand.u32 %v566, 4294901760
    %v1359 = vsub.f32 %v566, %v1358
    %1360 = vmatpush1.msra.mxu0 %v1359
    %1361 = vmatprep.subr.mxu0 0.0
    %v1362 = vand.u32 %v563, 4294901760
    %v1363 = vsub.f32 %v563, %v1362
    %1364 = vmatpush1.msra.mxu0 %v1363
    %1365 = vmatprep.subr.mxu0 0.0
    %v1366 = vand.u32 %v560, 4294901760
    %v1367 = vsub.f32 %v560, %v1366
    %1368 = vmatpush1.msra.mxu0 %v1367
    %1369 = vmatprep.subr.mxu0 0.0
    %1370 = vmatpush2.msra.mxu0 0.0
    %1371 = vmatprep.subr.mxu0 0.0
    %1372 = vmatpush2.msra.mxu0 0.0
    %1373 = vmatprep.subr.mxu0 0.0
    %1374 = vmatpush2.msra.mxu0 0.0
    %1375 = vmatprep.subr.mxu0 0.0
    %1376 = vmatpush2.msra.mxu0 0.0
    %1377 = vmatprep.subr.mxu0 0.0
    %1378 = vmatpush2.msra.mxu0 0.0
    %1379 = vmatprep.subr.mxu0 0.0
    %1380 = vmatpush2.msra.mxu0 0.0
    %1381 = vmatprep.subr.mxu0 0.0
    %1382 = vmatpush2.msra.mxu0 0.0
    %1383 = vmatprep.subr.mxu0 0.0
    %1384 = vmatpush2.msra.mxu0 0.0
    %1385 = vmatprep.subr.mxu0 0.0
    %1386 = vmatpush2.msra.mxu0 0.0
    %1387 = vmatprep.subr.mxu0 0.0
    %1388 = vmatpush2.msra.mxu0 0.0
    %1389 = vmatprep.subr.mxu0 0.0
    %1390 = vmatpush2.msra.mxu0 0.0
    %1391 = vmatprep.subr.mxu0 0.0
    %1392 = vmatpush2.msra.mxu0 0.0
    %1393 = vmatprep.subr.mxu0 0.0
    %1394 = vmatpush2.msra.mxu0 0.0
    %1395 = vmatprep.subr.mxu0 0.0
    %1396 = vmatpush2.msra.mxu0 0.0
    %1397 = vmatprep.subr.mxu0 0.0
    %1398 = vmatpush2.msra.mxu0 0.0
    %1399 = vmatprep.subr.mxu0 0.0
    %1400 = vmatpush2.msra.mxu0 0.0
    %1401 = vmatprep.mubr.f32.mxu0 0.0
    %v1402 = vand.u32 %v54, 4294901760
    %v1403 = vsub.f32 %v54, %v1402
    %1404 = vmatmul.mubr.f32.gmra.mxu0 %v1403
    %v1405 = vpop.f32.mrf.mxu0
    %v1406 = vadd.f32 %v1324, %v1405
    %v1407 = vpop.f32.mrf.mxu0
    %1408 = vdwg.mxu0
    %1409 = vmatprep.subr.mxu0 0.0
    %1410 = vmatpush1.msra.mxu0 0.0
    %1411 = vmatprep.subr.mxu0 0.0
    %1412 = vmatpush1.msra.mxu0 0.0
    %1413 = vmatprep.subr.mxu0 0.0
    %1414 = vmatpush1.msra.mxu0 0.0
    %1415 = vmatprep.subr.mxu0 0.0
    %1416 = vmatpush1.msra.mxu0 0.0
    %1417 = vmatprep.subr.mxu0 0.0
    %1418 = vmatpush1.msra.mxu0 0.0
    %1419 = vmatprep.subr.mxu0 0.0
    %1420 = vmatpush1.msra.mxu0 0.0
    %1421 = vmatprep.subr.mxu0 0.0
    %1422 = vmatpush1.msra.mxu0 0.0
    %1423 = vmatprep.subr.mxu0 0.0
    %1424 = vmatpush1.msra.mxu0 0.0
    %1425 = vmatprep.subr.mxu0 0.0
    %1426 = vmatpush1.msra.mxu0 0.0
    %1427 = vmatprep.subr.mxu0 0.0
    %1428 = vmatpush1.msra.mxu0 0.0
    %1429 = vmatprep.subr.mxu0 0.0
    %1430 = vmatpush1.msra.mxu0 0.0
    %1431 = vmatprep.subr.mxu0 0.0
    %v1432 = vand.u32 %v580, 4294901760
    %1433 = vmatpush1.msra.mxu0 %v1432
    %1434 = vmatprep.subr.mxu0 0.0
    %v1435 = vand.u32 %v569, 4294901760
    %1436 = vmatpush1.msra.mxu0 %v1435
    %1437 = vmatprep.subr.mxu0 0.0
    %v1438 = vand.u32 %v566, 4294901760
    %1439 = vmatpush1.msra.mxu0 %v1438
    %1440 = vmatprep.subr.mxu0 0.0
    %v1441 = vand.u32 %v563, 4294901760
    %1442 = vmatpush1.msra.mxu0 %v1441
    %1443 = vmatprep.subr.mxu0 0.0
    %v1444 = vand.u32 %v560, 4294901760
    %1445 = vmatpush1.msra.mxu0 %v1444
    %1446 = vmatprep.subr.mxu0 0.0
    %1447 = vmatpush2.msra.mxu0 0.0
    %1448 = vmatprep.subr.mxu0 0.0
    %1449 = vmatpush2.msra.mxu0 0.0
    %1450 = vmatprep.subr.mxu0 0.0
    %1451 = vmatpush2.msra.mxu0 0.0
    %1452 = vmatprep.subr.mxu0 0.0
    %1453 = vmatpush2.msra.mxu0 0.0
    %1454 = vmatprep.subr.mxu0 0.0
    %1455 = vmatpush2.msra.mxu0 0.0
    %1456 = vmatprep.subr.mxu0 0.0
    %1457 = vmatpush2.msra.mxu0 0.0
    %1458 = vmatprep.subr.mxu0 0.0
    %1459 = vmatpush2.msra.mxu0 0.0
    %1460 = vmatprep.subr.mxu0 0.0
    %1461 = vmatpush2.msra.mxu0 0.0
    %1462 = vmatprep.subr.mxu0 0.0
    %1463 = vmatpush2.msra.mxu0 0.0
    %1464 = vmatprep.subr.mxu0 0.0
    %1465 = vmatpush2.msra.mxu0 0.0
    %1466 = vmatprep.subr.mxu0 0.0
    %1467 = vmatpush2.msra.mxu0 0.0
    %1468 = vmatprep.subr.mxu0 0.0
    %1469 = vmatpush2.msra.mxu0 0.0
    %1470 = vmatprep.subr.mxu0 0.0
    %1471 = vmatpush2.msra.mxu0 0.0
    %1472 = vmatprep.subr.mxu0 0.0
    %1473 = vmatpush2.msra.mxu0 0.0
    %1474 = vmatprep.subr.mxu0 0.0
    %1475 = vmatpush2.msra.mxu0 0.0
    %1476 = vmatprep.subr.mxu0 0.0
    %1477 = vmatpush2.msra.mxu0 0.0
    %1478 = vmatprep.mubr.f32.mxu0 0.0
    %v1479 = vand.u32 %v54, 4294901760
    %v1480 = vsub.f32 %v54, %v1479
    %v1481 = vand.u32 %v1480, 4294901760
    %1482 = vmatmul.mubr.f32.gmra.mxu0 %v1481
    %v1483 = vpop.f32.mrf.mxu0
    %v1484 = vadd.f32 %v1406, %v1483
    %v1485 = vpop.f32.mrf.mxu0
    %1486 = vdwg.mxu0
    %1487 = vmatprep.subr.mxu0 0.0
    %1488 = vmatpush1.msra.mxu0 0.0
    %1489 = vmatprep.subr.mxu0 0.0
    %1490 = vmatpush1.msra.mxu0 0.0
    %1491 = vmatprep.subr.mxu0 0.0
    %1492 = vmatpush1.msra.mxu0 0.0
    %1493 = vmatprep.subr.mxu0 0.0
    %1494 = vmatpush1.msra.mxu0 0.0
    %1495 = vmatprep.subr.mxu0 0.0
    %1496 = vmatpush1.msra.mxu0 0.0
    %1497 = vmatprep.subr.mxu0 0.0
    %1498 = vmatpush1.msra.mxu0 0.0
    %1499 = vmatprep.subr.mxu0 0.0
    %1500 = vmatpush1.msra.mxu0 0.0
    %1501 = vmatprep.subr.mxu0 0.0
    %1502 = vmatpush1.msra.mxu0 0.0
    %1503 = vmatprep.subr.mxu0 0.0
    %1504 = vmatpush1.msra.mxu0 0.0
    %1505 = vmatprep.subr.mxu0 0.0
    %1506 = vmatpush1.msra.mxu0 0.0
    %1507 = vmatprep.subr.mxu0 0.0
    %1508 = vmatpush1.msra.mxu0 0.0
    %1509 = vmatprep.subr.mxu0 0.0
    %v1510 = vand.u32 %v580, 4294901760
    %v1511 = vsub.f32 %v580, %v1510
    %v1512 = vand.u32 %v1511, 4294901760
    %1513 = vmatpush1.msra.mxu0 %v1512
    %1514 = vmatprep.subr.mxu0 0.0
    %v1515 = vand.u32 %v569, 4294901760
    %v1516 = vsub.f32 %v569, %v1515
    %v1517 = vand.u32 %v1516, 4294901760
    %1518 = vmatpush1.msra.mxu0 %v1517
    %1519 = vmatprep.subr.mxu0 0.0
    %v1520 = vand.u32 %v566, 4294901760
    %v1521 = vsub.f32 %v566, %v1520
    %v1522 = vand.u32 %v1521, 4294901760
    %1523 = vmatpush1.msra.mxu0 %v1522
    %1524 = vmatprep.subr.mxu0 0.0
    %v1525 = vand.u32 %v563, 4294901760
    %v1526 = vsub.f32 %v563, %v1525
    %v1527 = vand.u32 %v1526, 4294901760
    %1528 = vmatpush1.msra.mxu0 %v1527
    %1529 = vmatprep.subr.mxu0 0.0
    %v1530 = vand.u32 %v560, 4294901760
    %v1531 = vsub.f32 %v560, %v1530
    %v1532 = vand.u32 %v1531, 4294901760
    %1533 = vmatpush1.msra.mxu0 %v1532
    %1534 = vmatprep.subr.mxu0 0.0
    %1535 = vmatpush2.msra.mxu0 0.0
    %1536 = vmatprep.subr.mxu0 0.0
    %1537 = vmatpush2.msra.mxu0 0.0
    %1538 = vmatprep.subr.mxu0 0.0
    %1539 = vmatpush2.msra.mxu0 0.0
    %1540 = vmatprep.subr.mxu0 0.0
    %1541 = vmatpush2.msra.mxu0 0.0
    %1542 = vmatprep.subr.mxu0 0.0
    %1543 = vmatpush2.msra.mxu0 0.0
    %1544 = vmatprep.subr.mxu0 0.0
    %1545 = vmatpush2.msra.mxu0 0.0
    %1546 = vmatprep.subr.mxu0 0.0
    %1547 = vmatpush2.msra.mxu0 0.0
    %1548 = vmatprep.subr.mxu0 0.0
    %1549 = vmatpush2.msra.mxu0 0.0
    %1550 = vmatprep.subr.mxu0 0.0
    %1551 = vmatpush2.msra.mxu0 0.0
    %1552 = vmatprep.subr.mxu0 0.0
    %1553 = vmatpush2.msra.mxu0 0.0
    %1554 = vmatprep.subr.mxu0 0.0
    %1555 = vmatpush2.msra.mxu0 0.0
    %1556 = vmatprep.subr.mxu0 0.0
    %1557 = vmatpush2.msra.mxu0 0.0
    %1558 = vmatprep.subr.mxu0 0.0
    %1559 = vmatpush2.msra.mxu0 0.0
    %1560 = vmatprep.subr.mxu0 0.0
    %1561 = vmatpush2.msra.mxu0 0.0
    %1562 = vmatprep.subr.mxu0 0.0
    %1563 = vmatpush2.msra.mxu0 0.0
    %1564 = vmatprep.subr.mxu0 0.0
    %1565 = vmatpush2.msra.mxu0 0.0
    %1566 = vmatprep.mubr.f32.mxu0 0.0
    %v1567 = vand.u32 %v54, 4294901760
    %1568 = vmatmul.mubr.f32.gmra.mxu0 %v1567
    %v1569 = vpop.f32.mrf.mxu0
    %v1570 = vadd.f32 %v1484, %v1569
    %v1571 = vpop.f32.mrf.mxu0
    %1572 = vdwg.mxu0
    %1573 = vmatprep.subr.mxu0 0.0
    %1574 = vmatpush1.msra.mxu0 0.0
    %1575 = vmatprep.subr.mxu0 0.0
    %1576 = vmatpush1.msra.mxu0 0.0
    %1577 = vmatprep.subr.mxu0 0.0
    %1578 = vmatpush1.msra.mxu0 0.0
    %1579 = vmatprep.subr.mxu0 0.0
    %1580 = vmatpush1.msra.mxu0 0.0
    %1581 = vmatprep.subr.mxu0 0.0
    %1582 = vmatpush1.msra.mxu0 0.0
    %1583 = vmatprep.subr.mxu0 0.0
    %1584 = vmatpush1.msra.mxu0 0.0
    %1585 = vmatprep.subr.mxu0 0.0
    %1586 = vmatpush1.msra.mxu0 0.0
    %1587 = vmatprep.subr.mxu0 0.0
    %1588 = vmatpush1.msra.mxu0 0.0
    %1589 = vmatprep.subr.mxu0 0.0
    %1590 = vmatpush1.msra.mxu0 0.0
    %1591 = vmatprep.subr.mxu0 0.0
    %1592 = vmatpush1.msra.mxu0 0.0
    %1593 = vmatprep.subr.mxu0 0.0
    %1594 = vmatpush1.msra.mxu0 0.0
    %1595 = vmatprep.subr.mxu0 0.0
    %v1596 = vand.u32 %v580, 4294901760
    %1597 = vmatpush1.msra.mxu0 %v1596
    %1598 = vmatprep.subr.mxu0 0.0
    %v1599 = vand.u32 %v569, 4294901760
    %1600 = vmatpush1.msra.mxu0 %v1599
    %1601 = vmatprep.subr.mxu0 0.0
    %v1602 = vand.u32 %v566, 4294901760
    %1603 = vmatpush1.msra.mxu0 %v1602
    %1604 = vmatprep.subr.mxu0 0.0
    %v1605 = vand.u32 %v563, 4294901760
    %1606 = vmatpush1.msra.mxu0 %v1605
    %1607 = vmatprep.subr.mxu0 0.0
    %v1608 = vand.u32 %v560, 4294901760
    %1609 = vmatpush1.msra.mxu0 %v1608
    %1610 = vmatprep.subr.mxu0 0.0
    %1611 = vmatpush2.msra.mxu0 0.0
    %1612 = vmatprep.subr.mxu0 0.0
    %1613 = vmatpush2.msra.mxu0 0.0
    %1614 = vmatprep.subr.mxu0 0.0
    %1615 = vmatpush2.msra.mxu0 0.0
    %1616 = vmatprep.subr.mxu0 0.0
    %1617 = vmatpush2.msra.mxu0 0.0
    %1618 = vmatprep.subr.mxu0 0.0
    %1619 = vmatpush2.msra.mxu0 0.0
    %1620 = vmatprep.subr.mxu0 0.0
    %1621 = vmatpush2.msra.mxu0 0.0
    %1622 = vmatprep.subr.mxu0 0.0
    %1623 = vmatpush2.msra.mxu0 0.0
    %1624 = vmatprep.subr.mxu0 0.0
    %1625 = vmatpush2.msra.mxu0 0.0
    %1626 = vmatprep.subr.mxu0 0.0
    %1627 = vmatpush2.msra.mxu0 0.0
    %1628 = vmatprep.subr.mxu0 0.0
    %1629 = vmatpush2.msra.mxu0 0.0
    %1630 = vmatprep.subr.mxu0 0.0
    %1631 = vmatpush2.msra.mxu0 0.0
    %1632 = vmatprep.subr.mxu0 0.0
    %1633 = vmatpush2.msra.mxu0 0.0
    %1634 = vmatprep.subr.mxu0 0.0
    %1635 = vmatpush2.msra.mxu0 0.0
    %1636 = vmatprep.subr.mxu0 0.0
    %1637 = vmatpush2.msra.mxu0 0.0
    %1638 = vmatprep.subr.mxu0 0.0
    %1639 = vmatpush2.msra.mxu0 0.0
    %1640 = vmatprep.subr.mxu0 0.0
    %1641 = vmatpush2.msra.mxu0 0.0
    %1642 = vmatprep.mubr.f32.mxu0 0.0
    %v1643 = vand.u32 %v54, 4294901760
    %1644 = vmatmul.mubr.f32.gmra.mxu0 %v1643
    %v1645 = vpop.f32.mrf.mxu0
    %v1646 = vadd.f32 %v1570, %v1645
    %v1647 = vpop.f32.mrf.mxu0
    %1648 = vdwg.mxu0
    %v1649 = vld [vmem:[%s5] sm:$0x3f]
    %vm1650 = vcmask 48128
    %v1652 = vsel %vm1650, %v45, 0
    %vm1654 = vcmask 1045504
    %v1656 = vsel %vm1654, %v1649, 0
    %1658 = vmatprep.subr.mxu0 0.0
    %1659 = vmatpush1.msra.mxu0 0.0
    %1660 = vmatprep.subr.mxu0 0.0
    %1661 = vmatpush1.msra.mxu0 0.0
    %1662 = vmatprep.subr.mxu0 0.0
    %1663 = vmatpush1.msra.mxu0 0.0
    %1664 = vmatprep.subr.mxu0 0.0
    %1665 = vmatpush1.msra.mxu0 0.0
    %1666 = vmatprep.subr.mxu0 0.0
    %1667 = vmatpush1.msra.mxu0 0.0
    %1668 = vmatprep.subr.mxu0 0.0
    %1669 = vmatpush1.msra.mxu0 0.0
    %1670 = vmatprep.subr.mxu0 0.0
    %1671 = vmatpush1.msra.mxu0 0.0
    %1672 = vmatprep.subr.mxu0 0.0
    %1673 = vmatpush1.msra.mxu0 0.0
    %1674 = vmatprep.subr.mxu0 0.0
    %1675 = vmatpush1.msra.mxu0 0.0
    %1676 = vmatprep.subr.mxu0 0.0
    %1677 = vmatpush1.msra.mxu0 0.0
    %1678 = vmatprep.subr.mxu0 0.0
    %1679 = vmatpush1.msra.mxu0 0.0
    %1680 = vmatprep.subr.mxu0 0.0
    %1681 = vmatpush1.msra.mxu0 0.0
    %1682 = vmatprep.subr.mxu0 0.0
    %1683 = vmatpush1.msra.mxu0 0.0
    %1684 = vmatprep.subr.mxu0 0.0
    %1685 = vmatpush1.msra.mxu0 0.0
    %1686 = vmatprep.subr.mxu0 0.0
    %1687 = vmatpush1.msra.mxu0 0.0
    %1688 = vmatprep.subr.mxu0 0.0
    %v1689 = vand.u32 %v1656, 4294901760
    %1690 = vmatpush1.msra.mxu0 %v1689
    %1691 = vmatprep.subr.mxu0 0.0
    %1692 = vmatpush2.msra.mxu0 0.0
    %1693 = vmatprep.subr.mxu0 0.0
    %1694 = vmatpush2.msra.mxu0 0.0
    %1695 = vmatprep.subr.mxu0 0.0
    %1696 = vmatpush2.msra.mxu0 0.0
    %1697 = vmatprep.subr.mxu0 0.0
    %1698 = vmatpush2.msra.mxu0 0.0
    %1699 = vmatprep.subr.mxu0 0.0
    %1700 = vmatpush2.msra.mxu0 0.0
    %1701 = vmatprep.subr.mxu0 0.0
    %1702 = vmatpush2.msra.mxu0 0.0
    %1703 = vmatprep.subr.mxu0 0.0
    %1704 = vmatpush2.msra.mxu0 0.0
    %1705 = vmatprep.subr.mxu0 0.0
    %1706 = vmatpush2.msra.mxu0 0.0
    %1707 = vmatprep.subr.mxu0 0.0
    %1708 = vmatpush2.msra.mxu0 0.0
    %1709 = vmatprep.subr.mxu0 0.0
    %1710 = vmatpush2.msra.mxu0 0.0
    %1711 = vmatprep.subr.mxu0 0.0
    %1712 = vmatpush2.msra.mxu0 0.0
    %1713 = vmatprep.subr.mxu0 0.0
    %1714 = vmatpush2.msra.mxu0 0.0
    %1715 = vmatprep.subr.mxu0 0.0
    %1716 = vmatpush2.msra.mxu0 0.0
    %1717 = vmatprep.subr.mxu0 0.0
    %1718 = vmatpush2.msra.mxu0 0.0
    %1719 = vmatprep.subr.mxu0 0.0
    %1720 = vmatpush2.msra.mxu0 0.0
    %1721 = vmatprep.subr.mxu0 0.0
    %1722 = vmatpush2.msra.mxu0 0.0
    %1723 = vmatprep.mubr.f32.mxu0 0.0
    %v1724 = vand.u32 %v1652, 4294901760
    %v1725 = vsub.f32 %v1652, %v1724
    %v1726 = vand.u32 %v1725, 4294901760
    %v1727 = vsub.f32 %v1725, %v1726
    %v1728 = vand.u32 %v1727, 4294901760
    %1729 = vmatmul.mubr.f32.gmra.mxu0 %v1728
    %v1730 = vpop.f32.mrf.mxu0
    %v1731 = vadd.f32 0.0, %v1730
    %v1732 = vpop.f32.mrf.mxu0
    %1733 = vdwg.mxu0
    %1734 = vmatprep.subr.mxu0 0.0
    %1735 = vmatpush1.msra.mxu0 0.0
    %1736 = vmatprep.subr.mxu0 0.0
    %1737 = vmatpush1.msra.mxu0 0.0
    %1738 = vmatprep.subr.mxu0 0.0
    %1739 = vmatpush1.msra.mxu0 0.0
    %1740 = vmatprep.subr.mxu0 0.0
    %1741 = vmatpush1.msra.mxu0 0.0
    %1742 = vmatprep.subr.mxu0 0.0
    %1743 = vmatpush1.msra.mxu0 0.0
    %1744 = vmatprep.subr.mxu0 0.0
    %1745 = vmatpush1.msra.mxu0 0.0
    %1746 = vmatprep.subr.mxu0 0.0
    %1747 = vmatpush1.msra.mxu0 0.0
    %1748 = vmatprep.subr.mxu0 0.0
    %1749 = vmatpush1.msra.mxu0 0.0
    %1750 = vmatprep.subr.mxu0 0.0
    %1751 = vmatpush1.msra.mxu0 0.0
    %1752 = vmatprep.subr.mxu0 0.0
    %1753 = vmatpush1.msra.mxu0 0.0
    %1754 = vmatprep.subr.mxu0 0.0
    %1755 = vmatpush1.msra.mxu0 0.0
    %1756 = vmatprep.subr.mxu0 0.0
    %1757 = vmatpush1.msra.mxu0 0.0
    %1758 = vmatprep.subr.mxu0 0.0
    %1759 = vmatpush1.msra.mxu0 0.0
    %1760 = vmatprep.subr.mxu0 0.0
    %1761 = vmatpush1.msra.mxu0 0.0
    %1762 = vmatprep.subr.mxu0 0.0
    %1763 = vmatpush1.msra.mxu0 0.0
    %1764 = vmatprep.subr.mxu0 0.0
    %v1765 = vand.u32 %v1656, 4294901760
    %v1766 = vsub.f32 %v1656, %v1765
    %v1767 = vand.u32 %v1766, 4294901760
    %v1768 = vsub.f32 %v1766, %v1767
    %v1769 = vand.u32 %v1768, 4294901760
    %1770 = vmatpush1.msra.mxu0 %v1769
    %1771 = vmatprep.subr.mxu0 0.0
    %1772 = vmatpush2.msra.mxu0 0.0
    %1773 = vmatprep.subr.mxu0 0.0
    %1774 = vmatpush2.msra.mxu0 0.0
    %1775 = vmatprep.subr.mxu0 0.0
    %1776 = vmatpush2.msra.mxu0 0.0
    %1777 = vmatprep.subr.mxu0 0.0
    %1778 = vmatpush2.msra.mxu0 0.0
    %1779 = vmatprep.subr.mxu0 0.0
    %1780 = vmatpush2.msra.mxu0 0.0
    %1781 = vmatprep.subr.mxu0 0.0
    %1782 = vmatpush2.msra.mxu0 0.0
    %1783 = vmatprep.subr.mxu0 0.0
    %1784 = vmatpush2.msra.mxu0 0.0
    %1785 = vmatprep.subr.mxu0 0.0
    %1786 = vmatpush2.msra.mxu0 0.0
    %1787 = vmatprep.subr.mxu0 0.0
    %1788 = vmatpush2.msra.mxu0 0.0
    %1789 = vmatprep.subr.mxu0 0.0
    %1790 = vmatpush2.msra.mxu0 0.0
    %1791 = vmatprep.subr.mxu0 0.0
    %1792 = vmatpush2.msra.mxu0 0.0
    %1793 = vmatprep.subr.mxu0 0.0
    %1794 = vmatpush2.msra.mxu0 0.0
    %1795 = vmatprep.subr.mxu0 0.0
    %1796 = vmatpush2.msra.mxu0 0.0
    %1797 = vmatprep.subr.mxu0 0.0
    %1798 = vmatpush2.msra.mxu0 0.0
    %1799 = vmatprep.subr.mxu0 0.0
    %1800 = vmatpush2.msra.mxu0 0.0
    %1801 = vmatprep.subr.mxu0 0.0
    %1802 = vmatpush2.msra.mxu0 0.0
    %1803 = vmatprep.mubr.f32.mxu0 0.0
    %v1804 = vand.u32 %v1652, 4294901760
    %1805 = vmatmul.mubr.f32.gmra.mxu0 %v1804
    %v1806 = vpop.f32.mrf.mxu0
    %v1807 = vadd.f32 %v1731, %v1806
    %v1808 = vpop.f32.mrf.mxu0
    %1809 = vdwg.mxu0
    %1810 = vmatprep.subr.mxu0 0.0
    %1811 = vmatpush1.msra.mxu0 0.0
    %1812 = vmatprep.subr.mxu0 0.0
    %1813 = vmatpush1.msra.mxu0 0.0
    %1814 = vmatprep.subr.mxu0 0.0
    %1815 = vmatpush1.msra.mxu0 0.0
    %1816 = vmatprep.subr.mxu0 0.0
    %1817 = vmatpush1.msra.mxu0 0.0
    %1818 = vmatprep.subr.mxu0 0.0
    %1819 = vmatpush1.msra.mxu0 0.0
    %1820 = vmatprep.subr.mxu0 0.0
    %1821 = vmatpush1.msra.mxu0 0.0
    %1822 = vmatprep.subr.mxu0 0.0
    %1823 = vmatpush1.msra.mxu0 0.0
    %1824 = vmatprep.subr.mxu0 0.0
    %1825 = vmatpush1.msra.mxu0 0.0
    %1826 = vmatprep.subr.mxu0 0.0
    %1827 = vmatpush1.msra.mxu0 0.0
    %1828 = vmatprep.subr.mxu0 0.0
    %1829 = vmatpush1.msra.mxu0 0.0
    %1830 = vmatprep.subr.mxu0 0.0
    %1831 = vmatpush1.msra.mxu0 0.0
    %1832 = vmatprep.subr.mxu0 0.0
    %1833 = vmatpush1.msra.mxu0 0.0
    %1834 = vmatprep.subr.mxu0 0.0
    %1835 = vmatpush1.msra.mxu0 0.0
    %1836 = vmatprep.subr.mxu0 0.0
    %1837 = vmatpush1.msra.mxu0 0.0
    %1838 = vmatprep.subr.mxu0 0.0
    %1839 = vmatpush1.msra.mxu0 0.0
    %1840 = vmatprep.subr.mxu0 0.0
    %v1841 = vand.u32 %v1656, 4294901760
    %v1842 = vsub.f32 %v1656, %v1841
    %1843 = vmatpush1.msra.mxu0 %v1842
    %1844 = vmatprep.subr.mxu0 0.0
    %1845 = vmatpush2.msra.mxu0 0.0
    %1846 = vmatprep.subr.mxu0 0.0
    %1847 = vmatpush2.msra.mxu0 0.0
    %1848 = vmatprep.subr.mxu0 0.0
    %1849 = vmatpush2.msra.mxu0 0.0
    %1850 = vmatprep.subr.mxu0 0.0
    %1851 = vmatpush2.msra.mxu0 0.0
    %1852 = vmatprep.subr.mxu0 0.0
    %1853 = vmatpush2.msra.mxu0 0.0
    %1854 = vmatprep.subr.mxu0 0.0
    %1855 = vmatpush2.msra.mxu0 0.0
    %1856 = vmatprep.subr.mxu0 0.0
    %1857 = vmatpush2.msra.mxu0 0.0
    %1858 = vmatprep.subr.mxu0 0.0
    %1859 = vmatpush2.msra.mxu0 0.0
    %1860 = vmatprep.subr.mxu0 0.0
    %1861 = vmatpush2.msra.mxu0 0.0
    %1862 = vmatprep.subr.mxu0 0.0
    %1863 = vmatpush2.msra.mxu0 0.0
    %1864 = vmatprep.subr.mxu0 0.0
    %1865 = vmatpush2.msra.mxu0 0.0
    %1866 = vmatprep.subr.mxu0 0.0
    %1867 = vmatpush2.msra.mxu0 0.0
    %1868 = vmatprep.subr.mxu0 0.0
    %1869 = vmatpush2.msra.mxu0 0.0
    %1870 = vmatprep.subr.mxu0 0.0
    %1871 = vmatpush2.msra.mxu0 0.0
    %1872 = vmatprep.subr.mxu0 0.0
    %1873 = vmatpush2.msra.mxu0 0.0
    %1874 = vmatprep.subr.mxu0 0.0
    %1875 = vmatpush2.msra.mxu0 0.0
    %1876 = vmatprep.mubr.f32.mxu0 0.0
    %v1877 = vand.u32 %v1652, 4294901760
    %v1878 = vsub.f32 %v1652, %v1877
    %1879 = vmatmul.mubr.f32.gmra.mxu0 %v1878
    %v1880 = vpop.f32.mrf.mxu0
    %v1881 = vadd.f32 %v1807, %v1880
    %v1882 = vpop.f32.mrf.mxu0
    %1883 = vdwg.mxu0
    %1884 = vmatprep.subr.mxu0 0.0
    %1885 = vmatpush1.msra.mxu0 0.0
    %1886 = vmatprep.subr.mxu0 0.0
    %1887 = vmatpush1.msra.mxu0 0.0
    %1888 = vmatprep.subr.mxu0 0.0
    %1889 = vmatpush1.msra.mxu0 0.0
    %1890 = vmatprep.subr.mxu0 0.0
    %1891 = vmatpush1.msra.mxu0 0.0
    %1892 = vmatprep.subr.mxu0 0.0
    %1893 = vmatpush1.msra.mxu0 0.0
    %1894 = vmatprep.subr.mxu0 0.0
    %1895 = vmatpush1.msra.mxu0 0.0
    %1896 = vmatprep.subr.mxu0 0.0
    %1897 = vmatpush1.msra.mxu0 0.0
    %1898 = vmatprep.subr.mxu0 0.0
    %1899 = vmatpush1.msra.mxu0 0.0
    %1900 = vmatprep.subr.mxu0 0.0
    %1901 = vmatpush1.msra.mxu0 0.0
    %1902 = vmatprep.subr.mxu0 0.0
    %1903 = vmatpush1.msra.mxu0 0.0
    %1904 = vmatprep.subr.mxu0 0.0
    %1905 = vmatpush1.msra.mxu0 0.0
    %1906 = vmatprep.subr.mxu0 0.0
    %1907 = vmatpush1.msra.mxu0 0.0
    %1908 = vmatprep.subr.mxu0 0.0
    %1909 = vmatpush1.msra.mxu0 0.0
    %1910 = vmatprep.subr.mxu0 0.0
    %1911 = vmatpush1.msra.mxu0 0.0
    %1912 = vmatprep.subr.mxu0 0.0
    %1913 = vmatpush1.msra.mxu0 0.0
    %1914 = vmatprep.subr.mxu0 0.0
    %v1915 = vand.u32 %v1656, 4294901760
    %1916 = vmatpush1.msra.mxu0 %v1915
    %1917 = vmatprep.subr.mxu0 0.0
    %1918 = vmatpush2.msra.mxu0 0.0
    %1919 = vmatprep.subr.mxu0 0.0
    %1920 = vmatpush2.msra.mxu0 0.0
    %1921 = vmatprep.subr.mxu0 0.0
    %1922 = vmatpush2.msra.mxu0 0.0
    %1923 = vmatprep.subr.mxu0 0.0
    %1924 = vmatpush2.msra.mxu0 0.0
    %1925 = vmatprep.subr.mxu0 0.0
    %1926 = vmatpush2.msra.mxu0 0.0
    %1927 = vmatprep.subr.mxu0 0.0
    %1928 = vmatpush2.msra.mxu0 0.0
    %1929 = vmatprep.subr.mxu0 0.0
    %1930 = vmatpush2.msra.mxu0 0.0
    %1931 = vmatprep.subr.mxu0 0.0
    %1932 = vmatpush2.msra.mxu0 0.0
    %1933 = vmatprep.subr.mxu0 0.0
    %1934 = vmatpush2.msra.mxu0 0.0
    %1935 = vmatprep.subr.mxu0 0.0
    %1936 = vmatpush2.msra.mxu0 0.0
    %1937 = vmatprep.subr.mxu0 0.0
    %1938 = vmatpush2.msra.mxu0 0.0
    %1939 = vmatprep.subr.mxu0 0.0
    %1940 = vmatpush2.msra.mxu0 0.0
    %1941 = vmatprep.subr.mxu0 0.0
    %1942 = vmatpush2.msra.mxu0 0.0
    %1943 = vmatprep.subr.mxu0 0.0
    %1944 = vmatpush2.msra.mxu0 0.0
    %1945 = vmatprep.subr.mxu0 0.0
    %1946 = vmatpush2.msra.mxu0 0.0
    %1947 = vmatprep.subr.mxu0 0.0
    %1948 = vmatpush2.msra.mxu0 0.0
    %1949 = vmatprep.mubr.f32.mxu0 0.0
    %v1950 = vand.u32 %v1652, 4294901760
    %v1951 = vsub.f32 %v1652, %v1950
    %v1952 = vand.u32 %v1951, 4294901760
    %1953 = vmatmul.mubr.f32.gmra.mxu0 %v1952
    %v1954 = vpop.f32.mrf.mxu0
    %v1955 = vadd.f32 %v1881, %v1954
    %v1956 = vpop.f32.mrf.mxu0
    %1957 = vdwg.mxu0
    %1958 = vmatprep.subr.mxu0 0.0
    %1959 = vmatpush1.msra.mxu0 0.0
    %1960 = vmatprep.subr.mxu0 0.0
    %1961 = vmatpush1.msra.mxu0 0.0
    %1962 = vmatprep.subr.mxu0 0.0
    %1963 = vmatpush1.msra.mxu0 0.0
    %1964 = vmatprep.subr.mxu0 0.0
    %1965 = vmatpush1.msra.mxu0 0.0
    %1966 = vmatprep.subr.mxu0 0.0
    %1967 = vmatpush1.msra.mxu0 0.0
    %1968 = vmatprep.subr.mxu0 0.0
    %1969 = vmatpush1.msra.mxu0 0.0
    %1970 = vmatprep.subr.mxu0 0.0
    %1971 = vmatpush1.msra.mxu0 0.0
    %1972 = vmatprep.subr.mxu0 0.0
    %1973 = vmatpush1.msra.mxu0 0.0
    %1974 = vmatprep.subr.mxu0 0.0
    %1975 = vmatpush1.msra.mxu0 0.0
    %1976 = vmatprep.subr.mxu0 0.0
    %1977 = vmatpush1.msra.mxu0 0.0
    %1978 = vmatprep.subr.mxu0 0.0
    %1979 = vmatpush1.msra.mxu0 0.0
    %1980 = vmatprep.subr.mxu0 0.0
    %1981 = vmatpush1.msra.mxu0 0.0
    %1982 = vmatprep.subr.mxu0 0.0
    %1983 = vmatpush1.msra.mxu0 0.0
    %1984 = vmatprep.subr.mxu0 0.0
    %1985 = vmatpush1.msra.mxu0 0.0
    %1986 = vmatprep.subr.mxu0 0.0
    %1987 = vmatpush1.msra.mxu0 0.0
    %1988 = vmatprep.subr.mxu0 0.0
    %v1989 = vand.u32 %v1656, 4294901760
    %v1990 = vsub.f32 %v1656, %v1989
    %v1991 = vand.u32 %v1990, 4294901760
    %1992 = vmatpush1.msra.mxu0 %v1991
    %1993 = vmatprep.subr.mxu0 0.0
    %1994 = vmatpush2.msra.mxu0 0.0
    %1995 = vmatprep.subr.mxu0 0.0
    %1996 = vmatpush2.msra.mxu0 0.0
    %1997 = vmatprep.subr.mxu0 0.0
    %1998 = vmatpush2.msra.mxu0 0.0
    %1999 = vmatprep.subr.mxu0 0.0
    %2000 = vmatpush2.msra.mxu0 0.0
    %2001 = vmatprep.subr.mxu0 0.0
    %2002 = vmatpush2.msra.mxu0 0.0
    %2003 = vmatprep.subr.mxu0 0.0
    %2004 = vmatpush2.msra.mxu0 0.0
    %2005 = vmatprep.subr.mxu0 0.0
    %2006 = vmatpush2.msra.mxu0 0.0
    %2007 = vmatprep.subr.mxu0 0.0
    %2008 = vmatpush2.msra.mxu0 0.0
    %2009 = vmatprep.subr.mxu0 0.0
    %2010 = vmatpush2.msra.mxu0 0.0
    %2011 = vmatprep.subr.mxu0 0.0
    %2012 = vmatpush2.msra.mxu0 0.0
    %2013 = vmatprep.subr.mxu0 0.0
    %2014 = vmatpush2.msra.mxu0 0.0
    %2015 = vmatprep.subr.mxu0 0.0
    %2016 = vmatpush2.msra.mxu0 0.0
    %2017 = vmatprep.subr.mxu0 0.0
    %2018 = vmatpush2.msra.mxu0 0.0
    %2019 = vmatprep.subr.mxu0 0.0
    %2020 = vmatpush2.msra.mxu0 0.0
    %2021 = vmatprep.subr.mxu0 0.0
    %2022 = vmatpush2.msra.mxu0 0.0
    %2023 = vmatprep.subr.mxu0 0.0
    %2024 = vmatpush2.msra.mxu0 0.0
    %2025 = vmatprep.mubr.f32.mxu0 0.0
    %v2026 = vand.u32 %v1652, 4294901760
    %2027 = vmatmul.mubr.f32.gmra.mxu0 %v2026
    %v2028 = vpop.f32.mrf.mxu0
    %v2029 = vadd.f32 %v1955, %v2028
    %v2030 = vpop.f32.mrf.mxu0
    %2031 = vdwg.mxu0
    %2032 = vmatprep.subr.mxu0 0.0
    %2033 = vmatpush1.msra.mxu0 0.0
    %2034 = vmatprep.subr.mxu0 0.0
    %2035 = vmatpush1.msra.mxu0 0.0
    %2036 = vmatprep.subr.mxu0 0.0
    %2037 = vmatpush1.msra.mxu0 0.0
    %2038 = vmatprep.subr.mxu0 0.0
    %2039 = vmatpush1.msra.mxu0 0.0
    %2040 = vmatprep.subr.mxu0 0.0
    %2041 = vmatpush1.msra.mxu0 0.0
    %2042 = vmatprep.subr.mxu0 0.0
    %2043 = vmatpush1.msra.mxu0 0.0
    %2044 = vmatprep.subr.mxu0 0.0
    %2045 = vmatpush1.msra.mxu0 0.0
    %2046 = vmatprep.subr.mxu0 0.0
    %2047 = vmatpush1.msra.mxu0 0.0
    %2048 = vmatprep.subr.mxu0 0.0
    %2049 = vmatpush1.msra.mxu0 0.0
    %2050 = vmatprep.subr.mxu0 0.0
    %2051 = vmatpush1.msra.mxu0 0.0
    %2052 = vmatprep.subr.mxu0 0.0
    %2053 = vmatpush1.msra.mxu0 0.0
    %2054 = vmatprep.subr.mxu0 0.0
    %2055 = vmatpush1.msra.mxu0 0.0
    %2056 = vmatprep.subr.mxu0 0.0
    %2057 = vmatpush1.msra.mxu0 0.0
    %2058 = vmatprep.subr.mxu0 0.0
    %2059 = vmatpush1.msra.mxu0 0.0
    %2060 = vmatprep.subr.mxu0 0.0
    %2061 = vmatpush1.msra.mxu0 0.0
    %2062 = vmatprep.subr.mxu0 0.0
    %v2063 = vand.u32 %v1656, 4294901760
    %2064 = vmatpush1.msra.mxu0 %v2063
    %2065 = vmatprep.subr.mxu0 0.0
    %2066 = vmatpush2.msra.mxu0 0.0
    %2067 = vmatprep.subr.mxu0 0.0
    %2068 = vmatpush2.msra.mxu0 0.0
    %2069 = vmatprep.subr.mxu0 0.0
    %2070 = vmatpush2.msra.mxu0 0.0
    %2071 = vmatprep.subr.mxu0 0.0
    %2072 = vmatpush2.msra.mxu0 0.0
    %2073 = vmatprep.subr.mxu0 0.0
    %2074 = vmatpush2.msra.mxu0 0.0
    %2075 = vmatprep.subr.mxu0 0.0
    %2076 = vmatpush2.msra.mxu0 0.0
    %2077 = vmatprep.subr.mxu0 0.0
    %2078 = vmatpush2.msra.mxu0 0.0
    %2079 = vmatprep.subr.mxu0 0.0
    %2080 = vmatpush2.msra.mxu0 0.0
    %2081 = vmatprep.subr.mxu0 0.0
    %2082 = vmatpush2.msra.mxu0 0.0
    %2083 = vmatprep.subr.mxu0 0.0
    %2084 = vmatpush2.msra.mxu0 0.0
    %2085 = vmatprep.subr.mxu0 0.0
    %2086 = vmatpush2.msra.mxu0 0.0
    %2087 = vmatprep.subr.mxu0 0.0
    %2088 = vmatpush2.msra.mxu0 0.0
    %2089 = vmatprep.subr.mxu0 0.0
    %2090 = vmatpush2.msra.mxu0 0.0
    %2091 = vmatprep.subr.mxu0 0.0
    %2092 = vmatpush2.msra.mxu0 0.0
    %2093 = vmatprep.subr.mxu0 0.0
    %2094 = vmatpush2.msra.mxu0 0.0
    %2095 = vmatprep.subr.mxu0 0.0
    %2096 = vmatpush2.msra.mxu0 0.0
    %2097 = vmatprep.mubr.f32.mxu0 0.0
    %v2098 = vand.u32 %v1652, 4294901760
    %2099 = vmatmul.mubr.f32.gmra.mxu0 %v2098
    %v2100 = vpop.f32.mrf.mxu0
    %v2101 = vadd.f32 %v2029, %v2100
    %v2102 = vpop.f32.mrf.mxu0
    %2103 = vdwg.mxu0
    %v2104 = vmul.f32 %v2101, %v555
    %v2105 = vld [vmem:[%s7] sm:$0xff]
    %v2106 = vld [vmem:[%s7 + $0x8] sm:$0xff]
    %v2107 = vld [vmem:[%s7 + $0x10] sm:$0xff]
    %v2108 = vld [vmem:[%s7 + $0x18] sm:$0xff]
    %v2109 = vld [vmem:[%s7 + $0x20] sm:$0xf]
    %vm2110 = vcmask 293888
    %v2112 = vsel %vm2110, %v2104, 0
    %vm2114 = vcmask 1043456
    %v2116 = vsel %vm2114, %v2109, 0
    %2118 = vmatprep.subr.mxu0 0.0
    %2119 = vmatpush1.msra.mxu0 0.0
    %2120 = vmatprep.subr.mxu0 0.0
    %2121 = vmatpush1.msra.mxu0 0.0
    %2122 = vmatprep.subr.mxu0 0.0
    %2123 = vmatpush1.msra.mxu0 0.0
    %2124 = vmatprep.subr.mxu0 0.0
    %2125 = vmatpush1.msra.mxu0 0.0
    %2126 = vmatprep.subr.mxu0 0.0
    %2127 = vmatpush1.msra.mxu0 0.0
    %2128 = vmatprep.subr.mxu0 0.0
    %2129 = vmatpush1.msra.mxu0 0.0
    %2130 = vmatprep.subr.mxu0 0.0
    %2131 = vmatpush1.msra.mxu0 0.0
    %2132 = vmatprep.subr.mxu0 0.0
    %2133 = vmatpush1.msra.mxu0 0.0
    %2134 = vmatprep.subr.mxu0 0.0
    %2135 = vmatpush1.msra.mxu0 0.0
    %2136 = vmatprep.subr.mxu0 0.0
    %2137 = vmatpush1.msra.mxu0 0.0
    %2138 = vmatprep.subr.mxu0 0.0
    %2139 = vmatpush1.msra.mxu0 0.0
    %2140 = vmatprep.subr.mxu0 0.0
    %v2141 = vand.u32 %v2116, 4294901760
    %2142 = vmatpush1.msra.mxu0 %v2141
    %2143 = vmatprep.subr.mxu0 0.0
    %v2144 = vand.u32 %v2108, 4294901760
    %2145 = vmatpush1.msra.mxu0 %v2144
    %2146 = vmatprep.subr.mxu0 0.0
    %v2147 = vand.u32 %v2107, 4294901760
    %2148 = vmatpush1.msra.mxu0 %v2147
    %2149 = vmatprep.subr.mxu0 0.0
    %v2150 = vand.u32 %v2106, 4294901760
    %2151 = vmatpush1.msra.mxu0 %v2150
    %2152 = vmatprep.subr.mxu0 0.0
    %v2153 = vand.u32 %v2105, 4294901760
    %2154 = vmatpush1.msra.mxu0 %v2153
    %2155 = vmatprep.subr.mxu0 0.0
    %2156 = vmatpush2.msra.mxu0 0.0
    %2157 = vmatprep.subr.mxu0 0.0
    %2158 = vmatpush2.msra.mxu0 0.0
    %2159 = vmatprep.subr.mxu0 0.0
    %2160 = vmatpush2.msra.mxu0 0.0
    %2161 = vmatprep.subr.mxu0 0.0
    %2162 = vmatpush2.msra.mxu0 0.0
    %2163 = vmatprep.subr.mxu0 0.0
    %2164 = vmatpush2.msra.mxu0 0.0
    %2165 = vmatprep.subr.mxu0 0.0
    %2166 = vmatpush2.msra.mxu0 0.0
    %2167 = vmatprep.subr.mxu0 0.0
    %2168 = vmatpush2.msra.mxu0 0.0
    %2169 = vmatprep.subr.mxu0 0.0
    %2170 = vmatpush2.msra.mxu0 0.0
    %2171 = vmatprep.subr.mxu0 0.0
    %2172 = vmatpush2.msra.mxu0 0.0
    %2173 = vmatprep.subr.mxu0 0.0
    %2174 = vmatpush2.msra.mxu0 0.0
    %2175 = vmatprep.subr.mxu0 0.0
    %2176 = vmatpush2.msra.mxu0 0.0
    %2177 = vmatprep.subr.mxu0 0.0
    %2178 = vmatpush2.msra.mxu0 0.0
    %2179 = vmatprep.subr.mxu0 0.0
    %2180 = vmatpush2.msra.mxu0 0.0
    %2181 = vmatprep.subr.mxu0 0.0
    %2182 = vmatpush2.msra.mxu0 0.0
    %2183 = vmatprep.subr.mxu0 0.0
    %2184 = vmatpush2.msra.mxu0 0.0
    %2185 = vmatprep.subr.mxu0 0.0
    %2186 = vmatpush2.msra.mxu0 0.0
    %2187 = vmatprep.mubr.f32.mxu0 0.0
    %v2188 = vand.u32 %v2112, 4294901760
    %v2189 = vsub.f32 %v2112, %v2188
    %v2190 = vand.u32 %v2189, 4294901760
    %v2191 = vsub.f32 %v2189, %v2190
    %v2192 = vand.u32 %v2191, 4294901760
    %2193 = vmatmul.mubr.f32.gmra.mxu0 %v2192
    %v2194 = vpop.f32.mrf.mxu0
    %v2195 = vadd.f32 0.0, %v2194
    %v2196 = vpop.f32.mrf.mxu0
    %2197 = vdwg.mxu0
    %2198 = vmatprep.subr.mxu0 0.0
    %2199 = vmatpush1.msra.mxu0 0.0
    %2200 = vmatprep.subr.mxu0 0.0
    %2201 = vmatpush1.msra.mxu0 0.0
    %2202 = vmatprep.subr.mxu0 0.0
    %2203 = vmatpush1.msra.mxu0 0.0
    %2204 = vmatprep.subr.mxu0 0.0
    %2205 = vmatpush1.msra.mxu0 0.0
    %2206 = vmatprep.subr.mxu0 0.0
    %2207 = vmatpush1.msra.mxu0 0.0
    %2208 = vmatprep.subr.mxu0 0.0
    %2209 = vmatpush1.msra.mxu0 0.0
    %2210 = vmatprep.subr.mxu0 0.0
    %2211 = vmatpush1.msra.mxu0 0.0
    %2212 = vmatprep.subr.mxu0 0.0
    %2213 = vmatpush1.msra.mxu0 0.0
    %2214 = vmatprep.subr.mxu0 0.0
    %2215 = vmatpush1.msra.mxu0 0.0
    %2216 = vmatprep.subr.mxu0 0.0
    %2217 = vmatpush1.msra.mxu0 0.0
    %2218 = vmatprep.subr.mxu0 0.0
    %2219 = vmatpush1.msra.mxu0 0.0
    %2220 = vmatprep.subr.mxu0 0.0
    %v2221 = vand.u32 %v2116, 4294901760
    %v2222 = vsub.f32 %v2116, %v2221
    %v2223 = vand.u32 %v2222, 4294901760
    %v2224 = vsub.f32 %v2222, %v2223
    %v2225 = vand.u32 %v2224, 4294901760
    %2226 = vmatpush1.msra.mxu0 %v2225
    %2227 = vmatprep.subr.mxu0 0.0
    %v2228 = vand.u32 %v2108, 4294901760
    %v2229 = vsub.f32 %v2108, %v2228
    %v2230 = vand.u32 %v2229, 4294901760
    %v2231 = vsub.f32 %v2229, %v2230
    %v2232 = vand.u32 %v2231, 4294901760
    %2233 = vmatpush1.msra.mxu0 %v2232
    %2234 = vmatprep.subr.mxu0 0.0
    %v2235 = vand.u32 %v2107, 4294901760
    %v2236 = vsub.f32 %v2107, %v2235
    %v2237 = vand.u32 %v2236, 4294901760
    %v2238 = vsub.f32 %v2236, %v2237
    %v2239 = vand.u32 %v2238, 4294901760
    %2240 = vmatpush1.msra.mxu0 %v2239
    %2241 = vmatprep.subr.mxu0 0.0
    %v2242 = vand.u32 %v2106, 4294901760
    %v2243 = vsub.f32 %v2106, %v2242
    %v2244 = vand.u32 %v2243, 4294901760
    %v2245 = vsub.f32 %v2243, %v2244
    %v2246 = vand.u32 %v2245, 4294901760
    %2247 = vmatpush1.msra.mxu0 %v2246
    %2248 = vmatprep.subr.mxu0 0.0
    %v2249 = vand.u32 %v2105, 4294901760
    %v2250 = vsub.f32 %v2105, %v2249
    %v2251 = vand.u32 %v2250, 4294901760
    %v2252 = vsub.f32 %v2250, %v2251
    %v2253 = vand.u32 %v2252, 4294901760
    %2254 = vmatpush1.msra.mxu0 %v2253
    %2255 = vmatprep.subr.mxu0 0.0
    %2256 = vmatpush2.msra.mxu0 0.0
    %2257 = vmatprep.subr.mxu0 0.0
    %2258 = vmatpush2.msra.mxu0 0.0
    %2259 = vmatprep.subr.mxu0 0.0
    %2260 = vmatpush2.msra.mxu0 0.0
    %2261 = vmatprep.subr.mxu0 0.0
    %2262 = vmatpush2.msra.mxu0 0.0
    %2263 = vmatprep.subr.mxu0 0.0
    %2264 = vmatpush2.msra.mxu0 0.0
    %2265 = vmatprep.subr.mxu0 0.0
    %2266 = vmatpush2.msra.mxu0 0.0
    %2267 = vmatprep.subr.mxu0 0.0
    %2268 = vmatpush2.msra.mxu0 0.0
    %2269 = vmatprep.subr.mxu0 0.0
    %2270 = vmatpush2.msra.mxu0 0.0
    %2271 = vmatprep.subr.mxu0 0.0
    %2272 = vmatpush2.msra.mxu0 0.0
    %2273 = vmatprep.subr.mxu0 0.0
    %2274 = vmatpush2.msra.mxu0 0.0
    %2275 = vmatprep.subr.mxu0 0.0
    %2276 = vmatpush2.msra.mxu0 0.0
    %2277 = vmatprep.subr.mxu0 0.0
    %2278 = vmatpush2.msra.mxu0 0.0
    %2279 = vmatprep.subr.mxu0 0.0
    %2280 = vmatpush2.msra.mxu0 0.0
    %2281 = vmatprep.subr.mxu0 0.0
    %2282 = vmatpush2.msra.mxu0 0.0
    %2283 = vmatprep.subr.mxu0 0.0
    %2284 = vmatpush2.msra.mxu0 0.0
    %2285 = vmatprep.subr.mxu0 0.0
    %2286 = vmatpush2.msra.mxu0 0.0
    %2287 = vmatprep.mubr.f32.mxu0 0.0
    %v2288 = vand.u32 %v2112, 4294901760
    %2289 = vmatmul.mubr.f32.gmra.mxu0 %v2288
    %v2290 = vpop.f32.mrf.mxu0
    %v2291 = vadd.f32 %v2195, %v2290
    %v2292 = vpop.f32.mrf.mxu0
    %2293 = vdwg.mxu0
    %2294 = vmatprep.subr.mxu0 0.0
    %2295 = vmatpush1.msra.mxu0 0.0
    %2296 = vmatprep.subr.mxu0 0.0
    %2297 = vmatpush1.msra.mxu0 0.0
    %2298 = vmatprep.subr.mxu0 0.0
    %2299 = vmatpush1.msra.mxu0 0.0
    %2300 = vmatprep.subr.mxu0 0.0
    %2301 = vmatpush1.msra.mxu0 0.0
    %2302 = vmatprep.subr.mxu0 0.0
    %2303 = vmatpush1.msra.mxu0 0.0
    %2304 = vmatprep.subr.mxu0 0.0
    %2305 = vmatpush1.msra.mxu0 0.0
    %2306 = vmatprep.subr.mxu0 0.0
    %2307 = vmatpush1.msra.mxu0 0.0
    %2308 = vmatprep.subr.mxu0 0.0
    %2309 = vmatpush1.msra.mxu0 0.0
    %2310 = vmatprep.subr.mxu0 0.0
    %2311 = vmatpush1.msra.mxu0 0.0
    %2312 = vmatprep.subr.mxu0 0.0
    %2313 = vmatpush1.msra.mxu0 0.0
    %2314 = vmatprep.subr.mxu0 0.0
    %2315 = vmatpush1.msra.mxu0 0.0
    %2316 = vmatprep.subr.mxu0 0.0
    %v2317 = vand.u32 %v2116, 4294901760
    %v2318 = vsub.f32 %v2116, %v2317
    %2319 = vmatpush1.msra.mxu0 %v2318
    %2320 = vmatprep.subr.mxu0 0.0
    %v2321 = vand.u32 %v2108, 4294901760
    %v2322 = vsub.f32 %v2108, %v2321
    %2323 = vmatpush1.msra.mxu0 %v2322
    %2324 = vmatprep.subr.mxu0 0.0
    %v2325 = vand.u32 %v2107, 4294901760
    %v2326 = vsub.f32 %v2107, %v2325
    %2327 = vmatpush1.msra.mxu0 %v2326
    %2328 = vmatprep.subr.mxu0 0.0
    %v2329 = vand.u32 %v2106, 4294901760
    %v2330 = vsub.f32 %v2106, %v2329
    %2331 = vmatpush1.msra.mxu0 %v2330
    %2332 = vmatprep.subr.mxu0 0.0
    %v2333 = vand.u32 %v2105, 4294901760
    %v2334 = vsub.f32 %v2105, %v2333
    %2335 = vmatpush1.msra.mxu0 %v2334
    %2336 = vmatprep.subr.mxu0 0.0
    %2337 = vmatpush2.msra.mxu0 0.0
    %2338 = vmatprep.subr.mxu0 0.0
    %2339 = vmatpush2.msra.mxu0 0.0
    %2340 = vmatprep.subr.mxu0 0.0
    %2341 = vmatpush2.msra.mxu0 0.0
    %2342 = vmatprep.subr.mxu0 0.0
    %2343 = vmatpush2.msra.mxu0 0.0
    %2344 = vmatprep.subr.mxu0 0.0
    %2345 = vmatpush2.msra.mxu0 0.0
    %2346 = vmatprep.subr.mxu0 0.0
    %2347 = vmatpush2.msra.mxu0 0.0
    %2348 = vmatprep.subr.mxu0 0.0
    %2349 = vmatpush2.msra.mxu0 0.0
    %2350 = vmatprep.subr.mxu0 0.0
    %2351 = vmatpush2.msra.mxu0 0.0
    %2352 = vmatprep.subr.mxu0 0.0
    %2353 = vmatpush2.msra.mxu0 0.0
    %2354 = vmatprep.subr.mxu0 0.0
    %2355 = vmatpush2.msra.mxu0 0.0
    %2356 = vmatprep.subr.mxu0 0.0
    %2357 = vmatpush2.msra.mxu0 0.0
    %2358 = vmatprep.subr.mxu0 0.0
    %2359 = vmatpush2.msra.mxu0 0.0
    %2360 = vmatprep.subr.mxu0 0.0
    %2361 = vmatpush2.msra.mxu0 0.0
    %2362 = vmatprep.subr.mxu0 0.0
    %2363 = vmatpush2.msra.mxu0 0.0
    %2364 = vmatprep.subr.mxu0 0.0
    %2365 = vmatpush2.msra.mxu0 0.0
    %2366 = vmatprep.subr.mxu0 0.0
    %2367 = vmatpush2.msra.mxu0 0.0
    %2368 = vmatprep.mubr.f32.mxu0 0.0
    %v2369 = vand.u32 %v2112, 4294901760
    %v2370 = vsub.f32 %v2112, %v2369
    %2371 = vmatmul.mubr.f32.gmra.mxu0 %v2370
    %v2372 = vpop.f32.mrf.mxu0
    %v2373 = vadd.f32 %v2291, %v2372
    %v2374 = vpop.f32.mrf.mxu0
    %2375 = vdwg.mxu0
    %2376 = vmatprep.subr.mxu0 0.0
    %2377 = vmatpush1.msra.mxu0 0.0
    %2378 = vmatprep.subr.mxu0 0.0
    %2379 = vmatpush1.msra.mxu0 0.0
    %2380 = vmatprep.subr.mxu0 0.0
    %2381 = vmatpush1.msra.mxu0 0.0
    %2382 = vmatprep.subr.mxu0 0.0
    %2383 = vmatpush1.msra.mxu0 0.0
    %2384 = vmatprep.subr.mxu0 0.0
    %2385 = vmatpush1.msra.mxu0 0.0
    %2386 = vmatprep.subr.mxu0 0.0
    %2387 = vmatpush1.msra.mxu0 0.0
    %2388 = vmatprep.subr.mxu0 0.0
    %2389 = vmatpush1.msra.mxu0 0.0
    %2390 = vmatprep.subr.mxu0 0.0
    %2391 = vmatpush1.msra.mxu0 0.0
    %2392 = vmatprep.subr.mxu0 0.0
    %2393 = vmatpush1.msra.mxu0 0.0
    %2394 = vmatprep.subr.mxu0 0.0
    %2395 = vmatpush1.msra.mxu0 0.0
    %2396 = vmatprep.subr.mxu0 0.0
    %2397 = vmatpush1.msra.mxu0 0.0
    %2398 = vmatprep.subr.mxu0 0.0
    %v2399 = vand.u32 %v2116, 4294901760
    %2400 = vmatpush1.msra.mxu0 %v2399
    %2401 = vmatprep.subr.mxu0 0.0
    %v2402 = vand.u32 %v2108, 4294901760
    %2403 = vmatpush1.msra.mxu0 %v2402
    %2404 = vmatprep.subr.mxu0 0.0
    %v2405 = vand.u32 %v2107, 4294901760
    %2406 = vmatpush1.msra.mxu0 %v2405
    %2407 = vmatprep.subr.mxu0 0.0
    %v2408 = vand.u32 %v2106, 4294901760
    %2409 = vmatpush1.msra.mxu0 %v2408
    %2410 = vmatprep.subr.mxu0 0.0
    %v2411 = vand.u32 %v2105, 4294901760
    %2412 = vmatpush1.msra.mxu0 %v2411
    %2413 = vmatprep.subr.mxu0 0.0
    %2414 = vmatpush2.msra.mxu0 0.0
    %2415 = vmatprep.subr.mxu0 0.0
    %2416 = vmatpush2.msra.mxu0 0.0
    %2417 = vmatprep.subr.mxu0 0.0
    %2418 = vmatpush2.msra.mxu0 0.0
    %2419 = vmatprep.subr.mxu0 0.0
    %2420 = vmatpush2.msra.mxu0 0.0
    %2421 = vmatprep.subr.mxu0 0.0
    %2422 = vmatpush2.msra.mxu0 0.0
    %2423 = vmatprep.subr.mxu0 0.0
    %2424 = vmatpush2.msra.mxu0 0.0
    %2425 = vmatprep.subr.mxu0 0.0
    %2426 = vmatpush2.msra.mxu0 0.0
    %2427 = vmatprep.subr.mxu0 0.0
    %2428 = vmatpush2.msra.mxu0 0.0
    %2429 = vmatprep.subr.mxu0 0.0
    %2430 = vmatpush2.msra.mxu0 0.0
    %2431 = vmatprep.subr.mxu0 0.0
    %2432 = vmatpush2.msra.mxu0 0.0
    %2433 = vmatprep.subr.mxu0 0.0
    %2434 = vmatpush2.msra.mxu0 0.0
    %2435 = vmatprep.subr.mxu0 0.0
    %2436 = vmatpush2.msra.mxu0 0.0
    %2437 = vmatprep.subr.mxu0 0.0
    %2438 = vmatpush2.msra.mxu0 0.0
    %2439 = vmatprep.subr.mxu0 0.0
    %2440 = vmatpush2.msra.mxu0 0.0
    %2441 = vmatprep.subr.mxu0 0.0
    %2442 = vmatpush2.msra.mxu0 0.0
    %2443 = vmatprep.subr.mxu0 0.0
    %2444 = vmatpush2.msra.mxu0 0.0
    %2445 = vmatprep.mubr.f32.mxu0 0.0
    %v2446 = vand.u32 %v2112, 4294901760
    %v2447 = vsub.f32 %v2112, %v2446
    %v2448 = vand.u32 %v2447, 4294901760
    %2449 = vmatmul.mubr.f32.gmra.mxu0 %v2448
    %v2450 = vpop.f32.mrf.mxu0
    %v2451 = vadd.f32 %v2373, %v2450
    %v2452 = vpop.f32.mrf.mxu0
    %2453 = vdwg.mxu0
    %2454 = vmatprep.subr.mxu0 0.0
    %2455 = vmatpush1.msra.mxu0 0.0
    %2456 = vmatprep.subr.mxu0 0.0
    %2457 = vmatpush1.msra.mxu0 0.0
    %2458 = vmatprep.subr.mxu0 0.0
    %2459 = vmatpush1.msra.mxu0 0.0
    %2460 = vmatprep.subr.mxu0 0.0
    %2461 = vmatpush1.msra.mxu0 0.0
    %2462 = vmatprep.subr.mxu0 0.0
    %2463 = vmatpush1.msra.mxu0 0.0
    %2464 = vmatprep.subr.mxu0 0.0
    %2465 = vmatpush1.msra.mxu0 0.0
    %2466 = vmatprep.subr.mxu0 0.0
    %2467 = vmatpush1.msra.mxu0 0.0
    %2468 = vmatprep.subr.mxu0 0.0
    %2469 = vmatpush1.msra.mxu0 0.0
    %2470 = vmatprep.subr.mxu0 0.0
    %2471 = vmatpush1.msra.mxu0 0.0
    %2472 = vmatprep.subr.mxu0 0.0
    %2473 = vmatpush1.msra.mxu0 0.0
    %2474 = vmatprep.subr.mxu0 0.0
    %2475 = vmatpush1.msra.mxu0 0.0
    %2476 = vmatprep.subr.mxu0 0.0
    %v2477 = vand.u32 %v2116, 4294901760
    %v2478 = vsub.f32 %v2116, %v2477
    %v2479 = vand.u32 %v2478, 4294901760
    %2480 = vmatpush1.msra.mxu0 %v2479
    %2481 = vmatprep.subr.mxu0 0.0
    %v2482 = vand.u32 %v2108, 4294901760
    %v2483 = vsub.f32 %v2108, %v2482
    %v2484 = vand.u32 %v2483, 4294901760
    %2485 = vmatpush1.msra.mxu0 %v2484
    %2486 = vmatprep.subr.mxu0 0.0
    %v2487 = vand.u32 %v2107, 4294901760
    %v2488 = vsub.f32 %v2107, %v2487
    %v2489 = vand.u32 %v2488, 4294901760
    %2490 = vmatpush1.msra.mxu0 %v2489
    %2491 = vmatprep.subr.mxu0 0.0
    %v2492 = vand.u32 %v2106, 4294901760
    %v2493 = vsub.f32 %v2106, %v2492
    %v2494 = vand.u32 %v2493, 4294901760
    %2495 = vmatpush1.msra.mxu0 %v2494
    %2496 = vmatprep.subr.mxu0 0.0
    %v2497 = vand.u32 %v2105, 4294901760
    %v2498 = vsub.f32 %v2105, %v2497
    %v2499 = vand.u32 %v2498, 4294901760
    %2500 = vmatpush1.msra.mxu0 %v2499
    %2501 = vmatprep.subr.mxu0 0.0
    %2502 = vmatpush2.msra.mxu0 0.0
    %2503 = vmatprep.subr.mxu0 0.0
    %2504 = vmatpush2.msra.mxu0 0.0
    %2505 = vmatprep.subr.mxu0 0.0
    %2506 = vmatpush2.msra.mxu0 0.0
    %2507 = vmatprep.subr.mxu0 0.0
    %2508 = vmatpush2.msra.mxu0 0.0
    %2509 = vmatprep.subr.mxu0 0.0
    %2510 = vmatpush2.msra.mxu0 0.0
    %2511 = vmatprep.subr.mxu0 0.0
    %2512 = vmatpush2.msra.mxu0 0.0
    %2513 = vmatprep.subr.mxu0 0.0
    %2514 = vmatpush2.msra.mxu0 0.0
    %2515 = vmatprep.subr.mxu0 0.0
    %2516 = vmatpush2.msra.mxu0 0.0
    %2517 = vmatprep.subr.mxu0 0.0
    %2518 = vmatpush2.msra.mxu0 0.0
    %2519 = vmatprep.subr.mxu0 0.0
    %2520 = vmatpush2.msra.mxu0 0.0
    %2521 = vmatprep.subr.mxu0 0.0
    %2522 = vmatpush2.msra.mxu0 0.0
    %2523 = vmatprep.subr.mxu0 0.0
    %2524 = vmatpush2.msra.mxu0 0.0
    %2525 = vmatprep.subr.mxu0 0.0
    %2526 = vmatpush2.msra.mxu0 0.0
    %2527 = vmatprep.subr.mxu0 0.0
    %2528 = vmatpush2.msra.mxu0 0.0
    %2529 = vmatprep.subr.mxu0 0.0
    %2530 = vmatpush2.msra.mxu0 0.0
    %2531 = vmatprep.subr.mxu0 0.0
    %2532 = vmatpush2.msra.mxu0 0.0
    %2533 = vmatprep.mubr.f32.mxu0 0.0
    %v2534 = vand.u32 %v2112, 4294901760
    %2535 = vmatmul.mubr.f32.gmra.mxu0 %v2534
    %v2536 = vpop.f32.mrf.mxu0
    %v2537 = vadd.f32 %v2451, %v2536
    %v2538 = vpop.f32.mrf.mxu0
    %2539 = vdwg.mxu0
    %2540 = vmatprep.subr.mxu0 0.0
    %2541 = vmatpush1.msra.mxu0 0.0
    %2542 = vmatprep.subr.mxu0 0.0
    %2543 = vmatpush1.msra.mxu0 0.0
    %2544 = vmatprep.subr.mxu0 0.0
    %2545 = vmatpush1.msra.mxu0 0.0
    %2546 = vmatprep.subr.mxu0 0.0
    %2547 = vmatpush1.msra.mxu0 0.0
    %2548 = vmatprep.subr.mxu0 0.0
    %2549 = vmatpush1.msra.mxu0 0.0
    %2550 = vmatprep.subr.mxu0 0.0
    %2551 = vmatpush1.msra.mxu0 0.0
    %2552 = vmatprep.subr.mxu0 0.0
    %2553 = vmatpush1.msra.mxu0 0.0
    %2554 = vmatprep.subr.mxu0 0.0
    %2555 = vmatpush1.msra.mxu0 0.0
    %2556 = vmatprep.subr.mxu0 0.0
    %2557 = vmatpush1.msra.mxu0 0.0
    %2558 = vmatprep.subr.mxu0 0.0
    %2559 = vmatpush1.msra.mxu0 0.0
    %2560 = vmatprep.subr.mxu0 0.0
    %2561 = vmatpush1.msra.mxu0 0.0
    %2562 = vmatprep.subr.mxu0 0.0
    %v2563 = vand.u32 %v2116, 4294901760
    %2564 = vmatpush1.msra.mxu0 %v2563
    %2565 = vmatprep.subr.mxu0 0.0
    %v2566 = vand.u32 %v2108, 4294901760
    %2567 = vmatpush1.msra.mxu0 %v2566
    %2568 = vmatprep.subr.mxu0 0.0
    %v2569 = vand.u32 %v2107, 4294901760
    %2570 = vmatpush1.msra.mxu0 %v2569
    %2571 = vmatprep.subr.mxu0 0.0
    %v2572 = vand.u32 %v2106, 4294901760
    %2573 = vmatpush1.msra.mxu0 %v2572
    %2574 = vmatprep.subr.mxu0 0.0
    %v2575 = vand.u32 %v2105, 4294901760
    %2576 = vmatpush1.msra.mxu0 %v2575
    %2577 = vmatprep.subr.mxu0 0.0
    %2578 = vmatpush2.msra.mxu0 0.0
    %2579 = vmatprep.subr.mxu0 0.0
    %2580 = vmatpush2.msra.mxu0 0.0
    %2581 = vmatprep.subr.mxu0 0.0
    %2582 = vmatpush2.msra.mxu0 0.0
    %2583 = vmatprep.subr.mxu0 0.0
    %2584 = vmatpush2.msra.mxu0 0.0
    %2585 = vmatprep.subr.mxu0 0.0
    %2586 = vmatpush2.msra.mxu0 0.0
    %2587 = vmatprep.subr.mxu0 0.0
    %2588 = vmatpush2.msra.mxu0 0.0
    %2589 = vmatprep.subr.mxu0 0.0
    %2590 = vmatpush2.msra.mxu0 0.0
    %2591 = vmatprep.subr.mxu0 0.0
    %2592 = vmatpush2.msra.mxu0 0.0
    %2593 = vmatprep.subr.mxu0 0.0
    %2594 = vmatpush2.msra.mxu0 0.0
    %2595 = vmatprep.subr.mxu0 0.0
    %2596 = vmatpush2.msra.mxu0 0.0
    %2597 = vmatprep.subr.mxu0 0.0
    %2598 = vmatpush2.msra.mxu0 0.0
    %2599 = vmatprep.subr.mxu0 0.0
    %2600 = vmatpush2.msra.mxu0 0.0
    %2601 = vmatprep.subr.mxu0 0.0
    %2602 = vmatpush2.msra.mxu0 0.0
    %2603 = vmatprep.subr.mxu0 0.0
    %2604 = vmatpush2.msra.mxu0 0.0
    %2605 = vmatprep.subr.mxu0 0.0
    %2606 = vmatpush2.msra.mxu0 0.0
    %2607 = vmatprep.subr.mxu0 0.0
    %2608 = vmatpush2.msra.mxu0 0.0
    %2609 = vmatprep.mubr.f32.mxu0 0.0
    %v2610 = vand.u32 %v2112, 4294901760
    %2611 = vmatmul.mubr.f32.gmra.mxu0 %v2610
    %v2612 = vpop.f32.mrf.mxu0
    %v2613 = vadd.f32 %v2537, %v2612
    %v2614 = vpop.f32.mrf.mxu0
    %2615 = vdwg.mxu0
    %v2616 = vld [vmem:[%s6] sm:$0xff]
    %v2617 = vld [vmem:[%s6 + $0x8] sm:$0xff]
    %v2618 = vld [vmem:[%s6 + $0x10] sm:$0xff]
    %v2619 = vld [vmem:[%s6 + $0x18] sm:$0xff]
    %v2620 = vld [vmem:[%s6 + $0x20] sm:$0xff]
    %v2621 = vld [vmem:[%s6 + $0x28] sm:$0xff]
    %v2622 = vld [vmem:[%s6 + $0x30] sm:$0x1]
    %v2623 = vld [vmem:[%s6 + $0x38] sm:$0x1]
    %v2624 = vld [vmem:[%s6 + $0x40] sm:$0x1]
    %vm2625 = vcmask 138240
    %v2627 = vsel %vm2625, %v46, 0
    %vm2629 = vcmask 1040384
    %v2631 = vsel %vm2629, %v2622, 0
    %v2634 = vsel %vm2629, %v2623, 0
    %v2637 = vsel %vm2629, %v2624, 0
    %2639 = vmatprep.subr.mxu0 0.0
    %2640 = vmatpush1.msra.mxu0 0.0
    %2641 = vmatprep.subr.mxu0 0.0
    %2642 = vmatpush1.msra.mxu0 0.0
    %2643 = vmatprep.subr.mxu0 0.0
    %2644 = vmatpush1.msra.mxu0 0.0
    %2645 = vmatprep.subr.mxu0 0.0
    %2646 = vmatpush1.msra.mxu0 0.0
    %2647 = vmatprep.subr.mxu0 0.0
    %2648 = vmatpush1.msra.mxu0 0.0
    %2649 = vmatprep.subr.mxu0 0.0
    %2650 = vmatpush1.msra.mxu0 0.0
    %2651 = vmatprep.subr.mxu0 0.0
    %2652 = vmatpush1.msra.mxu0 0.0
    %2653 = vmatprep.subr.mxu0 0.0
    %2654 = vmatpush1.msra.mxu0 0.0
    %2655 = vmatprep.subr.mxu0 0.0
    %2656 = vmatpush1.msra.mxu0 0.0
    %2657 = vmatprep.subr.mxu0 0.0
    %2658 = vmatpush1.msra.mxu0 0.0
    %2659 = vmatprep.subr.mxu0 0.0
    %2660 = vmatpush1.msra.mxu0 0.0
    %2661 = vmatprep.subr.mxu0 0.0
    %2662 = vmatpush1.msra.mxu0 0.0
    %2663 = vmatprep.subr.mxu0 0.0
    %2664 = vmatpush1.msra.mxu0 0.0
    %v2665 = vand.u32 %v2634, 4294901760
    %2666 = vmatprep.subr.mxu0 %v2665
    %v2667 = vand.u32 %v2631, 4294901760
    %2668 = vmatpush1.msra.mxu0 %v2667
    %v2669 = vand.u32 %v2620, 4294901760
    %2670 = vmatprep.subr.mxu0 %v2669
    %v2671 = vand.u32 %v2619, 4294901760
    %2672 = vmatpush1.msra.mxu0 %v2671
    %v2673 = vand.u32 %v2617, 4294901760
    %2674 = vmatprep.subr.mxu0 %v2673
    %v2675 = vand.u32 %v2616, 4294901760
    %2676 = vmatpush1.msra.mxu0 %v2675
    %2677 = vmatprep.subr.mxu0 0.0
    %2678 = vmatpush2.msra.mxu0 0.0
    %2679 = vmatprep.subr.mxu0 0.0
    %2680 = vmatpush2.msra.mxu0 0.0
    %2681 = vmatprep.subr.mxu0 0.0
    %2682 = vmatpush2.msra.mxu0 0.0
    %2683 = vmatprep.subr.mxu0 0.0
    %2684 = vmatpush2.msra.mxu0 0.0
    %2685 = vmatprep.subr.mxu0 0.0
    %2686 = vmatpush2.msra.mxu0 0.0
    %2687 = vmatprep.subr.mxu0 0.0
    %2688 = vmatpush2.msra.mxu0 0.0
    %2689 = vmatprep.subr.mxu0 0.0
    %2690 = vmatpush2.msra.mxu0 0.0
    %2691 = vmatprep.subr.mxu0 0.0
    %2692 = vmatpush2.msra.mxu0 0.0
    %2693 = vmatprep.subr.mxu0 0.0
    %2694 = vmatpush2.msra.mxu0 0.0
    %2695 = vmatprep.subr.mxu0 0.0
    %2696 = vmatpush2.msra.mxu0 0.0
    %2697 = vmatprep.subr.mxu0 0.0
    %2698 = vmatpush2.msra.mxu0 0.0
    %2699 = vmatprep.subr.mxu0 0.0
    %2700 = vmatpush2.msra.mxu0 0.0
    %2701 = vmatprep.subr.mxu0 0.0
    %2702 = vmatpush2.msra.mxu0 0.0
    %2703 = vmatprep.subr.mxu0 0.0
    %2704 = vmatpush2.msra.mxu0 0.0
    %2705 = vmatprep.subr.mxu0 0.0
    %2706 = vmatpush2.msra.mxu0 0.0
    %2707 = vmatprep.subr.mxu0 0.0
    %2708 = vmatpush2.msra.mxu0 0.0
    %2709 = vmatprep.mubr.f32.mxu0 0.0
    %v2710 = vand.u32 %v2627, 4294901760
    %v2711 = vsub.f32 %v2627, %v2710
    %v2712 = vand.u32 %v2711, 4294901760
    %v2713 = vsub.f32 %v2711, %v2712
    %v2714 = vand.u32 %v2713, 4294901760
    %2715 = vmatmul.mubr.f32.gmra.mxu0 %v2714
    %v2716 = vpop.f32.mrf.mxu0
    %v2717 = vadd.f32 0.0, %v2716
    %v2718 = vpop.f32.mrf.mxu0
    %v2719 = vadd.f32 0.0, %v2718
    %2720 = vdwg.mxu0
    %2721 = vmatprep.subr.mxu0 0.0
    %2722 = vmatpush1.msra.mxu0 0.0
    %2723 = vmatprep.subr.mxu0 0.0
    %2724 = vmatpush1.msra.mxu0 0.0
    %2725 = vmatprep.subr.mxu0 0.0
    %2726 = vmatpush1.msra.mxu0 0.0
    %2727 = vmatprep.subr.mxu0 0.0
    %2728 = vmatpush1.msra.mxu0 0.0
    %2729 = vmatprep.subr.mxu0 0.0
    %2730 = vmatpush1.msra.mxu0 0.0
    %2731 = vmatprep.subr.mxu0 0.0
    %2732 = vmatpush1.msra.mxu0 0.0
    %2733 = vmatprep.subr.mxu0 0.0
    %2734 = vmatpush1.msra.mxu0 0.0
    %2735 = vmatprep.subr.mxu0 0.0
    %2736 = vmatpush1.msra.mxu0 0.0
    %2737 = vmatprep.subr.mxu0 0.0
    %2738 = vmatpush1.msra.mxu0 0.0
    %2739 = vmatprep.subr.mxu0 0.0
    %2740 = vmatpush1.msra.mxu0 0.0
    %2741 = vmatprep.subr.mxu0 0.0
    %2742 = vmatpush1.msra.mxu0 0.0
    %2743 = vmatprep.subr.mxu0 0.0
    %2744 = vmatpush1.msra.mxu0 0.0
    %2745 = vmatprep.subr.mxu0 0.0
    %2746 = vmatpush1.msra.mxu0 0.0
    %v2747 = vand.u32 %v2634, 4294901760
    %v2748 = vsub.f32 %v2634, %v2747
    %v2749 = vand.u32 %v2748, 4294901760
    %v2750 = vsub.f32 %v2748, %v2749
    %v2751 = vand.u32 %v2750, 4294901760
    %2752 = vmatprep.subr.mxu0 %v2751
    %v2753 = vand.u32 %v2631, 4294901760
    %v2754 = vsub.f32 %v2631, %v2753
    %v2755 = vand.u32 %v2754, 4294901760
    %v2756 = vsub.f32 %v2754, %v2755
    %v2757 = vand.u32 %v2756, 4294901760
    %2758 = vmatpush1.msra.mxu0 %v2757
    %v2759 = vand.u32 %v2620, 4294901760
    %v2760 = vsub.f32 %v2620, %v2759
    %v2761 = vand.u32 %v2760, 4294901760
    %v2762 = vsub.f32 %v2760, %v2761
    %v2763 = vand.u32 %v2762, 4294901760
    %2764 = vmatprep.subr.mxu0 %v2763
    %v2765 = vand.u32 %v2619, 4294901760
    %v2766 = vsub.f32 %v2619, %v2765
    %v2767 = vand.u32 %v2766, 4294901760
    %v2768 = vsub.f32 %v2766, %v2767
    %v2769 = vand.u32 %v2768, 4294901760
    %2770 = vmatpush1.msra.mxu0 %v2769
    %v2771 = vand.u32 %v2617, 4294901760
    %v2772 = vsub.f32 %v2617, %v2771
    %v2773 = vand.u32 %v2772, 4294901760
    %v2774 = vsub.f32 %v2772, %v2773
    %v2775 = vand.u32 %v2774, 4294901760
    %2776 = vmatprep.subr.mxu0 %v2775
    %v2777 = vand.u32 %v2616, 4294901760
    %v2778 = vsub.f32 %v2616, %v2777
    %v2779 = vand.u32 %v2778, 4294901760
    %v2780 = vsub.f32 %v2778, %v2779
    %v2781 = vand.u32 %v2780, 4294901760
    %2782 = vmatpush1.msra.mxu0 %v2781
    %2783 = vmatprep.subr.mxu0 0.0
    %2784 = vmatpush2.msra.mxu0 0.0
    %2785 = vmatprep.subr.mxu0 0.0
    %2786 = vmatpush2.msra.mxu0 0.0
    %2787 = vmatprep.subr.mxu0 0.0
    %2788 = vmatpush2.msra.mxu0 0.0
    %2789 = vmatprep.subr.mxu0 0.0
    %2790 = vmatpush2.msra.mxu0 0.0
    %2791 = vmatprep.subr.mxu0 0.0
    %2792 = vmatpush2.msra.mxu0 0.0
    %2793 = vmatprep.subr.mxu0 0.0
    %2794 = vmatpush2.msra.mxu0 0.0
    %2795 = vmatprep.subr.mxu0 0.0
    %2796 = vmatpush2.msra.mxu0 0.0
    %2797 = vmatprep.subr.mxu0 0.0
    %2798 = vmatpush2.msra.mxu0 0.0
    %2799 = vmatprep.subr.mxu0 0.0
    %2800 = vmatpush2.msra.mxu0 0.0
    %2801 = vmatprep.subr.mxu0 0.0
    %2802 = vmatpush2.msra.mxu0 0.0
    %2803 = vmatprep.subr.mxu0 0.0
    %2804 = vmatpush2.msra.mxu0 0.0
    %2805 = vmatprep.subr.mxu0 0.0
    %2806 = vmatpush2.msra.mxu0 0.0
    %2807 = vmatprep.subr.mxu0 0.0
    %2808 = vmatpush2.msra.mxu0 0.0
    %2809 = vmatprep.subr.mxu0 0.0
    %2810 = vmatpush2.msra.mxu0 0.0
    %2811 = vmatprep.subr.mxu0 0.0
    %2812 = vmatpush2.msra.mxu0 0.0
    %2813 = vmatprep.subr.mxu0 0.0
    %2814 = vmatpush2.msra.mxu0 0.0
    %2815 = vmatprep.mubr.f32.mxu0 0.0
    %v2816 = vand.u32 %v2627, 4294901760
    %2817 = vmatmul.mubr.f32.gmra.mxu0 %v2816
    %v2818 = vpop.f32.mrf.mxu0
    %v2819 = vadd.f32 %v2717, %v2818
    %v2820 = vpop.f32.mrf.mxu0
    %v2821 = vadd.f32 %v2719, %v2820
    %2822 = vdwg.mxu0
    %2823 = vmatprep.subr.mxu0 0.0
    %2824 = vmatpush1.msra.mxu0 0.0
    %2825 = vmatprep.subr.mxu0 0.0
    %2826 = vmatpush1.msra.mxu0 0.0
    %2827 = vmatprep.subr.mxu0 0.0
    %2828 = vmatpush1.msra.mxu0 0.0
    %2829 = vmatprep.subr.mxu0 0.0
    %2830 = vmatpush1.msra.mxu0 0.0
    %2831 = vmatprep.subr.mxu0 0.0
    %2832 = vmatpush1.msra.mxu0 0.0
    %2833 = vmatprep.subr.mxu0 0.0
    %2834 = vmatpush1.msra.mxu0 0.0
    %2835 = vmatprep.subr.mxu0 0.0
    %2836 = vmatpush1.msra.mxu0 0.0
    %2837 = vmatprep.subr.mxu0 0.0
    %2838 = vmatpush1.msra.mxu0 0.0
    %2839 = vmatprep.subr.mxu0 0.0
    %2840 = vmatpush1.msra.mxu0 0.0
    %2841 = vmatprep.subr.mxu0 0.0
    %2842 = vmatpush1.msra.mxu0 0.0
    %2843 = vmatprep.subr.mxu0 0.0
    %2844 = vmatpush1.msra.mxu0 0.0
    %2845 = vmatprep.subr.mxu0 0.0
    %2846 = vmatpush1.msra.mxu0 0.0
    %2847 = vmatprep.subr.mxu0 0.0
    %2848 = vmatpush1.msra.mxu0 0.0
    %v2849 = vand.u32 %v2634, 4294901760
    %v2850 = vsub.f32 %v2634, %v2849
    %2851 = vmatprep.subr.mxu0 %v2850
    %v2852 = vand.u32 %v2631, 4294901760
    %v2853 = vsub.f32 %v2631, %v2852
    %2854 = vmatpush1.msra.mxu0 %v2853
    %v2855 = vand.u32 %v2620, 4294901760
    %v2856 = vsub.f32 %v2620, %v2855
    %2857 = vmatprep.subr.mxu0 %v2856
    %v2858 = vand.u32 %v2619, 4294901760
    %v2859 = vsub.f32 %v2619, %v2858
    %2860 = vmatpush1.msra.mxu0 %v2859
    %v2861 = vand.u32 %v2617, 4294901760
    %v2862 = vsub.f32 %v2617, %v2861
    %2863 = vmatprep.subr.mxu0 %v2862
    %v2864 = vand.u32 %v2616, 4294901760
    %v2865 = vsub.f32 %v2616, %v2864
    %2866 = vmatpush1.msra.mxu0 %v2865
    %2867 = vmatprep.subr.mxu0 0.0
    %2868 = vmatpush2.msra.mxu0 0.0
    %2869 = vmatprep.subr.mxu0 0.0
    %2870 = vmatpush2.msra.mxu0 0.0
    %2871 = vmatprep.subr.mxu0 0.0
    %2872 = vmatpush2.msra.mxu0 0.0
    %2873 = vmatprep.subr.mxu0 0.0
    %2874 = vmatpush2.msra.mxu0 0.0
    %2875 = vmatprep.subr.mxu0 0.0
    %2876 = vmatpush2.msra.mxu0 0.0
    %2877 = vmatprep.subr.mxu0 0.0
    %2878 = vmatpush2.msra.mxu0 0.0
    %2879 = vmatprep.subr.mxu0 0.0
    %2880 = vmatpush2.msra.mxu0 0.0
    %2881 = vmatprep.subr.mxu0 0.0
    %2882 = vmatpush2.msra.mxu0 0.0
    %2883 = vmatprep.subr.mxu0 0.0
    %2884 = vmatpush2.msra.mxu0 0.0
    %2885 = vmatprep.subr.mxu0 0.0
    %2886 = vmatpush2.msra.mxu0 0.0
    %2887 = vmatprep.subr.mxu0 0.0
    %2888 = vmatpush2.msra.mxu0 0.0
    %2889 = vmatprep.subr.mxu0 0.0
    %2890 = vmatpush2.msra.mxu0 0.0
    %2891 = vmatprep.subr.mxu0 0.0
    %2892 = vmatpush2.msra.mxu0 0.0
    %2893 = vmatprep.subr.mxu0 0.0
    %2894 = vmatpush2.msra.mxu0 0.0
    %2895 = vmatprep.subr.mxu0 0.0
    %2896 = vmatpush2.msra.mxu0 0.0
    %2897 = vmatprep.subr.mxu0 0.0
    %2898 = vmatpush2.msra.mxu0 0.0
    %2899 = vmatprep.mubr.f32.mxu0 0.0
    %v2900 = vand.u32 %v2627, 4294901760
    %v2901 = vsub.f32 %v2627, %v2900
    %2902 = vmatmul.mubr.f32.gmra.mxu0 %v2901
    %v2903 = vpop.f32.mrf.mxu0
    %v2904 = vadd.f32 %v2819, %v2903
    %v2905 = vpop.f32.mrf.mxu0
    %v2906 = vadd.f32 %v2821, %v2905
    %2907 = vdwg.mxu0
    %2908 = vmatprep.subr.mxu0 0.0
    %2909 = vmatpush1.msra.mxu0 0.0
    %2910 = vmatprep.subr.mxu0 0.0
    %2911 = vmatpush1.msra.mxu0 0.0
    %2912 = vmatprep.subr.mxu0 0.0
    %2913 = vmatpush1.msra.mxu0 0.0
    %2914 = vmatprep.subr.mxu0 0.0
    %2915 = vmatpush1.msra.mxu0 0.0
    %2916 = vmatprep.subr.mxu0 0.0
    %2917 = vmatpush1.msra.mxu0 0.0
    %2918 = vmatprep.subr.mxu0 0.0
    %2919 = vmatpush1.msra.mxu0 0.0
    %2920 = vmatprep.subr.mxu0 0.0
    %2921 = vmatpush1.msra.mxu0 0.0
    %2922 = vmatprep.subr.mxu0 0.0
    %2923 = vmatpush1.msra.mxu0 0.0
    %2924 = vmatprep.subr.mxu0 0.0
    %2925 = vmatpush1.msra.mxu0 0.0
    %2926 = vmatprep.subr.mxu0 0.0
    %2927 = vmatpush1.msra.mxu0 0.0
    %2928 = vmatprep.subr.mxu0 0.0
    %2929 = vmatpush1.msra.mxu0 0.0
    %2930 = vmatprep.subr.mxu0 0.0
    %2931 = vmatpush1.msra.mxu0 0.0
    %2932 = vmatprep.subr.mxu0 0.0
    %2933 = vmatpush1.msra.mxu0 0.0
    %v2934 = vand.u32 %v2634, 4294901760
    %2935 = vmatprep.subr.mxu0 %v2934
    %v2936 = vand.u32 %v2631, 4294901760
    %2937 = vmatpush1.msra.mxu0 %v2936
    %v2938 = vand.u32 %v2620, 4294901760
    %2939 = vmatprep.subr.mxu0 %v2938
    %v2940 = vand.u32 %v2619, 4294901760
    %2941 = vmatpush1.msra.mxu0 %v2940
    %v2942 = vand.u32 %v2617, 4294901760
    %2943 = vmatprep.subr.mxu0 %v2942
    %v2944 = vand.u32 %v2616, 4294901760
    %2945 = vmatpush1.msra.mxu0 %v2944
    %2946 = vmatprep.subr.mxu0 0.0
    %2947 = vmatpush2.msra.mxu0 0.0
    %2948 = vmatprep.subr.mxu0 0.0
    %2949 = vmatpush2.msra.mxu0 0.0
    %2950 = vmatprep.subr.mxu0 0.0
    %2951 = vmatpush2.msra.mxu0 0.0
    %2952 = vmatprep.subr.mxu0 0.0
    %2953 = vmatpush2.msra.mxu0 0.0
    %2954 = vmatprep.subr.mxu0 0.0
    %2955 = vmatpush2.msra.mxu0 0.0
    %2956 = vmatprep.subr.mxu0 0.0
    %2957 = vmatpush2.msra.mxu0 0.0
    %2958 = vmatprep.subr.mxu0 0.0
    %2959 = vmatpush2.msra.mxu0 0.0
    %2960 = vmatprep.subr.mxu0 0.0
    %2961 = vmatpush2.msra.mxu0 0.0
    %2962 = vmatprep.subr.mxu0 0.0
    %2963 = vmatpush2.msra.mxu0 0.0
    %2964 = vmatprep.subr.mxu0 0.0
    %2965 = vmatpush2.msra.mxu0 0.0
    %2966 = vmatprep.subr.mxu0 0.0
    %2967 = vmatpush2.msra.mxu0 0.0
    %2968 = vmatprep.subr.mxu0 0.0
    %2969 = vmatpush2.msra.mxu0 0.0
    %2970 = vmatprep.subr.mxu0 0.0
    %2971 = vmatpush2.msra.mxu0 0.0
    %2972 = vmatprep.subr.mxu0 0.0
    %2973 = vmatpush2.msra.mxu0 0.0
    %2974 = vmatprep.subr.mxu0 0.0
    %2975 = vmatpush2.msra.mxu0 0.0
    %2976 = vmatprep.subr.mxu0 0.0
    %2977 = vmatpush2.msra.mxu0 0.0
    %2978 = vmatprep.mubr.f32.mxu0 0.0
    %v2979 = vand.u32 %v2627, 4294901760
    %v2980 = vsub.f32 %v2627, %v2979
    %v2981 = vand.u32 %v2980, 4294901760
    %2982 = vmatmul.mubr.f32.gmra.mxu0 %v2981
    %v2983 = vpop.f32.mrf.mxu0
    %v2984 = vadd.f32 %v2904, %v2983
    %v2985 = vpop.f32.mrf.mxu0
    %v2986 = vadd.f32 %v2906, %v2985
    %2987 = vdwg.mxu0
    %2988 = vmatprep.subr.mxu0 0.0
    %2989 = vmatpush1.msra.mxu0 0.0
    %2990 = vmatprep.subr.mxu0 0.0
    %2991 = vmatpush1.msra.mxu0 0.0
    %2992 = vmatprep.subr.mxu0 0.0
    %2993 = vmatpush1.msra.mxu0 0.0
    %2994 = vmatprep.subr.mxu0 0.0
    %2995 = vmatpush1.msra.mxu0 0.0
    %2996 = vmatprep.subr.mxu0 0.0
    %2997 = vmatpush1.msra.mxu0 0.0
    %2998 = vmatprep.subr.mxu0 0.0
    %2999 = vmatpush1.msra.mxu0 0.0
    %3000 = vmatprep.subr.mxu0 0.0
    %3001 = vmatpush1.msra.mxu0 0.0
    %3002 = vmatprep.subr.mxu0 0.0
    %3003 = vmatpush1.msra.mxu0 0.0
    %3004 = vmatprep.subr.mxu0 0.0
    %3005 = vmatpush1.msra.mxu0 0.0
    %3006 = vmatprep.subr.mxu0 0.0
    %3007 = vmatpush1.msra.mxu0 0.0
    %3008 = vmatprep.subr.mxu0 0.0
    %3009 = vmatpush1.msra.mxu0 0.0
    %3010 = vmatprep.subr.mxu0 0.0
    %3011 = vmatpush1.msra.mxu0 0.0
    %3012 = vmatprep.subr.mxu0 0.0
    %3013 = vmatpush1.msra.mxu0 0.0
    %v3014 = vand.u32 %v2634, 4294901760
    %v3015 = vsub.f32 %v2634, %v3014
    %v3016 = vand.u32 %v3015, 4294901760
    %3017 = vmatprep.subr.mxu0 %v3016
    %v3018 = vand.u32 %v2631, 4294901760
    %v3019 = vsub.f32 %v2631, %v3018
    %v3020 = vand.u32 %v3019, 4294901760
    %3021 = vmatpush1.msra.mxu0 %v3020
    %v3022 = vand.u32 %v2620, 4294901760
    %v3023 = vsub.f32 %v2620, %v3022
    %v3024 = vand.u32 %v3023, 4294901760
    %3025 = vmatprep.subr.mxu0 %v3024
    %v3026 = vand.u32 %v2619, 4294901760
    %v3027 = vsub.f32 %v2619, %v3026
    %v3028 = vand.u32 %v3027, 4294901760
    %3029 = vmatpush1.msra.mxu0 %v3028
    %v3030 = vand.u32 %v2617, 4294901760
    %v3031 = vsub.f32 %v2617, %v3030
    %v3032 = vand.u32 %v3031, 4294901760
    %3033 = vmatprep.subr.mxu0 %v3032
    %v3034 = vand.u32 %v2616, 4294901760
    %v3035 = vsub.f32 %v2616, %v3034
    %v3036 = vand.u32 %v3035, 4294901760
    %3037 = vmatpush1.msra.mxu0 %v3036
    %3038 = vmatprep.subr.mxu0 0.0
    %3039 = vmatpush2.msra.mxu0 0.0
    %3040 = vmatprep.subr.mxu0 0.0
    %3041 = vmatpush2.msra.mxu0 0.0
    %3042 = vmatprep.subr.mxu0 0.0
    %3043 = vmatpush2.msra.mxu0 0.0
    %3044 = vmatprep.subr.mxu0 0.0
    %3045 = vmatpush2.msra.mxu0 0.0
    %3046 = vmatprep.subr.mxu0 0.0
    %3047 = vmatpush2.msra.mxu0 0.0
    %3048 = vmatprep.subr.mxu0 0.0
    %3049 = vmatpush2.msra.mxu0 0.0
    %3050 = vmatprep.subr.mxu0 0.0
    %3051 = vmatpush2.msra.mxu0 0.0
    %3052 = vmatprep.subr.mxu0 0.0
    %3053 = vmatpush2.msra.mxu0 0.0
    %3054 = vmatprep.subr.mxu0 0.0
    %3055 = vmatpush2.msra.mxu0 0.0
    %3056 = vmatprep.subr.mxu0 0.0
    %3057 = vmatpush2.msra.mxu0 0.0
    %3058 = vmatprep.subr.mxu0 0.0
    %3059 = vmatpush2.msra.mxu0 0.0
    %3060 = vmatprep.subr.mxu0 0.0
    %3061 = vmatpush2.msra.mxu0 0.0
    %3062 = vmatprep.subr.mxu0 0.0
    %3063 = vmatpush2.msra.mxu0 0.0
    %3064 = vmatprep.subr.mxu0 0.0
    %3065 = vmatpush2.msra.mxu0 0.0
    %3066 = vmatprep.subr.mxu0 0.0
    %3067 = vmatpush2.msra.mxu0 0.0
    %3068 = vmatprep.subr.mxu0 0.0
    %3069 = vmatpush2.msra.mxu0 0.0
    %3070 = vmatprep.mubr.f32.mxu0 0.0
    %v3071 = vand.u32 %v2627, 4294901760
    %3072 = vmatmul.mubr.f32.gmra.mxu0 %v3071
    %v3073 = vpop.f32.mrf.mxu0
    %v3074 = vadd.f32 %v2984, %v3073
    %v3075 = vpop.f32.mrf.mxu0
    %v3076 = vadd.f32 %v2986, %v3075
    %3077 = vdwg.mxu0
    %3078 = vmatprep.subr.mxu0 0.0
    %3079 = vmatpush1.msra.mxu0 0.0
    %3080 = vmatprep.subr.mxu0 0.0
    %3081 = vmatpush1.msra.mxu0 0.0
    %3082 = vmatprep.subr.mxu0 0.0
    %3083 = vmatpush1.msra.mxu0 0.0
    %3084 = vmatprep.subr.mxu0 0.0
    %3085 = vmatpush1.msra.mxu0 0.0
    %3086 = vmatprep.subr.mxu0 0.0
    %3087 = vmatpush1.msra.mxu0 0.0
    %3088 = vmatprep.subr.mxu0 0.0
    %3089 = vmatpush1.msra.mxu0 0.0
    %3090 = vmatprep.subr.mxu0 0.0
    %3091 = vmatpush1.msra.mxu0 0.0
    %3092 = vmatprep.subr.mxu0 0.0
    %3093 = vmatpush1.msra.mxu0 0.0
    %3094 = vmatprep.subr.mxu0 0.0
    %3095 = vmatpush1.msra.mxu0 0.0
    %3096 = vmatprep.subr.mxu0 0.0
    %3097 = vmatpush1.msra.mxu0 0.0
    %3098 = vmatprep.subr.mxu0 0.0
    %3099 = vmatpush1.msra.mxu0 0.0
    %3100 = vmatprep.subr.mxu0 0.0
    %3101 = vmatpush1.msra.mxu0 0.0
    %3102 = vmatprep.subr.mxu0 0.0
    %3103 = vmatpush1.msra.mxu0 0.0
    %v3104 = vand.u32 %v2634, 4294901760
    %3105 = vmatprep.subr.mxu0 %v3104
    %v3106 = vand.u32 %v2631, 4294901760
    %3107 = vmatpush1.msra.mxu0 %v3106
    %v3108 = vand.u32 %v2620, 4294901760
    %3109 = vmatprep.subr.mxu0 %v3108
    %v3110 = vand.u32 %v2619, 4294901760
    %3111 = vmatpush1.msra.mxu0 %v3110
    %v3112 = vand.u32 %v2617, 4294901760
    %3113 = vmatprep.subr.mxu0 %v3112
    %v3114 = vand.u32 %v2616, 4294901760
    %3115 = vmatpush1.msra.mxu0 %v3114
    %3116 = vmatprep.subr.mxu0 0.0
    %3117 = vmatpush2.msra.mxu0 0.0
    %3118 = vmatprep.subr.mxu0 0.0
    %3119 = vmatpush2.msra.mxu0 0.0
    %3120 = vmatprep.subr.mxu0 0.0
    %3121 = vmatpush2.msra.mxu0 0.0
    %3122 = vmatprep.subr.mxu0 0.0
    %3123 = vmatpush2.msra.mxu0 0.0
    %3124 = vmatprep.subr.mxu0 0.0
    %3125 = vmatpush2.msra.mxu0 0.0
    %3126 = vmatprep.subr.mxu0 0.0
    %3127 = vmatpush2.msra.mxu0 0.0
    %3128 = vmatprep.subr.mxu0 0.0
    %3129 = vmatpush2.msra.mxu0 0.0
    %3130 = vmatprep.subr.mxu0 0.0
    %3131 = vmatpush2.msra.mxu0 0.0
    %3132 = vmatprep.subr.mxu0 0.0
    %3133 = vmatpush2.msra.mxu0 0.0
    %3134 = vmatprep.subr.mxu0 0.0
    %3135 = vmatpush2.msra.mxu0 0.0
    %3136 = vmatprep.subr.mxu0 0.0
    %3137 = vmatpush2.msra.mxu0 0.0
    %3138 = vmatprep.subr.mxu0 0.0
    %3139 = vmatpush2.msra.mxu0 0.0
    %3140 = vmatprep.subr.mxu0 0.0
    %3141 = vmatpush2.msra.mxu0 0.0
    %3142 = vmatprep.subr.mxu0 0.0
    %3143 = vmatpush2.msra.mxu0 0.0
    %3144 = vmatprep.subr.mxu0 0.0
    %3145 = vmatpush2.msra.mxu0 0.0
    %3146 = vmatprep.subr.mxu0 0.0
    %3147 = vmatpush2.msra.mxu0 0.0
    %3148 = vmatprep.mubr.f32.mxu0 0.0
    %v3149 = vand.u32 %v2627, 4294901760
    %3150 = vmatmul.mubr.f32.gmra.mxu0 %v3149
    %v3151 = vpop.f32.mrf.mxu0
    %v3152 = vadd.f32 %v3074, %v3151
    %v3153 = vpop.f32.mrf.mxu0
    %v3154 = vadd.f32 %v3076, %v3153
    %3155 = vdwg.mxu0
    %3156 = vmatprep.subr.mxu0 0.0
    %3157 = vmatpush1.msra.mxu0 0.0
    %3158 = vmatprep.subr.mxu0 0.0
    %3159 = vmatpush1.msra.mxu0 0.0
    %3160 = vmatprep.subr.mxu0 0.0
    %3161 = vmatpush1.msra.mxu0 0.0
    %3162 = vmatprep.subr.mxu0 0.0
    %3163 = vmatpush1.msra.mxu0 0.0
    %3164 = vmatprep.subr.mxu0 0.0
    %3165 = vmatpush1.msra.mxu0 0.0
    %3166 = vmatprep.subr.mxu0 0.0
    %3167 = vmatpush1.msra.mxu0 0.0
    %3168 = vmatprep.subr.mxu0 0.0
    %3169 = vmatpush1.msra.mxu0 0.0
    %3170 = vmatprep.subr.mxu0 0.0
    %3171 = vmatpush1.msra.mxu0 0.0
    %3172 = vmatprep.subr.mxu0 0.0
    %3173 = vmatpush1.msra.mxu0 0.0
    %3174 = vmatprep.subr.mxu0 0.0
    %3175 = vmatpush1.msra.mxu0 0.0
    %3176 = vmatprep.subr.mxu0 0.0
    %3177 = vmatpush1.msra.mxu0 0.0
    %3178 = vmatprep.subr.mxu0 0.0
    %3179 = vmatpush1.msra.mxu0 0.0
    %3180 = vmatprep.subr.mxu0 0.0
    %3181 = vmatpush1.msra.mxu0 0.0
    %3182 = vmatprep.subr.mxu0 0.0
    %v3183 = vand.u32 %v2637, 4294901760
    %3184 = vmatpush1.msra.mxu0 %v3183
    %3185 = vmatprep.subr.mxu0 0.0
    %v3186 = vand.u32 %v2621, 4294901760
    %3187 = vmatpush1.msra.mxu0 %v3186
    %3188 = vmatprep.subr.mxu0 0.0
    %v3189 = vand.u32 %v2618, 4294901760
    %3190 = vmatpush1.msra.mxu0 %v3189
    %3191 = vmatprep.subr.mxu0 0.0
    %3192 = vmatpush2.msra.mxu0 0.0
    %3193 = vmatprep.subr.mxu0 0.0
    %3194 = vmatpush2.msra.mxu0 0.0
    %3195 = vmatprep.subr.mxu0 0.0
    %3196 = vmatpush2.msra.mxu0 0.0
    %3197 = vmatprep.subr.mxu0 0.0
    %3198 = vmatpush2.msra.mxu0 0.0
    %3199 = vmatprep.subr.mxu0 0.0
    %3200 = vmatpush2.msra.mxu0 0.0
    %3201 = vmatprep.subr.mxu0 0.0
    %3202 = vmatpush2.msra.mxu0 0.0
    %3203 = vmatprep.subr.mxu0 0.0
    %3204 = vmatpush2.msra.mxu0 0.0
    %3205 = vmatprep.subr.mxu0 0.0
    %3206 = vmatpush2.msra.mxu0 0.0
    %3207 = vmatprep.subr.mxu0 0.0
    %3208 = vmatpush2.msra.mxu0 0.0
    %3209 = vmatprep.subr.mxu0 0.0
    %3210 = vmatpush2.msra.mxu0 0.0
    %3211 = vmatprep.subr.mxu0 0.0
    %3212 = vmatpush2.msra.mxu0 0.0
    %3213 = vmatprep.subr.mxu0 0.0
    %3214 = vmatpush2.msra.mxu0 0.0
    %3215 = vmatprep.subr.mxu0 0.0
    %3216 = vmatpush2.msra.mxu0 0.0
    %3217 = vmatprep.subr.mxu0 0.0
    %3218 = vmatpush2.msra.mxu0 0.0
    %3219 = vmatprep.subr.mxu0 0.0
    %3220 = vmatpush2.msra.mxu0 0.0
    %3221 = vmatprep.subr.mxu0 0.0
    %3222 = vmatpush2.msra.mxu0 0.0
    %3223 = vmatprep.mubr.f32.mxu0 0.0
    %v3224 = vand.u32 %v2627, 4294901760
    %v3225 = vsub.f32 %v2627, %v3224
    %v3226 = vand.u32 %v3225, 4294901760
    %v3227 = vsub.f32 %v3225, %v3226
    %v3228 = vand.u32 %v3227, 4294901760
    %3229 = vmatmul.mubr.f32.gmra.mxu0 %v3228
    %v3230 = vpop.f32.mrf.mxu0
    %v3231 = vadd.f32 0.0, %v3230
    %v3232 = vpop.f32.mrf.mxu0
    %3233 = vdwg.mxu0
    %3234 = vmatprep.subr.mxu0 0.0
    %3235 = vmatpush1.msra.mxu0 0.0
    %3236 = vmatprep.subr.mxu0 0.0
    %3237 = vmatpush1.msra.mxu0 0.0
    %3238 = vmatprep.subr.mxu0 0.0
    %3239 = vmatpush1.msra.mxu0 0.0
    %3240 = vmatprep.subr.mxu0 0.0
    %3241 = vmatpush1.msra.mxu0 0.0
    %3242 = vmatprep.subr.mxu0 0.0
    %3243 = vmatpush1.msra.mxu0 0.0
    %3244 = vmatprep.subr.mxu0 0.0
    %3245 = vmatpush1.msra.mxu0 0.0
    %3246 = vmatprep.subr.mxu0 0.0
    %3247 = vmatpush1.msra.mxu0 0.0
    %3248 = vmatprep.subr.mxu0 0.0
    %3249 = vmatpush1.msra.mxu0 0.0
    %3250 = vmatprep.subr.mxu0 0.0
    %3251 = vmatpush1.msra.mxu0 0.0
    %3252 = vmatprep.subr.mxu0 0.0
    %3253 = vmatpush1.msra.mxu0 0.0
    %3254 = vmatprep.subr.mxu0 0.0
    %3255 = vmatpush1.msra.mxu0 0.0
    %3256 = vmatprep.subr.mxu0 0.0
    %3257 = vmatpush1.msra.mxu0 0.0
    %3258 = vmatprep.subr.mxu0 0.0
    %3259 = vmatpush1.msra.mxu0 0.0
    %3260 = vmatprep.subr.mxu0 0.0
    %v3261 = vand.u32 %v2637, 4294901760
    %v3262 = vsub.f32 %v2637, %v3261
    %v3263 = vand.u32 %v3262, 4294901760
    %v3264 = vsub.f32 %v3262, %v3263
    %v3265 = vand.u32 %v3264, 4294901760
    %3266 = vmatpush1.msra.mxu0 %v3265
    %3267 = vmatprep.subr.mxu0 0.0
    %v3268 = vand.u32 %v2621, 4294901760
    %v3269 = vsub.f32 %v2621, %v3268
    %v3270 = vand.u32 %v3269, 4294901760
    %v3271 = vsub.f32 %v3269, %v3270
    %v3272 = vand.u32 %v3271, 4294901760
    %3273 = vmatpush1.msra.mxu0 %v3272
    %3274 = vmatprep.subr.mxu0 0.0
    %v3275 = vand.u32 %v2618, 4294901760
    %v3276 = vsub.f32 %v2618, %v3275
    %v3277 = vand.u32 %v3276, 4294901760
    %v3278 = vsub.f32 %v3276, %v3277
    %v3279 = vand.u32 %v3278, 4294901760
    %3280 = vmatpush1.msra.mxu0 %v3279
    %3281 = vmatprep.subr.mxu0 0.0
    %3282 = vmatpush2.msra.mxu0 0.0
    %3283 = vmatprep.subr.mxu0 0.0
    %3284 = vmatpush2.msra.mxu0 0.0
    %3285 = vmatprep.subr.mxu0 0.0
    %3286 = vmatpush2.msra.mxu0 0.0
    %3287 = vmatprep.subr.mxu0 0.0
    %3288 = vmatpush2.msra.mxu0 0.0
    %3289 = vmatprep.subr.mxu0 0.0
    %3290 = vmatpush2.msra.mxu0 0.0
    %3291 = vmatprep.subr.mxu0 0.0
    %3292 = vmatpush2.msra.mxu0 0.0
    %3293 = vmatprep.subr.mxu0 0.0
    %3294 = vmatpush2.msra.mxu0 0.0
    %3295 = vmatprep.subr.mxu0 0.0
    %3296 = vmatpush2.msra.mxu0 0.0
    %3297 = vmatprep.subr.mxu0 0.0
    %3298 = vmatpush2.msra.mxu0 0.0
    %3299 = vmatprep.subr.mxu0 0.0
    %3300 = vmatpush2.msra.mxu0 0.0
    %3301 = vmatprep.subr.mxu0 0.0
    %3302 = vmatpush2.msra.mxu0 0.0
    %3303 = vmatprep.subr.mxu0 0.0
    %3304 = vmatpush2.msra.mxu0 0.0
    %3305 = vmatprep.subr.mxu0 0.0
    %3306 = vmatpush2.msra.mxu0 0.0
    %3307 = vmatprep.subr.mxu0 0.0
    %3308 = vmatpush2.msra.mxu0 0.0
    %3309 = vmatprep.subr.mxu0 0.0
    %3310 = vmatpush2.msra.mxu0 0.0
    %3311 = vmatprep.subr.mxu0 0.0
    %3312 = vmatpush2.msra.mxu0 0.0
    %3313 = vmatprep.mubr.f32.mxu0 0.0
    %v3314 = vand.u32 %v2627, 4294901760
    %3315 = vmatmul.mubr.f32.gmra.mxu0 %v3314
    %v3316 = vpop.f32.mrf.mxu0
    %v3317 = vadd.f32 %v3231, %v3316
    %v3318 = vpop.f32.mrf.mxu0
    %3319 = vdwg.mxu0
    %3320 = vmatprep.subr.mxu0 0.0
    %3321 = vmatpush1.msra.mxu0 0.0
    %3322 = vmatprep.subr.mxu0 0.0
    %3323 = vmatpush1.msra.mxu0 0.0
    %3324 = vmatprep.subr.mxu0 0.0
    %3325 = vmatpush1.msra.mxu0 0.0
    %3326 = vmatprep.subr.mxu0 0.0
    %3327 = vmatpush1.msra.mxu0 0.0
    %3328 = vmatprep.subr.mxu0 0.0
    %3329 = vmatpush1.msra.mxu0 0.0
    %3330 = vmatprep.subr.mxu0 0.0
    %3331 = vmatpush1.msra.mxu0 0.0
    %3332 = vmatprep.subr.mxu0 0.0
    %3333 = vmatpush1.msra.mxu0 0.0
    %3334 = vmatprep.subr.mxu0 0.0
    %3335 = vmatpush1.msra.mxu0 0.0
    %3336 = vmatprep.subr.mxu0 0.0
    %3337 = vmatpush1.msra.mxu0 0.0
    %3338 = vmatprep.subr.mxu0 0.0
    %3339 = vmatpush1.msra.mxu0 0.0
    %3340 = vmatprep.subr.mxu0 0.0
    %3341 = vmatpush1.msra.mxu0 0.0
    %3342 = vmatprep.subr.mxu0 0.0
    %3343 = vmatpush1.msra.mxu0 0.0
    %3344 = vmatprep.subr.mxu0 0.0
    %3345 = vmatpush1.msra.mxu0 0.0
    %3346 = vmatprep.subr.mxu0 0.0
    %v3347 = vand.u32 %v2637, 4294901760
    %v3348 = vsub.f32 %v2637, %v3347
    %3349 = vmatpush1.msra.mxu0 %v3348
    %3350 = vmatprep.subr.mxu0 0.0
    %v3351 = vand.u32 %v2621, 4294901760
    %v3352 = vsub.f32 %v2621, %v3351
    %3353 = vmatpush1.msra.mxu0 %v3352
    %3354 = vmatprep.subr.mxu0 0.0
    %v3355 = vand.u32 %v2618, 4294901760
    %v3356 = vsub.f32 %v2618, %v3355
    %3357 = vmatpush1.msra.mxu0 %v3356
    %3358 = vmatprep.subr.mxu0 0.0
    %3359 = vmatpush2.msra.mxu0 0.0
    %3360 = vmatprep.subr.mxu0 0.0
    %3361 = vmatpush2.msra.mxu0 0.0
    %3362 = vmatprep.subr.mxu0 0.0
    %3363 = vmatpush2.msra.mxu0 0.0
    %3364 = vmatprep.subr.mxu0 0.0
    %3365 = vmatpush2.msra.mxu0 0.0
    %3366 = vmatprep.subr.mxu0 0.0
    %3367 = vmatpush2.msra.mxu0 0.0
    %3368 = vmatprep.subr.mxu0 0.0
    %3369 = vmatpush2.msra.mxu0 0.0
    %3370 = vmatprep.subr.mxu0 0.0
    %3371 = vmatpush2.msra.mxu0 0.0
    %3372 = vmatprep.subr.mxu0 0.0
    %3373 = vmatpush2.msra.mxu0 0.0
    %3374 = vmatprep.subr.mxu0 0.0
    %3375 = vmatpush2.msra.mxu0 0.0
    %3376 = vmatprep.subr.mxu0 0.0
    %3377 = vmatpush2.msra.mxu0 0.0
    %3378 = vmatprep.subr.mxu0 0.0
    %3379 = vmatpush2.msra.mxu0 0.0
    %3380 = vmatprep.subr.mxu0 0.0
    %3381 = vmatpush2.msra.mxu0 0.0
    %3382 = vmatprep.subr.mxu0 0.0
    %3383 = vmatpush2.msra.mxu0 0.0
    %3384 = vmatprep.subr.mxu0 0.0
    %3385 = vmatpush2.msra.mxu0 0.0
    %3386 = vmatprep.subr.mxu0 0.0
    %3387 = vmatpush2.msra.mxu0 0.0
    %3388 = vmatprep.subr.mxu0 0.0
    %3389 = vmatpush2.msra.mxu0 0.0
    %3390 = vmatprep.mubr.f32.mxu0 0.0
    %v3391 = vand.u32 %v2627, 4294901760
    %v3392 = vsub.f32 %v2627, %v3391
    %3393 = vmatmul.mubr.f32.gmra.mxu0 %v3392
    %v3394 = vpop.f32.mrf.mxu0
    %v3395 = vadd.f32 %v3317, %v3394
    %v3396 = vpop.f32.mrf.mxu0
    %3397 = vdwg.mxu0
    %3398 = vmatprep.subr.mxu0 0.0
    %3399 = vmatpush1.msra.mxu0 0.0
    %3400 = vmatprep.subr.mxu0 0.0
    %3401 = vmatpush1.msra.mxu0 0.0
    %3402 = vmatprep.subr.mxu0 0.0
    %3403 = vmatpush1.msra.mxu0 0.0
    %3404 = vmatprep.subr.mxu0 0.0
    %3405 = vmatpush1.msra.mxu0 0.0
    %3406 = vmatprep.subr.mxu0 0.0
    %3407 = vmatpush1.msra.mxu0 0.0
    %3408 = vmatprep.subr.mxu0 0.0
    %3409 = vmatpush1.msra.mxu0 0.0
    %3410 = vmatprep.subr.mxu0 0.0
    %3411 = vmatpush1.msra.mxu0 0.0
    %3412 = vmatprep.subr.mxu0 0.0
    %3413 = vmatpush1.msra.mxu0 0.0
    %3414 = vmatprep.subr.mxu0 0.0
    %3415 = vmatpush1.msra.mxu0 0.0
    %3416 = vmatprep.subr.mxu0 0.0
    %3417 = vmatpush1.msra.mxu0 0.0
    %3418 = vmatprep.subr.mxu0 0.0
    %3419 = vmatpush1.msra.mxu0 0.0
    %3420 = vmatprep.subr.mxu0 0.0
    %3421 = vmatpush1.msra.mxu0 0.0
    %3422 = vmatprep.subr.mxu0 0.0
    %3423 = vmatpush1.msra.mxu0 0.0
    %3424 = vmatprep.subr.mxu0 0.0
    %v3425 = vand.u32 %v2637, 4294901760
    %3426 = vmatpush1.msra.mxu0 %v3425
    %3427 = vmatprep.subr.mxu0 0.0
    %v3428 = vand.u32 %v2621, 4294901760
    %3429 = vmatpush1.msra.mxu0 %v3428
    %3430 = vmatprep.subr.mxu0 0.0
    %v3431 = vand.u32 %v2618, 4294901760
    %3432 = vmatpush1.msra.mxu0 %v3431
    %3433 = vmatprep.subr.mxu0 0.0
    %3434 = vmatpush2.msra.mxu0 0.0
    %3435 = vmatprep.subr.mxu0 0.0
    %3436 = vmatpush2.msra.mxu0 0.0
    %3437 = vmatprep.subr.mxu0 0.0
    %3438 = vmatpush2.msra.mxu0 0.0
    %3439 = vmatprep.subr.mxu0 0.0
    %3440 = vmatpush2.msra.mxu0 0.0
    %3441 = vmatprep.subr.mxu0 0.0
    %3442 = vmatpush2.msra.mxu0 0.0
    %3443 = vmatprep.subr.mxu0 0.0
    %3444 = vmatpush2.msra.mxu0 0.0
    %3445 = vmatprep.subr.mxu0 0.0
    %3446 = vmatpush2.msra.mxu0 0.0
    %3447 = vmatprep.subr.mxu0 0.0
    %3448 = vmatpush2.msra.mxu0 0.0
    %3449 = vmatprep.subr.mxu0 0.0
    %3450 = vmatpush2.msra.mxu0 0.0
    %3451 = vmatprep.subr.mxu0 0.0
    %3452 = vmatpush2.msra.mxu0 0.0
    %3453 = vmatprep.subr.mxu0 0.0
    %3454 = vmatpush2.msra.mxu0 0.0
    %3455 = vmatprep.subr.mxu0 0.0
    %3456 = vmatpush2.msra.mxu0 0.0
    %3457 = vmatprep.subr.mxu0 0.0
    %3458 = vmatpush2.msra.mxu0 0.0
    %3459 = vmatprep.subr.mxu0 0.0
    %3460 = vmatpush2.msra.mxu0 0.0
    %3461 = vmatprep.subr.mxu0 0.0
    %3462 = vmatpush2.msra.mxu0 0.0
    %3463 = vmatprep.subr.mxu0 0.0
    %3464 = vmatpush2.msra.mxu0 0.0
    %3465 = vmatprep.mubr.f32.mxu0 0.0
    %v3466 = vand.u32 %v2627, 4294901760
    %v3467 = vsub.f32 %v2627, %v3466
    %v3468 = vand.u32 %v3467, 4294901760
    %3469 = vmatmul.mubr.f32.gmra.mxu0 %v3468
    %v3470 = vpop.f32.mrf.mxu0
    %v3471 = vadd.f32 %v3395, %v3470
    %v3472 = vpop.f32.mrf.mxu0
    %3473 = vdwg.mxu0
    %3474 = vmatprep.subr.mxu0 0.0
    %3475 = vmatpush1.msra.mxu0 0.0
    %3476 = vmatprep.subr.mxu0 0.0
    %3477 = vmatpush1.msra.mxu0 0.0
    %3478 = vmatprep.subr.mxu0 0.0
    %3479 = vmatpush1.msra.mxu0 0.0
    %3480 = vmatprep.subr.mxu0 0.0
    %3481 = vmatpush1.msra.mxu0 0.0
    %3482 = vmatprep.subr.mxu0 0.0
    %3483 = vmatpush1.msra.mxu0 0.0
    %3484 = vmatprep.subr.mxu0 0.0
    %3485 = vmatpush1.msra.mxu0 0.0
    %3486 = vmatprep.subr.mxu0 0.0
    %3487 = vmatpush1.msra.mxu0 0.0
    %3488 = vmatprep.subr.mxu0 0.0
    %3489 = vmatpush1.msra.mxu0 0.0
    %3490 = vmatprep.subr.mxu0 0.0
    %3491 = vmatpush1.msra.mxu0 0.0
    %3492 = vmatprep.subr.mxu0 0.0
    %3493 = vmatpush1.msra.mxu0 0.0
    %3494 = vmatprep.subr.mxu0 0.0
    %3495 = vmatpush1.msra.mxu0 0.0
    %3496 = vmatprep.subr.mxu0 0.0
    %3497 = vmatpush1.msra.mxu0 0.0
    %3498 = vmatprep.subr.mxu0 0.0
    %3499 = vmatpush1.msra.mxu0 0.0
    %3500 = vmatprep.subr.mxu0 0.0
    %v3501 = vand.u32 %v2637, 4294901760
    %v3502 = vsub.f32 %v2637, %v3501
    %v3503 = vand.u32 %v3502, 4294901760
    %3504 = vmatpush1.msra.mxu0 %v3503
    %3505 = vmatprep.subr.mxu0 0.0
    %v3506 = vand.u32 %v2621, 4294901760
    %v3507 = vsub.f32 %v2621, %v3506
    %v3508 = vand.u32 %v3507, 4294901760
    %3509 = vmatpush1.msra.mxu0 %v3508
    %3510 = vmatprep.subr.mxu0 0.0
    %v3511 = vand.u32 %v2618, 4294901760
    %v3512 = vsub.f32 %v2618, %v3511
    %v3513 = vand.u32 %v3512, 4294901760
    %3514 = vmatpush1.msra.mxu0 %v3513
    %3515 = vmatprep.subr.mxu0 0.0
    %3516 = vmatpush2.msra.mxu0 0.0
    %3517 = vmatprep.subr.mxu0 0.0
    %3518 = vmatpush2.msra.mxu0 0.0
    %3519 = vmatprep.subr.mxu0 0.0
    %3520 = vmatpush2.msra.mxu0 0.0
    %3521 = vmatprep.subr.mxu0 0.0
    %3522 = vmatpush2.msra.mxu0 0.0
    %3523 = vmatprep.subr.mxu0 0.0
    %3524 = vmatpush2.msra.mxu0 0.0
    %3525 = vmatprep.subr.mxu0 0.0
    %3526 = vmatpush2.msra.mxu0 0.0
    %3527 = vmatprep.subr.mxu0 0.0
    %3528 = vmatpush2.msra.mxu0 0.0
    %3529 = vmatprep.subr.mxu0 0.0
    %3530 = vmatpush2.msra.mxu0 0.0
    %3531 = vmatprep.subr.mxu0 0.0
    %3532 = vmatpush2.msra.mxu0 0.0
    %3533 = vmatprep.subr.mxu0 0.0
    %3534 = vmatpush2.msra.mxu0 0.0
    %3535 = vmatprep.subr.mxu0 0.0
    %3536 = vmatpush2.msra.mxu0 0.0
    %3537 = vmatprep.subr.mxu0 0.0
    %3538 = vmatpush2.msra.mxu0 0.0
    %3539 = vmatprep.subr.mxu0 0.0
    %3540 = vmatpush2.msra.mxu0 0.0
    %3541 = vmatprep.subr.mxu0 0.0
    %3542 = vmatpush2.msra.mxu0 0.0
    %3543 = vmatprep.subr.mxu0 0.0
    %3544 = vmatpush2.msra.mxu0 0.0
    %3545 = vmatprep.subr.mxu0 0.0
    %3546 = vmatpush2.msra.mxu0 0.0
    %3547 = vmatprep.mubr.f32.mxu0 0.0
    %v3548 = vand.u32 %v2627, 4294901760
    %3549 = vmatmul.mubr.f32.gmra.mxu0 %v3548
    %v3550 = vpop.f32.mrf.mxu0
    %v3551 = vadd.f32 %v3471, %v3550
    %v3552 = vpop.f32.mrf.mxu0
    %3553 = vdwg.mxu0
    %3554 = vmatprep.subr.mxu0 0.0
    %3555 = vmatpush1.msra.mxu0 0.0
    %3556 = vmatprep.subr.mxu0 0.0
    %3557 = vmatpush1.msra.mxu0 0.0
    %3558 = vmatprep.subr.mxu0 0.0
    %3559 = vmatpush1.msra.mxu0 0.0
    %3560 = vmatprep.subr.mxu0 0.0
    %3561 = vmatpush1.msra.mxu0 0.0
    %3562 = vmatprep.subr.mxu0 0.0
    %3563 = vmatpush1.msra.mxu0 0.0
    %3564 = vmatprep.subr.mxu0 0.0
    %3565 = vmatpush1.msra.mxu0 0.0
    %3566 = vmatprep.subr.mxu0 0.0
    %3567 = vmatpush1.msra.mxu0 0.0
    %3568 = vmatprep.subr.mxu0 0.0
    %3569 = vmatpush1.msra.mxu0 0.0
    %3570 = vmatprep.subr.mxu0 0.0
    %3571 = vmatpush1.msra.mxu0 0.0
    %3572 = vmatprep.subr.mxu0 0.0
    %3573 = vmatpush1.msra.mxu0 0.0
    %3574 = vmatprep.subr.mxu0 0.0
    %3575 = vmatpush1.msra.mxu0 0.0
    %3576 = vmatprep.subr.mxu0 0.0
    %3577 = vmatpush1.msra.mxu0 0.0
    %3578 = vmatprep.subr.mxu0 0.0
    %3579 = vmatpush1.msra.mxu0 0.0
    %3580 = vmatprep.subr.mxu0 0.0
    %v3581 = vand.u32 %v2637, 4294901760
    %3582 = vmatpush1.msra.mxu0 %v3581
    %3583 = vmatprep.subr.mxu0 0.0
    %v3584 = vand.u32 %v2621, 4294901760
    %3585 = vmatpush1.msra.mxu0 %v3584
    %3586 = vmatprep.subr.mxu0 0.0
    %v3587 = vand.u32 %v2618, 4294901760
    %3588 = vmatpush1.msra.mxu0 %v3587
    %3589 = vmatprep.subr.mxu0 0.0
    %3590 = vmatpush2.msra.mxu0 0.0
    %3591 = vmatprep.subr.mxu0 0.0
    %3592 = vmatpush2.msra.mxu0 0.0
    %3593 = vmatprep.subr.mxu0 0.0
    %3594 = vmatpush2.msra.mxu0 0.0
    %3595 = vmatprep.subr.mxu0 0.0
    %3596 = vmatpush2.msra.mxu0 0.0
    %3597 = vmatprep.subr.mxu0 0.0
    %3598 = vmatpush2.msra.mxu0 0.0
    %3599 = vmatprep.subr.mxu0 0.0
    %3600 = vmatpush2.msra.mxu0 0.0
    %3601 = vmatprep.subr.mxu0 0.0
    %3602 = vmatpush2.msra.mxu0 0.0
    %3603 = vmatprep.subr.mxu0 0.0
    %3604 = vmatpush2.msra.mxu0 0.0
    %3605 = vmatprep.subr.mxu0 0.0
    %3606 = vmatpush2.msra.mxu0 0.0
    %3607 = vmatprep.subr.mxu0 0.0
    %3608 = vmatpush2.msra.mxu0 0.0
    %3609 = vmatprep.subr.mxu0 0.0
    %3610 = vmatpush2.msra.mxu0 0.0
    %3611 = vmatprep.subr.mxu0 0.0
    %3612 = vmatpush2.msra.mxu0 0.0
    %3613 = vmatprep.subr.mxu0 0.0
    %3614 = vmatpush2.msra.mxu0 0.0
    %3615 = vmatprep.subr.mxu0 0.0
    %3616 = vmatpush2.msra.mxu0 0.0
    %3617 = vmatprep.subr.mxu0 0.0
    %3618 = vmatpush2.msra.mxu0 0.0
    %3619 = vmatprep.subr.mxu0 0.0
    %3620 = vmatpush2.msra.mxu0 0.0
    %3621 = vmatprep.mubr.f32.mxu0 0.0
    %v3622 = vand.u32 %v2627, 4294901760
    %3623 = vmatmul.mubr.f32.gmra.mxu0 %v3622
    %v3624 = vpop.f32.mrf.mxu0
    %v3625 = vadd.f32 %v3551, %v3624
    %v3626 = vpop.f32.mrf.mxu0
    %3627 = vdwg.mxu0
    %v3628 = vmul.f32 %v3152, %v1147
    %v3629 = vmul.f32 %v3154, %v1149
    %v3630 = vmul.f32 %v3625, %v1646
    %v3631 = vld [vmem:[%s8] sm:$0xff]
    %v3632 = vld [vmem:[%s8 + $0x8] sm:$0xff]
    %v3633 = vld [vmem:[%s8 + $0x10] sm:$0xff]
    %v3634 = vld [vmem:[%s8 + $0x18] sm:$0xff]
    %v3635 = vld [vmem:[%s8 + $0x20] sm:$0xff]
    %v3636 = vld [vmem:[%s8 + $0x28] sm:$0xff]
    %v3637 = vld [vmem:[%s8 + $0x30] sm:$0xff]
    %v3638 = vld [vmem:[%s8 + $0x38] sm:$0xff]
    %v3639 = vld [vmem:[%s8 + $0x40] sm:$0xff]
    %v3640 = vld [vmem:[%s8 + $0x48] sm:$0xff]
    %v3641 = vld [vmem:[%s8 + $0x50] sm:$0xff]
    %v3642 = vld [vmem:[%s8 + $0x58] sm:$0xff]
    %v3643 = vld [vmem:[%s8 + $0x60] sm:$0xff]
    %v3644 = vld [vmem:[%s8 + $0x68] sm:$0xff]
    %v3645 = vld [vmem:[%s8 + $0x70] sm:$0xff]
    %v3646 = vld [vmem:[%s8 + $0x78] sm:$0xff]
    %v3647 = vld [vmem:[%s8 + $0x80] sm:$0xff]
    %v3648 = vld [vmem:[%s8 + $0x88] sm:$0xff]
    %v3649 = vld [vmem:[%s8 + $0x90] sm:$0xff]
    %v3650 = vld [vmem:[%s8 + $0x98] sm:$0xff]
    %v3651 = vld [vmem:[%s8 + $0xa0] sm:$0xff]
    %v3652 = vld [vmem:[%s8 + $0xa8] sm:$0xff]
    %v3653 = vld [vmem:[%s8 + $0xb0] sm:$0xff]
    %v3654 = vld [vmem:[%s8 + $0xb8] sm:$0xff]
    %v3655 = vld [vmem:[%s8 + $0xc0] sm:$0xff]
    %v3656 = vld [vmem:[%s8 + $0xc8] sm:$0xff]
    %v3657 = vld [vmem:[%s8 + $0xd0] sm:$0xff]
    %v3658 = vld [vmem:[%s8 + $0xd8] sm:$0xff]
    %v3659 = vld [vmem:[%s8 + $0xe0] sm:$0xff]
    %v3660 = vld [vmem:[%s8 + $0xe8] sm:$0xff]
    %v3661 = vld [vmem:[%s8 + $0xf0] sm:$0xff]
    %v3662 = vld [vmem:[%s8 + $0xf8] sm:$0xff]
    %v3663 = vld [vmem:[%s8 + $0x100] sm:$0xff]
    %v3664 = vld [vmem:[%s8 + $0x108] sm:$0xff]
    %v3665 = vld [vmem:[%s8 + $0x110] sm:$0xff]
    %v3666 = vld [vmem:[%s8 + $0x118] sm:$0xff]
    %v3667 = vld [vmem:[%s8 + $0x120] sm:$0x1]
    %vm3668 = vcmask 269312
    %v3670 = vsel %vm3668, %v3630, 0
    %v3673 = vsel %vm2629, %v3667, 0
    %3675 = vmatprep.subr.mxu0 0.0
    %v3676 = vand.u32 %v3646, 4294901760
    %3677 = vmatpush1.msra.mxu0 %v3676
    %3678 = vmatprep.subr.mxu0 0.0
    %v3679 = vand.u32 %v3645, 4294901760
    %3680 = vmatpush1.msra.mxu0 %v3679
    %3681 = vmatprep.subr.mxu0 0.0
    %v3682 = vand.u32 %v3644, 4294901760
    %3683 = vmatpush1.msra.mxu0 %v3682
    %3684 = vmatprep.subr.mxu0 0.0
    %v3685 = vand.u32 %v3643, 4294901760
    %3686 = vmatpush1.msra.mxu0 %v3685
    %3687 = vmatprep.subr.mxu0 0.0
    %v3688 = vand.u32 %v3642, 4294901760
    %3689 = vmatpush1.msra.mxu0 %v3688
    %3690 = vmatprep.subr.mxu0 0.0
    %v3691 = vand.u32 %v3641, 4294901760
    %3692 = vmatpush1.msra.mxu0 %v3691
    %3693 = vmatprep.subr.mxu0 0.0
    %v3694 = vand.u32 %v3640, 4294901760
    %3695 = vmatpush1.msra.mxu0 %v3694
    %3696 = vmatprep.subr.mxu0 0.0
    %v3697 = vand.u32 %v3639, 4294901760
    %3698 = vmatpush1.msra.mxu0 %v3697
    %3699 = vmatprep.subr.mxu0 0.0
    %v3700 = vand.u32 %v3638, 4294901760
    %3701 = vmatpush1.msra.mxu0 %v3700
    %3702 = vmatprep.subr.mxu0 0.0
    %v3703 = vand.u32 %v3637, 4294901760
    %3704 = vmatpush1.msra.mxu0 %v3703
    %3705 = vmatprep.subr.mxu0 0.0
    %v3706 = vand.u32 %v3636, 4294901760
    %3707 = vmatpush1.msra.mxu0 %v3706
    %3708 = vmatprep.subr.mxu0 0.0
    %v3709 = vand.u32 %v3635, 4294901760
    %3710 = vmatpush1.msra.mxu0 %v3709
    %3711 = vmatprep.subr.mxu0 0.0
    %v3712 = vand.u32 %v3634, 4294901760
    %3713 = vmatpush1.msra.mxu0 %v3712
    %3714 = vmatprep.subr.mxu0 0.0
    %v3715 = vand.u32 %v3633, 4294901760
    %3716 = vmatpush1.msra.mxu0 %v3715
    %3717 = vmatprep.subr.mxu0 0.0
    %v3718 = vand.u32 %v3632, 4294901760
    %3719 = vmatpush1.msra.mxu0 %v3718
    %3720 = vmatprep.subr.mxu0 0.0
    %v3721 = vand.u32 %v3631, 4294901760
    %3722 = vmatpush1.msra.mxu0 %v3721
    %3723 = vmatprep.subr.mxu0 0.0
    %v3724 = vand.u32 %v3662, 4294901760
    %3725 = vmatpush2.msra.mxu0 %v3724
    %3726 = vmatprep.subr.mxu0 0.0
    %v3727 = vand.u32 %v3661, 4294901760
    %3728 = vmatpush2.msra.mxu0 %v3727
    %3729 = vmatprep.subr.mxu0 0.0
    %v3730 = vand.u32 %v3660, 4294901760
    %3731 = vmatpush2.msra.mxu0 %v3730
    %3732 = vmatprep.subr.mxu0 0.0
    %v3733 = vand.u32 %v3659, 4294901760
    %3734 = vmatpush2.msra.mxu0 %v3733
    %3735 = vmatprep.subr.mxu0 0.0
    %v3736 = vand.u32 %v3658, 4294901760
    %3737 = vmatpush2.msra.mxu0 %v3736
    %3738 = vmatprep.subr.mxu0 0.0
    %v3739 = vand.u32 %v3657, 4294901760
    %3740 = vmatpush2.msra.mxu0 %v3739
    %3741 = vmatprep.subr.mxu0 0.0
    %v3742 = vand.u32 %v3656, 4294901760
    %3743 = vmatpush2.msra.mxu0 %v3742
    %3744 = vmatprep.subr.mxu0 0.0
    %v3745 = vand.u32 %v3655, 4294901760
    %3746 = vmatpush2.msra.mxu0 %v3745
    %3747 = vmatprep.subr.mxu0 0.0
    %v3748 = vand.u32 %v3654, 4294901760
    %3749 = vmatpush2.msra.mxu0 %v3748
    %3750 = vmatprep.subr.mxu0 0.0
    %v3751 = vand.u32 %v3653, 4294901760
    %3752 = vmatpush2.msra.mxu0 %v3751
    %3753 = vmatprep.subr.mxu0 0.0
    %v3754 = vand.u32 %v3652, 4294901760
    %3755 = vmatpush2.msra.mxu0 %v3754
    %3756 = vmatprep.subr.mxu0 0.0
    %v3757 = vand.u32 %v3651, 4294901760
    %3758 = vmatpush2.msra.mxu0 %v3757
    %3759 = vmatprep.subr.mxu0 0.0
    %v3760 = vand.u32 %v3650, 4294901760
    %3761 = vmatpush2.msra.mxu0 %v3760
    %3762 = vmatprep.subr.mxu0 0.0
    %v3763 = vand.u32 %v3649, 4294901760
    %3764 = vmatpush2.msra.mxu0 %v3763
    %3765 = vmatprep.subr.mxu0 0.0
    %v3766 = vand.u32 %v3648, 4294901760
    %3767 = vmatpush2.msra.mxu0 %v3766
    %3768 = vmatprep.subr.mxu0 0.0
    %v3769 = vand.u32 %v3647, 4294901760
    %3770 = vmatpush2.msra.mxu0 %v3769
    %v3771 = vand.u32 %v3629, 4294901760
    %v3772 = vsub.f32 %v3629, %v3771
    %v3773 = vand.u32 %v3772, 4294901760
    %v3774 = vsub.f32 %v3772, %v3773
    %v3775 = vand.u32 %v3774, 4294901760
    %3776 = vmatprep.mubr.f32.mxu0 %v3775
    %v3777 = vand.u32 %v3628, 4294901760
    %v3778 = vsub.f32 %v3628, %v3777
    %v3779 = vand.u32 %v3778, 4294901760
    %v3780 = vsub.f32 %v3778, %v3779
    %v3781 = vand.u32 %v3780, 4294901760
    %3782 = vmatmul.mubr.f32.gmra.mxu0 %v3781
    %v3783 = vpop.f32.mrf.mxu0
    %v3784 = vadd.f32 0.0, %v3783
    %v3785 = vpop.f32.mrf.mxu0
    %3786 = vdwg.mxu0
    %3787 = vmatprep.subr.mxu0 0.0
    %v3788 = vand.u32 %v3646, 4294901760
    %v3789 = vsub.f32 %v3646, %v3788
    %v3790 = vand.u32 %v3789, 4294901760
    %v3791 = vsub.f32 %v3789, %v3790
    %v3792 = vand.u32 %v3791, 4294901760
    %3793 = vmatpush1.msra.mxu0 %v3792
    %3794 = vmatprep.subr.mxu0 0.0
    %v3795 = vand.u32 %v3645, 4294901760
    %v3796 = vsub.f32 %v3645, %v3795
    %v3797 = vand.u32 %v3796, 4294901760
    %v3798 = vsub.f32 %v3796, %v3797
    %v3799 = vand.u32 %v3798, 4294901760
    %3800 = vmatpush1.msra.mxu0 %v3799
    %3801 = vmatprep.subr.mxu0 0.0
    %v3802 = vand.u32 %v3644, 4294901760
    %v3803 = vsub.f32 %v3644, %v3802
    %v3804 = vand.u32 %v3803, 4294901760
    %v3805 = vsub.f32 %v3803, %v3804
    %v3806 = vand.u32 %v3805, 4294901760
    %3807 = vmatpush1.msra.mxu0 %v3806
    %3808 = vmatprep.subr.mxu0 0.0
    %v3809 = vand.u32 %v3643, 4294901760
    %v3810 = vsub.f32 %v3643, %v3809
    %v3811 = vand.u32 %v3810, 4294901760
    %v3812 = vsub.f32 %v3810, %v3811
    %v3813 = vand.u32 %v3812, 4294901760
    %3814 = vmatpush1.msra.mxu0 %v3813
    %3815 = vmatprep.subr.mxu0 0.0
    %v3816 = vand.u32 %v3642, 4294901760
    %v3817 = vsub.f32 %v3642, %v3816
    %v3818 = vand.u32 %v3817, 4294901760
    %v3819 = vsub.f32 %v3817, %v3818
    %v3820 = vand.u32 %v3819, 4294901760
    %3821 = vmatpush1.msra.mxu0 %v3820
    %3822 = vmatprep.subr.mxu0 0.0
    %v3823 = vand.u32 %v3641, 4294901760
    %v3824 = vsub.f32 %v3641, %v3823
    %v3825 = vand.u32 %v3824, 4294901760
    %v3826 = vsub.f32 %v3824, %v3825
    %v3827 = vand.u32 %v3826, 4294901760
    %3828 = vmatpush1.msra.mxu0 %v3827
    %3829 = vmatprep.subr.mxu0 0.0
    %v3830 = vand.u32 %v3640, 4294901760
    %v3831 = vsub.f32 %v3640, %v3830
    %v3832 = vand.u32 %v3831, 4294901760
    %v3833 = vsub.f32 %v3831, %v3832
    %v3834 = vand.u32 %v3833, 4294901760
    %3835 = vmatpush1.msra.mxu0 %v3834
    %3836 = vmatprep.subr.mxu0 0.0
    %v3837 = vand.u32 %v3639, 4294901760
    %v3838 = vsub.f32 %v3639, %v3837
    %v3839 = vand.u32 %v3838, 4294901760
    %v3840 = vsub.f32 %v3838, %v3839
    %v3841 = vand.u32 %v3840, 4294901760
    %3842 = vmatpush1.msra.mxu0 %v3841
    %3843 = vmatprep.subr.mxu0 0.0
    %v3844 = vand.u32 %v3638, 4294901760
    %v3845 = vsub.f32 %v3638, %v3844
    %v3846 = vand.u32 %v3845, 4294901760
    %v3847 = vsub.f32 %v3845, %v3846
    %v3848 = vand.u32 %v3847, 4294901760
    %3849 = vmatpush1.msra.mxu0 %v3848
    %3850 = vmatprep.subr.mxu0 0.0
    %v3851 = vand.u32 %v3637, 4294901760
    %v3852 = vsub.f32 %v3637, %v3851
    %v3853 = vand.u32 %v3852, 4294901760
    %v3854 = vsub.f32 %v3852, %v3853
    %v3855 = vand.u32 %v3854, 4294901760
    %3856 = vmatpush1.msra.mxu0 %v3855
    %3857 = vmatprep.subr.mxu0 0.0
    %v3858 = vand.u32 %v3636, 4294901760
    %v3859 = vsub.f32 %v3636, %v3858
    %v3860 = vand.u32 %v3859, 4294901760
    %v3861 = vsub.f32 %v3859, %v3860
    %v3862 = vand.u32 %v3861, 4294901760
    %3863 = vmatpush1.msra.mxu0 %v3862
    %3864 = vmatprep.subr.mxu0 0.0
    %v3865 = vand.u32 %v3635, 4294901760
    %v3866 = vsub.f32 %v3635, %v3865
    %v3867 = vand.u32 %v3866, 4294901760
    %v3868 = vsub.f32 %v3866, %v3867
    %v3869 = vand.u32 %v3868, 4294901760
    %3870 = vmatpush1.msra.mxu0 %v3869
    %3871 = vmatprep.subr.mxu0 0.0
    %v3872 = vand.u32 %v3634, 4294901760
    %v3873 = vsub.f32 %v3634, %v3872
    %v3874 = vand.u32 %v3873, 4294901760
    %v3875 = vsub.f32 %v3873, %v3874
    %v3876 = vand.u32 %v3875, 4294901760
    %3877 = vmatpush1.msra.mxu0 %v3876
    %3878 = vmatprep.subr.mxu0 0.0
    %v3879 = vand.u32 %v3633, 4294901760
    %v3880 = vsub.f32 %v3633, %v3879
    %v3881 = vand.u32 %v3880, 4294901760
    %v3882 = vsub.f32 %v3880, %v3881
    %v3883 = vand.u32 %v3882, 4294901760
    %3884 = vmatpush1.msra.mxu0 %v3883
    %3885 = vmatprep.subr.mxu0 0.0
    %v3886 = vand.u32 %v3632, 4294901760
    %v3887 = vsub.f32 %v3632, %v3886
    %v3888 = vand.u32 %v3887, 4294901760
    %v3889 = vsub.f32 %v3887, %v3888
    %v3890 = vand.u32 %v3889, 4294901760
    %3891 = vmatpush1.msra.mxu0 %v3890
    %3892 = vmatprep.subr.mxu0 0.0
    %v3893 = vand.u32 %v3631, 4294901760
    %v3894 = vsub.f32 %v3631, %v3893
    %v3895 = vand.u32 %v3894, 4294901760
    %v3896 = vsub.f32 %v3894, %v3895
    %v3897 = vand.u32 %v3896, 4294901760
    %3898 = vmatpush1.msra.mxu0 %v3897
    %3899 = vmatprep.subr.mxu0 0.0
    %v3900 = vand.u32 %v3662, 4294901760
    %v3901 = vsub.f32 %v3662, %v3900
    %v3902 = vand.u32 %v3901, 4294901760
    %v3903 = vsub.f32 %v3901, %v3902
    %v3904 = vand.u32 %v3903, 4294901760
    %3905 = vmatpush2.msra.mxu0 %v3904
    %3906 = vmatprep.subr.mxu0 0.0
    %v3907 = vand.u32 %v3661, 4294901760
    %v3908 = vsub.f32 %v3661, %v3907
    %v3909 = vand.u32 %v3908, 4294901760
    %v3910 = vsub.f32 %v3908, %v3909
    %v3911 = vand.u32 %v3910, 4294901760
    %3912 = vmatpush2.msra.mxu0 %v3911
    %3913 = vmatprep.subr.mxu0 0.0
    %v3914 = vand.u32 %v3660, 4294901760
    %v3915 = vsub.f32 %v3660, %v3914
    %v3916 = vand.u32 %v3915, 4294901760
    %v3917 = vsub.f32 %v3915, %v3916
    %v3918 = vand.u32 %v3917, 4294901760
    %3919 = vmatpush2.msra.mxu0 %v3918
    %3920 = vmatprep.subr.mxu0 0.0
    %v3921 = vand.u32 %v3659, 4294901760
    %v3922 = vsub.f32 %v3659, %v3921
    %v3923 = vand.u32 %v3922, 4294901760
    %v3924 = vsub.f32 %v3922, %v3923
    %v3925 = vand.u32 %v3924, 4294901760
    %3926 = vmatpush2.msra.mxu0 %v3925
    %3927 = vmatprep.subr.mxu0 0.0
    %v3928 = vand.u32 %v3658, 4294901760
    %v3929 = vsub.f32 %v3658, %v3928
    %v3930 = vand.u32 %v3929, 4294901760
    %v3931 = vsub.f32 %v3929, %v3930
    %v3932 = vand.u32 %v3931, 4294901760
    %3933 = vmatpush2.msra.mxu0 %v3932
    %3934 = vmatprep.subr.mxu0 0.0
    %v3935 = vand.u32 %v3657, 4294901760
    %v3936 = vsub.f32 %v3657, %v3935
    %v3937 = vand.u32 %v3936, 4294901760
    %v3938 = vsub.f32 %v3936, %v3937
    %v3939 = vand.u32 %v3938, 4294901760
    %3940 = vmatpush2.msra.mxu0 %v3939
    %3941 = vmatprep.subr.mxu0 0.0
    %v3942 = vand.u32 %v3656, 4294901760
    %v3943 = vsub.f32 %v3656, %v3942
    %v3944 = vand.u32 %v3943, 4294901760
    %v3945 = vsub.f32 %v3943, %v3944
    %v3946 = vand.u32 %v3945, 4294901760
    %3947 = vmatpush2.msra.mxu0 %v3946
    %3948 = vmatprep.subr.mxu0 0.0
    %v3949 = vand.u32 %v3655, 4294901760
    %v3950 = vsub.f32 %v3655, %v3949
    %v3951 = vand.u32 %v3950, 4294901760
    %v3952 = vsub.f32 %v3950, %v3951
    %v3953 = vand.u32 %v3952, 4294901760
    %3954 = vmatpush2.msra.mxu0 %v3953
    %3955 = vmatprep.subr.mxu0 0.0
    %v3956 = vand.u32 %v3654, 4294901760
    %v3957 = vsub.f32 %v3654, %v3956
    %v3958 = vand.u32 %v3957, 4294901760
    %v3959 = vsub.f32 %v3957, %v3958
    %v3960 = vand.u32 %v3959, 4294901760
    %3961 = vmatpush2.msra.mxu0 %v3960
    %3962 = vmatprep.subr.mxu0 0.0
    %v3963 = vand.u32 %v3653, 4294901760
    %v3964 = vsub.f32 %v3653, %v3963
    %v3965 = vand.u32 %v3964, 4294901760
    %v3966 = vsub.f32 %v3964, %v3965
    %v3967 = vand.u32 %v3966, 4294901760
    %3968 = vmatpush2.msra.mxu0 %v3967
    %3969 = vmatprep.subr.mxu0 0.0
    %v3970 = vand.u32 %v3652, 4294901760
    %v3971 = vsub.f32 %v3652, %v3970
    %v3972 = vand.u32 %v3971, 4294901760
    %v3973 = vsub.f32 %v3971, %v3972
    %v3974 = vand.u32 %v3973, 4294901760
    %3975 = vmatpush2.msra.mxu0 %v3974
    %3976 = vmatprep.subr.mxu0 0.0
    %v3977 = vand.u32 %v3651, 4294901760
    %v3978 = vsub.f32 %v3651, %v3977
    %v3979 = vand.u32 %v3978, 4294901760
    %v3980 = vsub.f32 %v3978, %v3979
    %v3981 = vand.u32 %v3980, 4294901760
    %3982 = vmatpush2.msra.mxu0 %v3981
    %3983 = vmatprep.subr.mxu0 0.0
    %v3984 = vand.u32 %v3650, 4294901760
    %v3985 = vsub.f32 %v3650, %v3984
    %v3986 = vand.u32 %v3985, 4294901760
    %v3987 = vsub.f32 %v3985, %v3986
    %v3988 = vand.u32 %v3987, 4294901760
    %3989 = vmatpush2.msra.mxu0 %v3988
    %3990 = vmatprep.subr.mxu0 0.0
    %v3991 = vand.u32 %v3649, 4294901760
    %v3992 = vsub.f32 %v3649, %v3991
    %v3993 = vand.u32 %v3992, 4294901760
    %v3994 = vsub.f32 %v3992, %v3993
    %v3995 = vand.u32 %v3994, 4294901760
    %3996 = vmatpush2.msra.mxu0 %v3995
    %3997 = vmatprep.subr.mxu0 0.0
    %v3998 = vand.u32 %v3648, 4294901760
    %v3999 = vsub.f32 %v3648, %v3998
    %v4000 = vand.u32 %v3999, 4294901760
    %v4001 = vsub.f32 %v3999, %v4000
    %v4002 = vand.u32 %v4001, 4294901760
    %4003 = vmatpush2.msra.mxu0 %v4002
    %4004 = vmatprep.subr.mxu0 0.0
    %v4005 = vand.u32 %v3647, 4294901760
    %v4006 = vsub.f32 %v3647, %v4005
    %v4007 = vand.u32 %v4006, 4294901760
    %v4008 = vsub.f32 %v4006, %v4007
    %v4009 = vand.u32 %v4008, 4294901760
    %4010 = vmatpush2.msra.mxu0 %v4009
    %v4011 = vand.u32 %v3629, 4294901760
    %4012 = vmatprep.mubr.f32.mxu0 %v4011
    %v4013 = vand.u32 %v3628, 4294901760
    %4014 = vmatmul.mubr.f32.gmra.mxu0 %v4013
    %v4015 = vpop.f32.mrf.mxu0
    %v4016 = vadd.f32 %v3784, %v4015
    %v4017 = vpop.f32.mrf.mxu0
    %4018 = vdwg.mxu0
    %4019 = vmatprep.subr.mxu0 0.0
    %v4020 = vand.u32 %v3646, 4294901760
    %v4021 = vsub.f32 %v3646, %v4020
    %4022 = vmatpush1.msra.mxu0 %v4021
    %4023 = vmatprep.subr.mxu0 0.0
    %v4024 = vand.u32 %v3645, 4294901760
    %v4025 = vsub.f32 %v3645, %v4024
    %4026 = vmatpush1.msra.mxu0 %v4025
    %4027 = vmatprep.subr.mxu0 0.0
    %v4028 = vand.u32 %v3644, 4294901760
    %v4029 = vsub.f32 %v3644, %v4028
    %4030 = vmatpush1.msra.mxu0 %v4029
    %4031 = vmatprep.subr.mxu0 0.0
    %v4032 = vand.u32 %v3643, 4294901760
    %v4033 = vsub.f32 %v3643, %v4032
    %4034 = vmatpush1.msra.mxu0 %v4033
    %4035 = vmatprep.subr.mxu0 0.0
    %v4036 = vand.u32 %v3642, 4294901760
    %v4037 = vsub.f32 %v3642, %v4036
    %4038 = vmatpush1.msra.mxu0 %v4037
    %4039 = vmatprep.subr.mxu0 0.0
    %v4040 = vand.u32 %v3641, 4294901760
    %v4041 = vsub.f32 %v3641, %v4040
    %4042 = vmatpush1.msra.mxu0 %v4041
    %4043 = vmatprep.subr.mxu0 0.0
    %v4044 = vand.u32 %v3640, 4294901760
    %v4045 = vsub.f32 %v3640, %v4044
    %4046 = vmatpush1.msra.mxu0 %v4045
    %4047 = vmatprep.subr.mxu0 0.0
    %v4048 = vand.u32 %v3639, 4294901760
    %v4049 = vsub.f32 %v3639, %v4048
    %4050 = vmatpush1.msra.mxu0 %v4049
    %4051 = vmatprep.subr.mxu0 0.0
    %v4052 = vand.u32 %v3638, 4294901760
    %v4053 = vsub.f32 %v3638, %v4052
    %4054 = vmatpush1.msra.mxu0 %v4053
    %4055 = vmatprep.subr.mxu0 0.0
    %v4056 = vand.u32 %v3637, 4294901760
    %v4057 = vsub.f32 %v3637, %v4056
    %4058 = vmatpush1.msra.mxu0 %v4057
    %4059 = vmatprep.subr.mxu0 0.0
    %v4060 = vand.u32 %v3636, 4294901760
    %v4061 = vsub.f32 %v3636, %v4060
    %4062 = vmatpush1.msra.mxu0 %v4061
    %4063 = vmatprep.subr.mxu0 0.0
    %v4064 = vand.u32 %v3635, 4294901760
    %v4065 = vsub.f32 %v3635, %v4064
    %4066 = vmatpush1.msra.mxu0 %v4065
    %4067 = vmatprep.subr.mxu0 0.0
    %v4068 = vand.u32 %v3634, 4294901760
    %v4069 = vsub.f32 %v3634, %v4068
    %4070 = vmatpush1.msra.mxu0 %v4069
    %4071 = vmatprep.subr.mxu0 0.0
    %v4072 = vand.u32 %v3633, 4294901760
    %v4073 = vsub.f32 %v3633, %v4072
    %4074 = vmatpush1.msra.mxu0 %v4073
    %4075 = vmatprep.subr.mxu0 0.0
    %v4076 = vand.u32 %v3632, 4294901760
    %v4077 = vsub.f32 %v3632, %v4076
    %4078 = vmatpush1.msra.mxu0 %v4077
    %4079 = vmatprep.subr.mxu0 0.0
    %v4080 = vand.u32 %v3631, 4294901760
    %v4081 = vsub.f32 %v3631, %v4080
    %4082 = vmatpush1.msra.mxu0 %v4081
    %4083 = vmatprep.subr.mxu0 0.0
    %v4084 = vand.u32 %v3662, 4294901760
    %v4085 = vsub.f32 %v3662, %v4084
    %4086 = vmatpush2.msra.mxu0 %v4085
    %4087 = vmatprep.subr.mxu0 0.0
    %v4088 = vand.u32 %v3661, 4294901760
    %v4089 = vsub.f32 %v3661, %v4088
    %4090 = vmatpush2.msra.mxu0 %v4089
    %4091 = vmatprep.subr.mxu0 0.0
    %v4092 = vand.u32 %v3660, 4294901760
    %v4093 = vsub.f32 %v3660, %v4092
    %4094 = vmatpush2.msra.mxu0 %v4093
    %4095 = vmatprep.subr.mxu0 0.0
    %v4096 = vand.u32 %v3659, 4294901760
    %v4097 = vsub.f32 %v3659, %v4096
    %4098 = vmatpush2.msra.mxu0 %v4097
    %4099 = vmatprep.subr.mxu0 0.0
    %v4100 = vand.u32 %v3658, 4294901760
    %v4101 = vsub.f32 %v3658, %v4100
    %4102 = vmatpush2.msra.mxu0 %v4101
    %4103 = vmatprep.subr.mxu0 0.0
    %v4104 = vand.u32 %v3657, 4294901760
    %v4105 = vsub.f32 %v3657, %v4104
    %4106 = vmatpush2.msra.mxu0 %v4105
    %4107 = vmatprep.subr.mxu0 0.0
    %v4108 = vand.u32 %v3656, 4294901760
    %v4109 = vsub.f32 %v3656, %v4108
    %4110 = vmatpush2.msra.mxu0 %v4109
    %4111 = vmatprep.subr.mxu0 0.0
    %v4112 = vand.u32 %v3655, 4294901760
    %v4113 = vsub.f32 %v3655, %v4112
    %4114 = vmatpush2.msra.mxu0 %v4113
    %4115 = vmatprep.subr.mxu0 0.0
    %v4116 = vand.u32 %v3654, 4294901760
    %v4117 = vsub.f32 %v3654, %v4116
    %4118 = vmatpush2.msra.mxu0 %v4117
    %4119 = vmatprep.subr.mxu0 0.0
    %v4120 = vand.u32 %v3653, 4294901760
    %v4121 = vsub.f32 %v3653, %v4120
    %4122 = vmatpush2.msra.mxu0 %v4121
    %4123 = vmatprep.subr.mxu0 0.0
    %v4124 = vand.u32 %v3652, 4294901760
    %v4125 = vsub.f32 %v3652, %v4124
    %4126 = vmatpush2.msra.mxu0 %v4125
    %4127 = vmatprep.subr.mxu0 0.0
    %v4128 = vand.u32 %v3651, 4294901760
    %v4129 = vsub.f32 %v3651, %v4128
    %4130 = vmatpush2.msra.mxu0 %v4129
    %4131 = vmatprep.subr.mxu0 0.0
    %v4132 = vand.u32 %v3650, 4294901760
    %v4133 = vsub.f32 %v3650, %v4132
    %4134 = vmatpush2.msra.mxu0 %v4133
    %4135 = vmatprep.subr.mxu0 0.0
    %v4136 = vand.u32 %v3649, 4294901760
    %v4137 = vsub.f32 %v3649, %v4136
    %4138 = vmatpush2.msra.mxu0 %v4137
    %4139 = vmatprep.subr.mxu0 0.0
    %v4140 = vand.u32 %v3648, 4294901760
    %v4141 = vsub.f32 %v3648, %v4140
    %4142 = vmatpush2.msra.mxu0 %v4141
    %4143 = vmatprep.subr.mxu0 0.0
    %v4144 = vand.u32 %v3647, 4294901760
    %v4145 = vsub.f32 %v3647, %v4144
    %4146 = vmatpush2.msra.mxu0 %v4145
    %v4147 = vand.u32 %v3629, 4294901760
    %v4148 = vsub.f32 %v3629, %v4147
    %4149 = vmatprep.mubr.f32.mxu0 %v4148
    %v4150 = vand.u32 %v3628, 4294901760
    %v4151 = vsub.f32 %v3628, %v4150
    %4152 = vmatmul.mubr.f32.gmra.mxu0 %v4151
    %v4153 = vpop.f32.mrf.mxu0
    %v4154 = vadd.f32 %v4016, %v4153
    %v4155 = vpop.f32.mrf.mxu0
    %4156 = vdwg.mxu0
    %4157 = vmatprep.subr.mxu0 0.0
    %v4158 = vand.u32 %v3646, 4294901760
    %4159 = vmatpush1.msra.mxu0 %v4158
    %4160 = vmatprep.subr.mxu0 0.0
    %v4161 = vand.u32 %v3645, 4294901760
    %4162 = vmatpush1.msra.mxu0 %v4161
    %4163 = vmatprep.subr.mxu0 0.0
    %v4164 = vand.u32 %v3644, 4294901760
    %4165 = vmatpush1.msra.mxu0 %v4164
    %4166 = vmatprep.subr.mxu0 0.0
    %v4167 = vand.u32 %v3643, 4294901760
    %4168 = vmatpush1.msra.mxu0 %v4167
    %4169 = vmatprep.subr.mxu0 0.0
    %v4170 = vand.u32 %v3642, 4294901760
    %4171 = vmatpush1.msra.mxu0 %v4170
    %4172 = vmatprep.subr.mxu0 0.0
    %v4173 = vand.u32 %v3641, 4294901760
    %4174 = vmatpush1.msra.mxu0 %v4173
    %4175 = vmatprep.subr.mxu0 0.0
    %v4176 = vand.u32 %v3640, 4294901760
    %4177 = vmatpush1.msra.mxu0 %v4176
    %4178 = vmatprep.subr.mxu0 0.0
    %v4179 = vand.u32 %v3639, 4294901760
    %4180 = vmatpush1.msra.mxu0 %v4179
    %4181 = vmatprep.subr.mxu0 0.0
    %v4182 = vand.u32 %v3638, 4294901760
    %4183 = vmatpush1.msra.mxu0 %v4182
    %4184 = vmatprep.subr.mxu0 0.0
    %v4185 = vand.u32 %v3637, 4294901760
    %4186 = vmatpush1.msra.mxu0 %v4185
    %4187 = vmatprep.subr.mxu0 0.0
    %v4188 = vand.u32 %v3636, 4294901760
    %4189 = vmatpush1.msra.mxu0 %v4188
    %4190 = vmatprep.subr.mxu0 0.0
    %v4191 = vand.u32 %v3635, 4294901760
    %4192 = vmatpush1.msra.mxu0 %v4191
    %4193 = vmatprep.subr.mxu0 0.0
    %v4194 = vand.u32 %v3634, 4294901760
    %4195 = vmatpush1.msra.mxu0 %v4194
    %4196 = vmatprep.subr.mxu0 0.0
    %v4197 = vand.u32 %v3633, 4294901760
    %4198 = vmatpush1.msra.mxu0 %v4197
    %4199 = vmatprep.subr.mxu0 0.0
    %v4200 = vand.u32 %v3632, 4294901760
    %4201 = vmatpush1.msra.mxu0 %v4200
    %4202 = vmatprep.subr.mxu0 0.0
    %v4203 = vand.u32 %v3631, 4294901760
    %4204 = vmatpush1.msra.mxu0 %v4203
    %4205 = vmatprep.subr.mxu0 0.0
    %v4206 = vand.u32 %v3662, 4294901760
    %4207 = vmatpush2.msra.mxu0 %v4206
    %4208 = vmatprep.subr.mxu0 0.0
    %v4209 = vand.u32 %v3661, 4294901760
    %4210 = vmatpush2.msra.mxu0 %v4209
    %4211 = vmatprep.subr.mxu0 0.0
    %v4212 = vand.u32 %v3660, 4294901760
    %4213 = vmatpush2.msra.mxu0 %v4212
    %4214 = vmatprep.subr.mxu0 0.0
    %v4215 = vand.u32 %v3659, 4294901760
    %4216 = vmatpush2.msra.mxu0 %v4215
    %4217 = vmatprep.subr.mxu0 0.0
    %v4218 = vand.u32 %v3658, 4294901760
    %4219 = vmatpush2.msra.mxu0 %v4218
    %4220 = vmatprep.subr.mxu0 0.0
    %v4221 = vand.u32 %v3657, 4294901760
    %4222 = vmatpush2.msra.mxu0 %v4221
    %4223 = vmatprep.subr.mxu0 0.0
    %v4224 = vand.u32 %v3656, 4294901760
    %4225 = vmatpush2.msra.mxu0 %v4224
    %4226 = vmatprep.subr.mxu0 0.0
    %v4227 = vand.u32 %v3655, 4294901760
    %4228 = vmatpush2.msra.mxu0 %v4227
    %4229 = vmatprep.subr.mxu0 0.0
    %v4230 = vand.u32 %v3654, 4294901760
    %4231 = vmatpush2.msra.mxu0 %v4230
    %4232 = vmatprep.subr.mxu0 0.0
    %v4233 = vand.u32 %v3653, 4294901760
    %4234 = vmatpush2.msra.mxu0 %v4233
    %4235 = vmatprep.subr.mxu0 0.0
    %v4236 = vand.u32 %v3652, 4294901760
    %4237 = vmatpush2.msra.mxu0 %v4236
    %4238 = vmatprep.subr.mxu0 0.0
    %v4239 = vand.u32 %v3651, 4294901760
    %4240 = vmatpush2.msra.mxu0 %v4239
    %4241 = vmatprep.subr.mxu0 0.0
    %v4242 = vand.u32 %v3650, 4294901760
    %4243 = vmatpush2.msra.mxu0 %v4242
    %4244 = vmatprep.subr.mxu0 0.0
    %v4245 = vand.u32 %v3649, 4294901760
    %4246 = vmatpush2.msra.mxu0 %v4245
    %4247 = vmatprep.subr.mxu0 0.0
    %v4248 = vand.u32 %v3648, 4294901760
    %4249 = vmatpush2.msra.mxu0 %v4248
    %4250 = vmatprep.subr.mxu0 0.0
    %v4251 = vand.u32 %v3647, 4294901760
    %4252 = vmatpush2.msra.mxu0 %v4251
    %v4253 = vand.u32 %v3629, 4294901760
    %v4254 = vsub.f32 %v3629, %v4253
    %v4255 = vand.u32 %v4254, 4294901760
    %4256 = vmatprep.mubr.f32.mxu0 %v4255
    %v4257 = vand.u32 %v3628, 4294901760
    %v4258 = vsub.f32 %v3628, %v4257
    %v4259 = vand.u32 %v4258, 4294901760
    %4260 = vmatmul.mubr.f32.gmra.mxu0 %v4259
    %v4261 = vpop.f32.mrf.mxu0
    %v4262 = vadd.f32 %v4154, %v4261
    %v4263 = vpop.f32.mrf.mxu0
    %4264 = vdwg.mxu0
    %4265 = vmatprep.subr.mxu0 0.0
    %v4266 = vand.u32 %v3646, 4294901760
    %v4267 = vsub.f32 %v3646, %v4266
    %v4268 = vand.u32 %v4267, 4294901760
    %4269 = vmatpush1.msra.mxu0 %v4268
    %4270 = vmatprep.subr.mxu0 0.0
    %v4271 = vand.u32 %v3645, 4294901760
    %v4272 = vsub.f32 %v3645, %v4271
    %v4273 = vand.u32 %v4272, 4294901760
    %4274 = vmatpush1.msra.mxu0 %v4273
    %4275 = vmatprep.subr.mxu0 0.0
    %v4276 = vand.u32 %v3644, 4294901760
    %v4277 = vsub.f32 %v3644, %v4276
    %v4278 = vand.u32 %v4277, 4294901760
    %4279 = vmatpush1.msra.mxu0 %v4278
    %4280 = vmatprep.subr.mxu0 0.0
    %v4281 = vand.u32 %v3643, 4294901760
    %v4282 = vsub.f32 %v3643, %v4281
    %v4283 = vand.u32 %v4282, 4294901760
    %4284 = vmatpush1.msra.mxu0 %v4283
    %4285 = vmatprep.subr.mxu0 0.0
    %v4286 = vand.u32 %v3642, 4294901760
    %v4287 = vsub.f32 %v3642, %v4286
    %v4288 = vand.u32 %v4287, 4294901760
    %4289 = vmatpush1.msra.mxu0 %v4288
    %4290 = vmatprep.subr.mxu0 0.0
    %v4291 = vand.u32 %v3641, 4294901760
    %v4292 = vsub.f32 %v3641, %v4291
    %v4293 = vand.u32 %v4292, 4294901760
    %4294 = vmatpush1.msra.mxu0 %v4293
    %4295 = vmatprep.subr.mxu0 0.0
    %v4296 = vand.u32 %v3640, 4294901760
    %v4297 = vsub.f32 %v3640, %v4296
    %v4298 = vand.u32 %v4297, 4294901760
    %4299 = vmatpush1.msra.mxu0 %v4298
    %4300 = vmatprep.subr.mxu0 0.0
    %v4301 = vand.u32 %v3639, 4294901760
    %v4302 = vsub.f32 %v3639, %v4301
    %v4303 = vand.u32 %v4302, 4294901760
    %4304 = vmatpush1.msra.mxu0 %v4303
    %4305 = vmatprep.subr.mxu0 0.0
    %v4306 = vand.u32 %v3638, 4294901760
    %v4307 = vsub.f32 %v3638, %v4306
    %v4308 = vand.u32 %v4307, 4294901760
    %4309 = vmatpush1.msra.mxu0 %v4308
    %4310 = vmatprep.subr.mxu0 0.0
    %v4311 = vand.u32 %v3637, 4294901760
    %v4312 = vsub.f32 %v3637, %v4311
    %v4313 = vand.u32 %v4312, 4294901760
    %4314 = vmatpush1.msra.mxu0 %v4313
    %4315 = vmatprep.subr.mxu0 0.0
    %v4316 = vand.u32 %v3636, 4294901760
    %v4317 = vsub.f32 %v3636, %v4316
    %v4318 = vand.u32 %v4317, 4294901760
    %4319 = vmatpush1.msra.mxu0 %v4318
    %4320 = vmatprep.subr.mxu0 0.0
    %v4321 = vand.u32 %v3635, 4294901760
    %v4322 = vsub.f32 %v3635, %v4321
    %v4323 = vand.u32 %v4322, 4294901760
    %4324 = vmatpush1.msra.mxu0 %v4323
    %4325 = vmatprep.subr.mxu0 0.0
    %v4326 = vand.u32 %v3634, 4294901760
    %v4327 = vsub.f32 %v3634, %v4326
    %v4328 = vand.u32 %v4327, 4294901760
    %4329 = vmatpush1.msra.mxu0 %v4328
    %4330 = vmatprep.subr.mxu0 0.0
    %v4331 = vand.u32 %v3633, 4294901760
    %v4332 = vsub.f32 %v3633, %v4331
    %v4333 = vand.u32 %v4332, 4294901760
    %4334 = vmatpush1.msra.mxu0 %v4333
    %4335 = vmatprep.subr.mxu0 0.0
    %v4336 = vand.u32 %v3632, 4294901760
    %v4337 = vsub.f32 %v3632, %v4336
    %v4338 = vand.u32 %v4337, 4294901760
    %4339 = vmatpush1.msra.mxu0 %v4338
    %4340 = vmatprep.subr.mxu0 0.0
    %v4341 = vand.u32 %v3631, 4294901760
    %v4342 = vsub.f32 %v3631, %v4341
    %v4343 = vand.u32 %v4342, 4294901760
    %4344 = vmatpush1.msra.mxu0 %v4343
    %4345 = vmatprep.subr.mxu0 0.0
    %v4346 = vand.u32 %v3662, 4294901760
    %v4347 = vsub.f32 %v3662, %v4346
    %v4348 = vand.u32 %v4347, 4294901760
    %4349 = vmatpush2.msra.mxu0 %v4348
    %4350 = vmatprep.subr.mxu0 0.0
    %v4351 = vand.u32 %v3661, 4294901760
    %v4352 = vsub.f32 %v3661, %v4351
    %v4353 = vand.u32 %v4352, 4294901760
    %4354 = vmatpush2.msra.mxu0 %v4353
    %4355 = vmatprep.subr.mxu0 0.0
    %v4356 = vand.u32 %v3660, 4294901760
    %v4357 = vsub.f32 %v3660, %v4356
    %v4358 = vand.u32 %v4357, 4294901760
    %4359 = vmatpush2.msra.mxu0 %v4358
    %4360 = vmatprep.subr.mxu0 0.0
    %v4361 = vand.u32 %v3659, 4294901760
    %v4362 = vsub.f32 %v3659, %v4361
    %v4363 = vand.u32 %v4362, 4294901760
    %4364 = vmatpush2.msra.mxu0 %v4363
    %4365 = vmatprep.subr.mxu0 0.0
    %v4366 = vand.u32 %v3658, 4294901760
    %v4367 = vsub.f32 %v3658, %v4366
    %v4368 = vand.u32 %v4367, 4294901760
    %4369 = vmatpush2.msra.mxu0 %v4368
    %4370 = vmatprep.subr.mxu0 0.0
    %v4371 = vand.u32 %v3657, 4294901760
    %v4372 = vsub.f32 %v3657, %v4371
    %v4373 = vand.u32 %v4372, 4294901760
    %4374 = vmatpush2.msra.mxu0 %v4373
    %4375 = vmatprep.subr.mxu0 0.0
    %v4376 = vand.u32 %v3656, 4294901760
    %v4377 = vsub.f32 %v3656, %v4376
    %v4378 = vand.u32 %v4377, 4294901760
    %4379 = vmatpush2.msra.mxu0 %v4378
    %4380 = vmatprep.subr.mxu0 0.0
    %v4381 = vand.u32 %v3655, 4294901760
    %v4382 = vsub.f32 %v3655, %v4381
    %v4383 = vand.u32 %v4382, 4294901760
    %4384 = vmatpush2.msra.mxu0 %v4383
    %4385 = vmatprep.subr.mxu0 0.0
    %v4386 = vand.u32 %v3654, 4294901760
    %v4387 = vsub.f32 %v3654, %v4386
    %v4388 = vand.u32 %v4387, 4294901760
    %4389 = vmatpush2.msra.mxu0 %v4388
    %4390 = vmatprep.subr.mxu0 0.0
    %v4391 = vand.u32 %v3653, 4294901760
    %v4392 = vsub.f32 %v3653, %v4391
    %v4393 = vand.u32 %v4392, 4294901760
    %4394 = vmatpush2.msra.mxu0 %v4393
    %4395 = vmatprep.subr.mxu0 0.0
    %v4396 = vand.u32 %v3652, 4294901760
    %v4397 = vsub.f32 %v3652, %v4396
    %v4398 = vand.u32 %v4397, 4294901760
    %4399 = vmatpush2.msra.mxu0 %v4398
    %4400 = vmatprep.subr.mxu0 0.0
    %v4401 = vand.u32 %v3651, 4294901760
    %v4402 = vsub.f32 %v3651, %v4401
    %v4403 = vand.u32 %v4402, 4294901760
    %4404 = vmatpush2.msra.mxu0 %v4403
    %4405 = vmatprep.subr.mxu0 0.0
    %v4406 = vand.u32 %v3650, 4294901760
    %v4407 = vsub.f32 %v3650, %v4406
    %v4408 = vand.u32 %v4407, 4294901760
    %4409 = vmatpush2.msra.mxu0 %v4408
    %4410 = vmatprep.subr.mxu0 0.0
    %v4411 = vand.u32 %v3649, 4294901760
    %v4412 = vsub.f32 %v3649, %v4411
    %v4413 = vand.u32 %v4412, 4294901760
    %4414 = vmatpush2.msra.mxu0 %v4413
    %4415 = vmatprep.subr.mxu0 0.0
    %v4416 = vand.u32 %v3648, 4294901760
    %v4417 = vsub.f32 %v3648, %v4416
    %v4418 = vand.u32 %v4417, 4294901760
    %4419 = vmatpush2.msra.mxu0 %v4418
    %4420 = vmatprep.subr.mxu0 0.0
    %v4421 = vand.u32 %v3647, 4294901760
    %v4422 = vsub.f32 %v3647, %v4421
    %v4423 = vand.u32 %v4422, 4294901760
    %4424 = vmatpush2.msra.mxu0 %v4423
    %v4425 = vand.u32 %v3629, 4294901760
    %4426 = vmatprep.mubr.f32.mxu0 %v4425
    %v4427 = vand.u32 %v3628, 4294901760
    %4428 = vmatmul.mubr.f32.gmra.mxu0 %v4427
    %v4429 = vpop.f32.mrf.mxu0
    %v4430 = vadd.f32 %v4262, %v4429
    %v4431 = vpop.f32.mrf.mxu0
    %4432 = vdwg.mxu0
    %4433 = vmatprep.subr.mxu0 0.0
    %v4434 = vand.u32 %v3646, 4294901760
    %4435 = vmatpush1.msra.mxu0 %v4434
    %4436 = vmatprep.subr.mxu0 0.0
    %v4437 = vand.u32 %v3645, 4294901760
    %4438 = vmatpush1.msra.mxu0 %v4437
    %4439 = vmatprep.subr.mxu0 0.0
    %v4440 = vand.u32 %v3644, 4294901760
    %4441 = vmatpush1.msra.mxu0 %v4440
    %4442 = vmatprep.subr.mxu0 0.0
    %v4443 = vand.u32 %v3643, 4294901760
    %4444 = vmatpush1.msra.mxu0 %v4443
    %4445 = vmatprep.subr.mxu0 0.0
    %v4446 = vand.u32 %v3642, 4294901760
    %4447 = vmatpush1.msra.mxu0 %v4446
    %4448 = vmatprep.subr.mxu0 0.0
    %v4449 = vand.u32 %v3641, 4294901760
    %4450 = vmatpush1.msra.mxu0 %v4449
    %4451 = vmatprep.subr.mxu0 0.0
    %v4452 = vand.u32 %v3640, 4294901760
    %4453 = vmatpush1.msra.mxu0 %v4452
    %4454 = vmatprep.subr.mxu0 0.0
    %v4455 = vand.u32 %v3639, 4294901760
    %4456 = vmatpush1.msra.mxu0 %v4455
    %4457 = vmatprep.subr.mxu0 0.0
    %v4458 = vand.u32 %v3638, 4294901760
    %4459 = vmatpush1.msra.mxu0 %v4458
    %4460 = vmatprep.subr.mxu0 0.0
    %v4461 = vand.u32 %v3637, 4294901760
    %4462 = vmatpush1.msra.mxu0 %v4461
    %4463 = vmatprep.subr.mxu0 0.0
    %v4464 = vand.u32 %v3636, 4294901760
    %4465 = vmatpush1.msra.mxu0 %v4464
    %4466 = vmatprep.subr.mxu0 0.0
    %v4467 = vand.u32 %v3635, 4294901760
    %4468 = vmatpush1.msra.mxu0 %v4467
    %4469 = vmatprep.subr.mxu0 0.0
    %v4470 = vand.u32 %v3634, 4294901760
    %4471 = vmatpush1.msra.mxu0 %v4470
    %4472 = vmatprep.subr.mxu0 0.0
    %v4473 = vand.u32 %v3633, 4294901760
    %4474 = vmatpush1.msra.mxu0 %v4473
    %4475 = vmatprep.subr.mxu0 0.0
    %v4476 = vand.u32 %v3632, 4294901760
    %4477 = vmatpush1.msra.mxu0 %v4476
    %4478 = vmatprep.subr.mxu0 0.0
    %v4479 = vand.u32 %v3631, 4294901760
    %4480 = vmatpush1.msra.mxu0 %v4479
    %4481 = vmatprep.subr.mxu0 0.0
    %v4482 = vand.u32 %v3662, 4294901760
    %4483 = vmatpush2.msra.mxu0 %v4482
    %4484 = vmatprep.subr.mxu0 0.0
    %v4485 = vand.u32 %v3661, 4294901760
    %4486 = vmatpush2.msra.mxu0 %v4485
    %4487 = vmatprep.subr.mxu0 0.0
    %v4488 = vand.u32 %v3660, 4294901760
    %4489 = vmatpush2.msra.mxu0 %v4488
    %4490 = vmatprep.subr.mxu0 0.0
    %v4491 = vand.u32 %v3659, 4294901760
    %4492 = vmatpush2.msra.mxu0 %v4491
    %4493 = vmatprep.subr.mxu0 0.0
    %v4494 = vand.u32 %v3658, 4294901760
    %4495 = vmatpush2.msra.mxu0 %v4494
    %4496 = vmatprep.subr.mxu0 0.0
    %v4497 = vand.u32 %v3657, 4294901760
    %4498 = vmatpush2.msra.mxu0 %v4497
    %4499 = vmatprep.subr.mxu0 0.0
    %v4500 = vand.u32 %v3656, 4294901760
    %4501 = vmatpush2.msra.mxu0 %v4500
    %4502 = vmatprep.subr.mxu0 0.0
    %v4503 = vand.u32 %v3655, 4294901760
    %4504 = vmatpush2.msra.mxu0 %v4503
    %4505 = vmatprep.subr.mxu0 0.0
    %v4506 = vand.u32 %v3654, 4294901760
    %4507 = vmatpush2.msra.mxu0 %v4506
    %4508 = vmatprep.subr.mxu0 0.0
    %v4509 = vand.u32 %v3653, 4294901760
    %4510 = vmatpush2.msra.mxu0 %v4509
    %4511 = vmatprep.subr.mxu0 0.0
    %v4512 = vand.u32 %v3652, 4294901760
    %4513 = vmatpush2.msra.mxu0 %v4512
    %4514 = vmatprep.subr.mxu0 0.0
    %v4515 = vand.u32 %v3651, 4294901760
    %4516 = vmatpush2.msra.mxu0 %v4515
    %4517 = vmatprep.subr.mxu0 0.0
    %v4518 = vand.u32 %v3650, 4294901760
    %4519 = vmatpush2.msra.mxu0 %v4518
    %4520 = vmatprep.subr.mxu0 0.0
    %v4521 = vand.u32 %v3649, 4294901760
    %4522 = vmatpush2.msra.mxu0 %v4521
    %4523 = vmatprep.subr.mxu0 0.0
    %v4524 = vand.u32 %v3648, 4294901760
    %4525 = vmatpush2.msra.mxu0 %v4524
    %4526 = vmatprep.subr.mxu0 0.0
    %v4527 = vand.u32 %v3647, 4294901760
    %4528 = vmatpush2.msra.mxu0 %v4527
    %v4529 = vand.u32 %v3629, 4294901760
    %4530 = vmatprep.mubr.f32.mxu0 %v4529
    %v4531 = vand.u32 %v3628, 4294901760
    %4532 = vmatmul.mubr.f32.gmra.mxu0 %v4531
    %v4533 = vpop.f32.mrf.mxu0
    %v4534 = vadd.f32 %v4430, %v4533
    %v4535 = vpop.f32.mrf.mxu0
    %4536 = vdwg.mxu0
    %4537 = vmatprep.subr.mxu0 0.0
    %4538 = vmatpush1.msra.mxu0 0.0
    %4539 = vmatprep.subr.mxu0 0.0
    %4540 = vmatpush1.msra.mxu0 0.0
    %4541 = vmatprep.subr.mxu0 0.0
    %4542 = vmatpush1.msra.mxu0 0.0
    %4543 = vmatprep.subr.mxu0 0.0
    %4544 = vmatpush1.msra.mxu0 0.0
    %4545 = vmatprep.subr.mxu0 0.0
    %4546 = vmatpush1.msra.mxu0 0.0
    %4547 = vmatprep.subr.mxu0 0.0
    %4548 = vmatpush1.msra.mxu0 0.0
    %4549 = vmatprep.subr.mxu0 0.0
    %4550 = vmatpush1.msra.mxu0 0.0
    %4551 = vmatprep.subr.mxu0 0.0
    %4552 = vmatpush1.msra.mxu0 0.0
    %4553 = vmatprep.subr.mxu0 0.0
    %4554 = vmatpush1.msra.mxu0 0.0
    %4555 = vmatprep.subr.mxu0 0.0
    %4556 = vmatpush1.msra.mxu0 0.0
    %4557 = vmatprep.subr.mxu0 0.0
    %4558 = vmatpush1.msra.mxu0 0.0
    %4559 = vmatprep.subr.mxu0 0.0
    %v4560 = vand.u32 %v3673, 4294901760
    %4561 = vmatpush1.msra.mxu0 %v4560
    %4562 = vmatprep.subr.mxu0 0.0
    %v4563 = vand.u32 %v3666, 4294901760
    %4564 = vmatpush1.msra.mxu0 %v4563
    %4565 = vmatprep.subr.mxu0 0.0
    %v4566 = vand.u32 %v3665, 4294901760
    %4567 = vmatpush1.msra.mxu0 %v4566
    %4568 = vmatprep.subr.mxu0 0.0
    %v4569 = vand.u32 %v3664, 4294901760
    %4570 = vmatpush1.msra.mxu0 %v4569
    %4571 = vmatprep.subr.mxu0 0.0
    %v4572 = vand.u32 %v3663, 4294901760
    %4573 = vmatpush1.msra.mxu0 %v4572
    %4574 = vmatprep.subr.mxu0 0.0
    %4575 = vmatpush2.msra.mxu0 0.0
    %4576 = vmatprep.subr.mxu0 0.0
    %4577 = vmatpush2.msra.mxu0 0.0
    %4578 = vmatprep.subr.mxu0 0.0
    %4579 = vmatpush2.msra.mxu0 0.0
    %4580 = vmatprep.subr.mxu0 0.0
    %4581 = vmatpush2.msra.mxu0 0.0
    %4582 = vmatprep.subr.mxu0 0.0
    %4583 = vmatpush2.msra.mxu0 0.0
    %4584 = vmatprep.subr.mxu0 0.0
    %4585 = vmatpush2.msra.mxu0 0.0
    %4586 = vmatprep.subr.mxu0 0.0
    %4587 = vmatpush2.msra.mxu0 0.0
    %4588 = vmatprep.subr.mxu0 0.0
    %4589 = vmatpush2.msra.mxu0 0.0
    %4590 = vmatprep.subr.mxu0 0.0
    %4591 = vmatpush2.msra.mxu0 0.0
    %4592 = vmatprep.subr.mxu0 0.0
    %4593 = vmatpush2.msra.mxu0 0.0
    %4594 = vmatprep.subr.mxu0 0.0
    %4595 = vmatpush2.msra.mxu0 0.0
    %4596 = vmatprep.subr.mxu0 0.0
    %4597 = vmatpush2.msra.mxu0 0.0
    %4598 = vmatprep.subr.mxu0 0.0
    %4599 = vmatpush2.msra.mxu0 0.0
    %4600 = vmatprep.subr.mxu0 0.0
    %4601 = vmatpush2.msra.mxu0 0.0
    %4602 = vmatprep.subr.mxu0 0.0
    %4603 = vmatpush2.msra.mxu0 0.0
    %4604 = vmatprep.subr.mxu0 0.0
    %4605 = vmatpush2.msra.mxu0 0.0
    %4606 = vmatprep.mubr.f32.mxu0 0.0
    %v4607 = vand.u32 %v3670, 4294901760
    %v4608 = vsub.f32 %v3670, %v4607
    %v4609 = vand.u32 %v4608, 4294901760
    %v4610 = vsub.f32 %v4608, %v4609
    %v4611 = vand.u32 %v4610, 4294901760
    %4612 = vmatmul.mubr.f32.gmra.mxu0 %v4611
    %v4613 = vpop.f32.mrf.mxu0
    %v4614 = vadd.f32 %v4534, %v4613
    %v4615 = vpop.f32.mrf.mxu0
    %4616 = vdwg.mxu0
    %4617 = vmatprep.subr.mxu0 0.0
    %4618 = vmatpush1.msra.mxu0 0.0
    %4619 = vmatprep.subr.mxu0 0.0
    %4620 = vmatpush1.msra.mxu0 0.0
    %4621 = vmatprep.subr.mxu0 0.0
    %4622 = vmatpush1.msra.mxu0 0.0
    %4623 = vmatprep.subr.mxu0 0.0
    %4624 = vmatpush1.msra.mxu0 0.0
    %4625 = vmatprep.subr.mxu0 0.0
    %4626 = vmatpush1.msra.mxu0 0.0
    %4627 = vmatprep.subr.mxu0 0.0
    %4628 = vmatpush1.msra.mxu0 0.0
    %4629 = vmatprep.subr.mxu0 0.0
    %4630 = vmatpush1.msra.mxu0 0.0
    %4631 = vmatprep.subr.mxu0 0.0
    %4632 = vmatpush1.msra.mxu0 0.0
    %4633 = vmatprep.subr.mxu0 0.0
    %4634 = vmatpush1.msra.mxu0 0.0
    %4635 = vmatprep.subr.mxu0 0.0
    %4636 = vmatpush1.msra.mxu0 0.0
    %4637 = vmatprep.subr.mxu0 0.0
    %4638 = vmatpush1.msra.mxu0 0.0
    %4639 = vmatprep.subr.mxu0 0.0
    %v4640 = vand.u32 %v3673, 4294901760
    %v4641 = vsub.f32 %v3673, %v4640
    %v4642 = vand.u32 %v4641, 4294901760
    %v4643 = vsub.f32 %v4641, %v4642
    %v4644 = vand.u32 %v4643, 4294901760
    %4645 = vmatpush1.msra.mxu0 %v4644
    %4646 = vmatprep.subr.mxu0 0.0
    %v4647 = vand.u32 %v3666, 4294901760
    %v4648 = vsub.f32 %v3666, %v4647
    %v4649 = vand.u32 %v4648, 4294901760
    %v4650 = vsub.f32 %v4648, %v4649
    %v4651 = vand.u32 %v4650, 4294901760
    %4652 = vmatpush1.msra.mxu0 %v4651
    %4653 = vmatprep.subr.mxu0 0.0
    %v4654 = vand.u32 %v3665, 4294901760
    %v4655 = vsub.f32 %v3665, %v4654
    %v4656 = vand.u32 %v4655, 4294901760
    %v4657 = vsub.f32 %v4655, %v4656
    %v4658 = vand.u32 %v4657, 4294901760
    %4659 = vmatpush1.msra.mxu0 %v4658
    %4660 = vmatprep.subr.mxu0 0.0
    %v4661 = vand.u32 %v3664, 4294901760
    %v4662 = vsub.f32 %v3664, %v4661
    %v4663 = vand.u32 %v4662, 4294901760
    %v4664 = vsub.f32 %v4662, %v4663
    %v4665 = vand.u32 %v4664, 4294901760
    %4666 = vmatpush1.msra.mxu0 %v4665
    %4667 = vmatprep.subr.mxu0 0.0
    %v4668 = vand.u32 %v3663, 4294901760
    %v4669 = vsub.f32 %v3663, %v4668
    %v4670 = vand.u32 %v4669, 4294901760
    %v4671 = vsub.f32 %v4669, %v4670
    %v4672 = vand.u32 %v4671, 4294901760
    %4673 = vmatpush1.msra.mxu0 %v4672
    %4674 = vmatprep.subr.mxu0 0.0
    %4675 = vmatpush2.msra.mxu0 0.0
    %4676 = vmatprep.subr.mxu0 0.0
    %4677 = vmatpush2.msra.mxu0 0.0
    %4678 = vmatprep.subr.mxu0 0.0
    %4679 = vmatpush2.msra.mxu0 0.0
    %4680 = vmatprep.subr.mxu0 0.0
    %4681 = vmatpush2.msra.mxu0 0.0
    %4682 = vmatprep.subr.mxu0 0.0
    %4683 = vmatpush2.msra.mxu0 0.0
    %4684 = vmatprep.subr.mxu0 0.0
    %4685 = vmatpush2.msra.mxu0 0.0
    %4686 = vmatprep.subr.mxu0 0.0
    %4687 = vmatpush2.msra.mxu0 0.0
    %4688 = vmatprep.subr.mxu0 0.0
    %4689 = vmatpush2.msra.mxu0 0.0
    %4690 = vmatprep.subr.mxu0 0.0
    %4691 = vmatpush2.msra.mxu0 0.0
    %4692 = vmatprep.subr.mxu0 0.0
    %4693 = vmatpush2.msra.mxu0 0.0
    %4694 = vmatprep.subr.mxu0 0.0
    %4695 = vmatpush2.msra.mxu0 0.0
    %4696 = vmatprep.subr.mxu0 0.0
    %4697 = vmatpush2.msra.mxu0 0.0
    %4698 = vmatprep.subr.mxu0 0.0
    %4699 = vmatpush2.msra.mxu0 0.0
    %4700 = vmatprep.subr.mxu0 0.0
    %4701 = vmatpush2.msra.mxu0 0.0
    %4702 = vmatprep.subr.mxu0 0.0
    %4703 = vmatpush2.msra.mxu0 0.0
    %4704 = vmatprep.subr.mxu0 0.0
    %4705 = vmatpush2.msra.mxu0 0.0
    %4706 = vmatprep.mubr.f32.mxu0 0.0
    %v4707 = vand.u32 %v3670, 4294901760
    %4708 = vmatmul.mubr.f32.gmra.mxu0 %v4707
    %v4709 = vpop.f32.mrf.mxu0
    %v4710 = vadd.f32 %v4614, %v4709
    %v4711 = vpop.f32.mrf.mxu0
    %4712 = vdwg.mxu0
    %4713 = vmatprep.subr.mxu0 0.0
    %4714 = vmatpush1.msra.mxu0 0.0
    %4715 = vmatprep.subr.mxu0 0.0
    %4716 = vmatpush1.msra.mxu0 0.0
    %4717 = vmatprep.subr.mxu0 0.0
    %4718 = vmatpush1.msra.mxu0 0.0
    %4719 = vmatprep.subr.mxu0 0.0
    %4720 = vmatpush1.msra.mxu0 0.0
    %4721 = vmatprep.subr.mxu0 0.0
    %4722 = vmatpush1.msra.mxu0 0.0
    %4723 = vmatprep.subr.mxu0 0.0
    %4724 = vmatpush1.msra.mxu0 0.0
    %4725 = vmatprep.subr.mxu0 0.0
    %4726 = vmatpush1.msra.mxu0 0.0
    %4727 = vmatprep.subr.mxu0 0.0
    %4728 = vmatpush1.msra.mxu0 0.0
    %4729 = vmatprep.subr.mxu0 0.0
    %4730 = vmatpush1.msra.mxu0 0.0
    %4731 = vmatprep.subr.mxu0 0.0
    %4732 = vmatpush1.msra.mxu0 0.0
    %4733 = vmatprep.subr.mxu0 0.0
    %4734 = vmatpush1.msra.mxu0 0.0
    %4735 = vmatprep.subr.mxu0 0.0
    %v4736 = vand.u32 %v3673, 4294901760
    %v4737 = vsub.f32 %v3673, %v4736
    %4738 = vmatpush1.msra.mxu0 %v4737
    %4739 = vmatprep.subr.mxu0 0.0
    %v4740 = vand.u32 %v3666, 4294901760
    %v4741 = vsub.f32 %v3666, %v4740
    %4742 = vmatpush1.msra.mxu0 %v4741
    %4743 = vmatprep.subr.mxu0 0.0
    %v4744 = vand.u32 %v3665, 4294901760
    %v4745 = vsub.f32 %v3665, %v4744
    %4746 = vmatpush1.msra.mxu0 %v4745
    %4747 = vmatprep.subr.mxu0 0.0
    %v4748 = vand.u32 %v3664, 4294901760
    %v4749 = vsub.f32 %v3664, %v4748
    %4750 = vmatpush1.msra.mxu0 %v4749
    %4751 = vmatprep.subr.mxu0 0.0
    %v4752 = vand.u32 %v3663, 4294901760
    %v4753 = vsub.f32 %v3663, %v4752
    %4754 = vmatpush1.msra.mxu0 %v4753
    %4755 = vmatprep.subr.mxu0 0.0
    %4756 = vmatpush2.msra.mxu0 0.0
    %4757 = vmatprep.subr.mxu0 0.0
    %4758 = vmatpush2.msra.mxu0 0.0
    %4759 = vmatprep.subr.mxu0 0.0
    %4760 = vmatpush2.msra.mxu0 0.0
    %4761 = vmatprep.subr.mxu0 0.0
    %4762 = vmatpush2.msra.mxu0 0.0
    %4763 = vmatprep.subr.mxu0 0.0
    %4764 = vmatpush2.msra.mxu0 0.0
    %4765 = vmatprep.subr.mxu0 0.0
    %4766 = vmatpush2.msra.mxu0 0.0
    %4767 = vmatprep.subr.mxu0 0.0
    %4768 = vmatpush2.msra.mxu0 0.0
    %4769 = vmatprep.subr.mxu0 0.0
    %4770 = vmatpush2.msra.mxu0 0.0
    %4771 = vmatprep.subr.mxu0 0.0
    %4772 = vmatpush2.msra.mxu0 0.0
    %4773 = vmatprep.subr.mxu0 0.0
    %4774 = vmatpush2.msra.mxu0 0.0
    %4775 = vmatprep.subr.mxu0 0.0
    %4776 = vmatpush2.msra.mxu0 0.0
    %4777 = vmatprep.subr.mxu0 0.0
    %4778 = vmatpush2.msra.mxu0 0.0
    %4779 = vmatprep.subr.mxu0 0.0
    %4780 = vmatpush2.msra.mxu0 0.0
    %4781 = vmatprep.subr.mxu0 0.0
    %4782 = vmatpush2.msra.mxu0 0.0
    %4783 = vmatprep.subr.mxu0 0.0
    %4784 = vmatpush2.msra.mxu0 0.0
    %4785 = vmatprep.subr.mxu0 0.0
    %4786 = vmatpush2.msra.mxu0 0.0
    %4787 = vmatprep.mubr.f32.mxu0 0.0
    %v4788 = vand.u32 %v3670, 4294901760
    %v4789 = vsub.f32 %v3670, %v4788
    %4790 = vmatmul.mubr.f32.gmra.mxu0 %v4789
    %v4791 = vpop.f32.mrf.mxu0
    %v4792 = vadd.f32 %v4710, %v4791
    %v4793 = vpop.f32.mrf.mxu0
    %4794 = vdwg.mxu0
    %4795 = vmatprep.subr.mxu0 0.0
    %4796 = vmatpush1.msra.mxu0 0.0
    %4797 = vmatprep.subr.mxu0 0.0
    %4798 = vmatpush1.msra.mxu0 0.0
    %4799 = vmatprep.subr.mxu0 0.0
    %4800 = vmatpush1.msra.mxu0 0.0
    %4801 = vmatprep.subr.mxu0 0.0
    %4802 = vmatpush1.msra.mxu0 0.0
    %4803 = vmatprep.subr.mxu0 0.0
    %4804 = vmatpush1.msra.mxu0 0.0
    %4805 = vmatprep.subr.mxu0 0.0
    %4806 = vmatpush1.msra.mxu0 0.0
    %4807 = vmatprep.subr.mxu0 0.0
    %4808 = vmatpush1.msra.mxu0 0.0
    %4809 = vmatprep.subr.mxu0 0.0
    %4810 = vmatpush1.msra.mxu0 0.0
    %4811 = vmatprep.subr.mxu0 0.0
    %4812 = vmatpush1.msra.mxu0 0.0
    %4813 = vmatprep.subr.mxu0 0.0
    %4814 = vmatpush1.msra.mxu0 0.0
    %4815 = vmatprep.subr.mxu0 0.0
    %4816 = vmatpush1.msra.mxu0 0.0
    %4817 = vmatprep.subr.mxu0 0.0
    %v4818 = vand.u32 %v3673, 4294901760
    %4819 = vmatpush1.msra.mxu0 %v4818
    %4820 = vmatprep.subr.mxu0 0.0
    %v4821 = vand.u32 %v3666, 4294901760
    %4822 = vmatpush1.msra.mxu0 %v4821
    %4823 = vmatprep.subr.mxu0 0.0
    %v4824 = vand.u32 %v3665, 4294901760
    %4825 = vmatpush1.msra.mxu0 %v4824
    %4826 = vmatprep.subr.mxu0 0.0
    %v4827 = vand.u32 %v3664, 4294901760
    %4828 = vmatpush1.msra.mxu0 %v4827
    %4829 = vmatprep.subr.mxu0 0.0
    %v4830 = vand.u32 %v3663, 4294901760
    %4831 = vmatpush1.msra.mxu0 %v4830
    %4832 = vmatprep.subr.mxu0 0.0
    %4833 = vmatpush2.msra.mxu0 0.0
    %4834 = vmatprep.subr.mxu0 0.0
    %4835 = vmatpush2.msra.mxu0 0.0
    %4836 = vmatprep.subr.mxu0 0.0
    %4837 = vmatpush2.msra.mxu0 0.0
    %4838 = vmatprep.subr.mxu0 0.0
    %4839 = vmatpush2.msra.mxu0 0.0
    %4840 = vmatprep.subr.mxu0 0.0
    %4841 = vmatpush2.msra.mxu0 0.0
    %4842 = vmatprep.subr.mxu0 0.0
    %4843 = vmatpush2.msra.mxu0 0.0
    %4844 = vmatprep.subr.mxu0 0.0
    %4845 = vmatpush2.msra.mxu0 0.0
    %4846 = vmatprep.subr.mxu0 0.0
    %4847 = vmatpush2.msra.mxu0 0.0
    %4848 = vmatprep.subr.mxu0 0.0
    %4849 = vmatpush2.msra.mxu0 0.0
    %4850 = vmatprep.subr.mxu0 0.0
    %4851 = vmatpush2.msra.mxu0 0.0
    %4852 = vmatprep.subr.mxu0 0.0
    %4853 = vmatpush2.msra.mxu0 0.0
    %4854 = vmatprep.subr.mxu0 0.0
    %4855 = vmatpush2.msra.mxu0 0.0
    %4856 = vmatprep.subr.mxu0 0.0
    %4857 = vmatpush2.msra.mxu0 0.0
    %4858 = vmatprep.subr.mxu0 0.0
    %4859 = vmatpush2.msra.mxu0 0.0
    %4860 = vmatprep.subr.mxu0 0.0
    %4861 = vmatpush2.msra.mxu0 0.0
    %4862 = vmatprep.subr.mxu0 0.0
    %4863 = vmatpush2.msra.mxu0 0.0
    %4864 = vmatprep.mubr.f32.mxu0 0.0
    %v4865 = vand.u32 %v3670, 4294901760
    %v4866 = vsub.f32 %v3670, %v4865
    %v4867 = vand.u32 %v4866, 4294901760
    %4868 = vmatmul.mubr.f32.gmra.mxu0 %v4867
    %v4869 = vpop.f32.mrf.mxu0
    %v4870 = vadd.f32 %v4792, %v4869
    %v4871 = vpop.f32.mrf.mxu0
    %4872 = vdwg.mxu0
    %4873 = vmatprep.subr.mxu0 0.0
    %4874 = vmatpush1.msra.mxu0 0.0
    %4875 = vmatprep.subr.mxu0 0.0
    %4876 = vmatpush1.msra.mxu0 0.0
    %4877 = vmatprep.subr.mxu0 0.0
    %4878 = vmatpush1.msra.mxu0 0.0
    %4879 = vmatprep.subr.mxu0 0.0
    %4880 = vmatpush1.msra.mxu0 0.0
    %4881 = vmatprep.subr.mxu0 0.0
    %4882 = vmatpush1.msra.mxu0 0.0
    %4883 = vmatprep.subr.mxu0 0.0
    %4884 = vmatpush1.msra.mxu0 0.0
    %4885 = vmatprep.subr.mxu0 0.0
    %4886 = vmatpush1.msra.mxu0 0.0
    %4887 = vmatprep.subr.mxu0 0.0
    %4888 = vmatpush1.msra.mxu0 0.0
    %4889 = vmatprep.subr.mxu0 0.0
    %4890 = vmatpush1.msra.mxu0 0.0
    %4891 = vmatprep.subr.mxu0 0.0
    %4892 = vmatpush1.msra.mxu0 0.0
    %4893 = vmatprep.subr.mxu0 0.0
    %4894 = vmatpush1.msra.mxu0 0.0
    %4895 = vmatprep.subr.mxu0 0.0
    %v4896 = vand.u32 %v3673, 4294901760
    %v4897 = vsub.f32 %v3673, %v4896
    %v4898 = vand.u32 %v4897, 4294901760
    %4899 = vmatpush1.msra.mxu0 %v4898
    %4900 = vmatprep.subr.mxu0 0.0
    %v4901 = vand.u32 %v3666, 4294901760
    %v4902 = vsub.f32 %v3666, %v4901
    %v4903 = vand.u32 %v4902, 4294901760
    %4904 = vmatpush1.msra.mxu0 %v4903
    %4905 = vmatprep.subr.mxu0 0.0
    %v4906 = vand.u32 %v3665, 4294901760
    %v4907 = vsub.f32 %v3665, %v4906
    %v4908 = vand.u32 %v4907, 4294901760
    %4909 = vmatpush1.msra.mxu0 %v4908
    %4910 = vmatprep.subr.mxu0 0.0
    %v4911 = vand.u32 %v3664, 4294901760
    %v4912 = vsub.f32 %v3664, %v4911
    %v4913 = vand.u32 %v4912, 4294901760
    %4914 = vmatpush1.msra.mxu0 %v4913
    %4915 = vmatprep.subr.mxu0 0.0
    %v4916 = vand.u32 %v3663, 4294901760
    %v4917 = vsub.f32 %v3663, %v4916
    %v4918 = vand.u32 %v4917, 4294901760
    %4919 = vmatpush1.msra.mxu0 %v4918
    %4920 = vmatprep.subr.mxu0 0.0
    %4921 = vmatpush2.msra.mxu0 0.0
    %4922 = vmatprep.subr.mxu0 0.0
    %4923 = vmatpush2.msra.mxu0 0.0
    %4924 = vmatprep.subr.mxu0 0.0
    %4925 = vmatpush2.msra.mxu0 0.0
    %4926 = vmatprep.subr.mxu0 0.0
    %4927 = vmatpush2.msra.mxu0 0.0
    %4928 = vmatprep.subr.mxu0 0.0
    %4929 = vmatpush2.msra.mxu0 0.0
    %4930 = vmatprep.subr.mxu0 0.0
    %4931 = vmatpush2.msra.mxu0 0.0
    %4932 = vmatprep.subr.mxu0 0.0
    %4933 = vmatpush2.msra.mxu0 0.0
    %4934 = vmatprep.subr.mxu0 0.0
    %4935 = vmatpush2.msra.mxu0 0.0
    %4936 = vmatprep.subr.mxu0 0.0
    %4937 = vmatpush2.msra.mxu0 0.0
    %4938 = vmatprep.subr.mxu0 0.0
    %4939 = vmatpush2.msra.mxu0 0.0
    %4940 = vmatprep.subr.mxu0 0.0
    %4941 = vmatpush2.msra.mxu0 0.0
    %4942 = vmatprep.subr.mxu0 0.0
    %4943 = vmatpush2.msra.mxu0 0.0
    %4944 = vmatprep.subr.mxu0 0.0
    %4945 = vmatpush2.msra.mxu0 0.0
    %4946 = vmatprep.subr.mxu0 0.0
    %4947 = vmatpush2.msra.mxu0 0.0
    %4948 = vmatprep.subr.mxu0 0.0
    %4949 = vmatpush2.msra.mxu0 0.0
    %4950 = vmatprep.subr.mxu0 0.0
    %4951 = vmatpush2.msra.mxu0 0.0
    %4952 = vmatprep.mubr.f32.mxu0 0.0
    %v4953 = vand.u32 %v3670, 4294901760
    %4954 = vmatmul.mubr.f32.gmra.mxu0 %v4953
    %v4955 = vpop.f32.mrf.mxu0
    %v4956 = vadd.f32 %v4870, %v4955
    %v4957 = vpop.f32.mrf.mxu0
    %4958 = vdwg.mxu0
    %4959 = vmatprep.subr.mxu0 0.0
    %4960 = vmatpush1.msra.mxu0 0.0
    %4961 = vmatprep.subr.mxu0 0.0
    %4962 = vmatpush1.msra.mxu0 0.0
    %4963 = vmatprep.subr.mxu0 0.0
    %4964 = vmatpush1.msra.mxu0 0.0
    %4965 = vmatprep.subr.mxu0 0.0
    %4966 = vmatpush1.msra.mxu0 0.0
    %4967 = vmatprep.subr.mxu0 0.0
    %4968 = vmatpush1.msra.mxu0 0.0
    %4969 = vmatprep.subr.mxu0 0.0
    %4970 = vmatpush1.msra.mxu0 0.0
    %4971 = vmatprep.subr.mxu0 0.0
    %4972 = vmatpush1.msra.mxu0 0.0
    %4973 = vmatprep.subr.mxu0 0.0
    %4974 = vmatpush1.msra.mxu0 0.0
    %4975 = vmatprep.subr.mxu0 0.0
    %4976 = vmatpush1.msra.mxu0 0.0
    %4977 = vmatprep.subr.mxu0 0.0
    %4978 = vmatpush1.msra.mxu0 0.0
    %4979 = vmatprep.subr.mxu0 0.0
    %4980 = vmatpush1.msra.mxu0 0.0
    %4981 = vmatprep.subr.mxu0 0.0
    %v4982 = vand.u32 %v3673, 4294901760
    %4983 = vmatpush1.msra.mxu0 %v4982
    %4984 = vmatprep.subr.mxu0 0.0
    %v4985 = vand.u32 %v3666, 4294901760
    %4986 = vmatpush1.msra.mxu0 %v4985
    %4987 = vmatprep.subr.mxu0 0.0
    %v4988 = vand.u32 %v3665, 4294901760
    %4989 = vmatpush1.msra.mxu0 %v4988
    %4990 = vmatprep.subr.mxu0 0.0
    %v4991 = vand.u32 %v3664, 4294901760
    %4992 = vmatpush1.msra.mxu0 %v4991
    %4993 = vmatprep.subr.mxu0 0.0
    %v4994 = vand.u32 %v3663, 4294901760
    %4995 = vmatpush1.msra.mxu0 %v4994
    %4996 = vmatprep.subr.mxu0 0.0
    %4997 = vmatpush2.msra.mxu0 0.0
    %4998 = vmatprep.subr.mxu0 0.0
    %4999 = vmatpush2.msra.mxu0 0.0
    %5000 = vmatprep.subr.mxu0 0.0
    %5001 = vmatpush2.msra.mxu0 0.0
    %5002 = vmatprep.subr.mxu0 0.0
    %5003 = vmatpush2.msra.mxu0 0.0
    %5004 = vmatprep.subr.mxu0 0.0
    %5005 = vmatpush2.msra.mxu0 0.0
    %5006 = vmatprep.subr.mxu0 0.0
    %5007 = vmatpush2.msra.mxu0 0.0
    %5008 = vmatprep.subr.mxu0 0.0
    %5009 = vmatpush2.msra.mxu0 0.0
    %5010 = vmatprep.subr.mxu0 0.0
    %5011 = vmatpush2.msra.mxu0 0.0
    %5012 = vmatprep.subr.mxu0 0.0
    %5013 = vmatpush2.msra.mxu0 0.0
    %5014 = vmatprep.subr.mxu0 0.0
    %5015 = vmatpush2.msra.mxu0 0.0
    %5016 = vmatprep.subr.mxu0 0.0
    %5017 = vmatpush2.msra.mxu0 0.0
    %5018 = vmatprep.subr.mxu0 0.0
    %5019 = vmatpush2.msra.mxu0 0.0
    %5020 = vmatprep.subr.mxu0 0.0
    %5021 = vmatpush2.msra.mxu0 0.0
    %5022 = vmatprep.subr.mxu0 0.0
    %5023 = vmatpush2.msra.mxu0 0.0
    %5024 = vmatprep.subr.mxu0 0.0
    %5025 = vmatpush2.msra.mxu0 0.0
    %5026 = vmatprep.subr.mxu0 0.0
    %5027 = vmatpush2.msra.mxu0 0.0
    %5028 = vmatprep.mubr.f32.mxu0 0.0
    %v5029 = vand.u32 %v3670, 4294901760
    %5030 = vmatmul.mubr.f32.gmra.mxu0 %v5029
    %v5031 = vpop.f32.mrf.mxu0
    %v5032 = vadd.f32 %v4956, %v5031
    %v5033 = vpop.f32.mrf.mxu0
    %5034 = vdwg.mxu0
    %5035 = vst.msk [vmem:[#allocation2] sm:$0xff] %vm1650, %v2613
    %5036 = vst.msk [vmem:[#allocation4] sm:$0xff] %vm2625, %v5032
    // Predicated region
    $region38: #{tpu_custom_call.1} parent=1 // pred_check
      _
    $region39: #{tpu_custom_call.1} parent=1 // pred_check_branch
      %5038 = sbr.rel (0) target = $region41
    $region40: #{tpu_custom_call.1} parent=1 // pred_region
      %s5040 = ssub.s32 128, 128
      %5041 = vsyncadd [#allocation3], %s5040
      %s5043 = sshll.u32 [#allocation2], 4
      %s5044 = int_to_ptr.vmem [resolvable:$true] %s5043
      %5046 = dma.vmem_to_hbm [thread:$0]  %s5044, 128, %s9, [#allocation3]
    $region41: #{tpu_custom_call.1} parent=1 // pred_fallthru
      _
    // Predicated region
    $region42: #{tpu_custom_call.1} parent=1 // pred_check
      _
    $region43: #{tpu_custom_call.1} parent=1 // pred_check_branch
      %5048 = sbr.rel (0) target = $region45
    $region44: #{tpu_custom_call.1} parent=1 // pred_region
      %s5050 = ssub.s32 128, 128
      %5051 = vsyncadd [#allocation5], %s5050
      %s5053 = sshll.u32 [#allocation4], 4
      %s5054 = int_to_ptr.vmem [resolvable:$true] %s5053
      %5056 = dma.vmem_to_hbm [thread:$0]  %s5054, 128, %s10, [#allocation5]
    $region45: #{tpu_custom_call.1} parent=1 // pred_fallthru
      _
    // Predicated region
    $region46: #{tpu_custom_call.1} parent=1 // pred_check
      _
    $region47: #{tpu_custom_call.1} parent=1 // pred_check_branch
      %5058 = sbr.rel (0) target = $region49
    $region48: #{tpu_custom_call.1} parent=1 // pred_region
      %5059 = dma.done [#allocation3], 128
    $region49: #{tpu_custom_call.1} parent=1 // pred_fallthru
      _
    // Predicated region
    $region50: #{tpu_custom_call.1} parent=1 // pred_check
      _
    $region51: #{tpu_custom_call.1} parent=1 // pred_check_branch
      %5061 = sbr.rel (0) target = $region53
    $region52: #{tpu_custom_call.1} parent=1 // pred_region
      %5062 = dma.done [#allocation5], 128
    $region53: #{tpu_custom_call.1} parent=1 // pred_fallthru
      _
    %5063 = vsyncpa [#allocation3], 1
    %5064 = vsyncpa [#allocation5], 1

</llo_original>
